<compile_context>
chip_gen: v6e
topology: v6e:2x2x1
jax: 0.10.0
libtpu: 0.0.40
codegen_flags: <defaults>
</compile_context>

<pallas_src>
import functools

import jax
import jax.numpy as jnp
from jax.experimental import pallas as pl
from jax.experimental.pallas import tpu as pltpu

EPS = 1e-5          # nn.BatchNorm2d default
NEG_SLOPE = 0.01    # nn.LeakyReLU default
LANES = 128         # lane-dense channel padding target


def _lrelu(y):
    return jnp.where(y > 0, y, NEG_SLOPE * y)


# --------------------------------- kernels ----------------------------------

def conv1x1_stats_kernel(x_ref, w_ref, y_ref, st_ref, *, M, TM, ragged):
    """Stage 1: y = x @ w1 (bf16 MXU operands, f32 acc) + BN1 partial stats."""
    y = jnp.dot(x_ref[...].astype(jnp.bfloat16), w_ref[...],
                preferred_element_type=jnp.float32)
    if ragged:  # mask rows past M (garbage from the partial last block)
        rows = pl.program_id(0) * TM + jax.lax.broadcasted_iota(
            jnp.int32, (TM, 1), 0)
        y = jnp.where(rows < M, y, 0.0)
    y_ref[...] = y.astype(y_ref.dtype)                   # bf16 store to HBM
    s = jnp.sum(y, axis=0, keepdims=True)
    ss = jnp.sum(y * y, axis=0, keepdims=True)
    st_ref[0] = jnp.concatenate([s, ss], axis=0)         # (2, C) partial sums


def bn_act_conv3x3_stats_kernel(y_ref, sc_ref, sh_ref, w_ref, o_ref, st_ref,
                                h_ref, *, H, W, Wp):
    """Stage 2 (per image): fused BN1 + LeakyReLU + 3x3/s1/p1 conv + BN2 stats.

    y_ref : (1, H, W, C) bf16 pre-BN conv1 output (unpadded; halo built here).
    w_ref : (3, 3*C, C) bf16 -- taps of row ky concatenated along contraction.
    o_ref : (1, H*W, C) bf16 pre-BN conv2 output; st: (1, 2, C) f32 partials.
    h_ref : (H+2, Wp, C) f32 scratch (Wp = W+2 rounded up to 8 sublanes).
    """
    C = y_ref.shape[-1]
    f32 = jnp.float32
    # Zero only the halo strips that the shifted windows read. Done every grid
    # step: scratch persists across steps and across megacore shards, so a
    # one-time pid==0 init would be unsafe under "parallel" sharding.
    h_ref[0:1, :, :] = jnp.zeros((1, Wp, C), f32)
    h_ref[H + 1:H + 2, :, :] = jnp.zeros((1, Wp, C), f32)
    h_ref[1:H + 1, 0:1, :] = jnp.zeros((H, 1, C), f32)
    h_ref[1:H + 1, W + 1:W + 2, :] = jnp.zeros((H, 1, C), f32)
    # BN1 + LeakyReLU fused; conv padding applies after bn+relu (halo stays 0).
    y = y_ref[0].astype(f32)
    h_ref[1:H + 1, 1:W + 1, :] = _lrelu(y * sc_ref[0] + sh_ref[0])
    # 3x3 conv as 3 MXU dots (one per ky), contraction K = 3*C (>=384 here),
    # instead of a full 9-window im2col concat (3x smaller VMEM temporary).
    acc = jnp.zeros((H * W, C), f32)
    for ky in range(3):
        win = jnp.concatenate(
            [h_ref[ky:ky + H, kx:kx + W, :] for kx in range(3)], axis=-1)
        win = win.reshape(H * W, 3 * C).astype(jnp.bfloat16)
        acc = acc + jnp.dot(win, w_ref[ky], preferred_element_type=f32)
    o_ref[0] = acc.astype(o_ref.dtype)                    # bf16 store to HBM
    s = jnp.sum(acc, axis=0, keepdims=True)
    ss = jnp.sum(acc * acc, axis=0, keepdims=True)
    st_ref[0] = jnp.concatenate([s, ss], axis=0)


def bn_act_conv1x1_stats_kernel(y_ref, sc_ref, sh_ref, w_ref, o_ref, st_ref,
                                *, M, TM, ragged):
    """Stage 3: fused BN2 + LeakyReLU + 1x1 conv3 + BN3 partial stats."""
    h = _lrelu(y_ref[...].astype(jnp.float32) * sc_ref[...] + sh_ref[...])
    if ragged:  # zero rows past M so they don't pollute the BN3 statistics
        rows = pl.program_id(0) * TM + jax.lax.broadcasted_iota(
            jnp.int32, (TM, 1), 0)
        h = jnp.where(rows < M, h, 0.0)
    y = jnp.dot(h.astype(jnp.bfloat16), w_ref[...],
                preferred_element_type=jnp.float32)
    o_ref[...] = y.astype(o_ref.dtype)                    # bf16 store to HBM
    s = jnp.sum(y, axis=0, keepdims=True)
    ss = jnp.sum(y * y, axis=0, keepdims=True)
    st_ref[0] = jnp.concatenate([s, ss], axis=0)


def bn_add_act_kernel(y_ref, res_ref, sc_ref, sh_ref, o_ref):
    """Stage 4: fused BN3 + residual add + LeakyReLU (f32 output)."""
    o_ref[...] = _lrelu(y_ref[...].astype(jnp.float32) * sc_ref[...]
                        + sh_ref[...] + res_ref[...])


# --------------------------------- helpers ----------------------------------

def _round_up(n, m=LANES):
    return ((n + m - 1) // m) * m


def _pad_axis(a, size, axis):
    pad = [(0, 0)] * a.ndim
    pad[axis] = (0, size - a.shape[axis])
    return jnp.pad(a, pad)


def _pick_tile_m(m):
    """Fixed 512-row tiles at real sizes; >=2 grid steps whenever m allows."""
    if m >= 1024:
        return 512
    return max(16, _round_up(pl.cdiv(m, 2), 16))


def _mosaic(n_grid_dims, vmem_hint_bytes):
    # Per-stage VMEM limit: double-buffered blocks + scratch/temps + headroom,
    # floored at 32 MiB and capped at 56 MiB (v7x has 64 MiB per TensorCore).
    lim = int(min(56 << 20, max(32 << 20, vmem_hint_bytes + (8 << 20))))
    return pltpu.CompilerParams(
        dimension_semantics=("parallel",) * n_grid_dims,
        vmem_limit_bytes=lim)


def _bn_scale_shift(stats, count, gamma, beta):
    """Combine per-tile [sum, sumsq] partials -> per-channel BN scale/shift."""
    s = jnp.sum(stats[:, 0, :], axis=0)
    ss = jnp.sum(stats[:, 1, :], axis=0)
    mean = s / count
    var = jnp.maximum(ss / count - mean * mean, 0.0)   # biased (training) var
    scale = gamma * jax.lax.rsqrt(var + EPS)
    shift = beta - mean * scale
    return scale, shift


# --------------------------------- forward ----------------------------------

def bottleneck_forward(x_nchw, params):
    """Bottleneck forward (stride=1, downsample=None). x_nchw: (N, Cin, H, W)."""
    w1, g1, b1, w2, g2, b2, w3, g3, b3 = params
    x = jnp.transpose(x_nchw, (0, 2, 3, 1)).astype(jnp.float32)   # NCHW->NHWC
    N, H, W, Cin = x.shape
    Cmid, Cout = w1.shape[1], w3.shape[1]
    assert Cin == Cout, "identity residual requires Cin == Cout (downsample=None)"
    M = N * H * W
    HW = H * W

    # Lane-dense channel padding (>=128) -> full MXU columns + unmasked stores.
    Cin_p, Cmid_p, Cout_p = _round_up(Cin), _round_up(Cmid), _round_up(Cout)

    x2d = _pad_axis(x, Cin_p, axis=-1).reshape(M, Cin_p)          # residual too
    w1_p = _pad_axis(_pad_axis(w1, Cin_p, 0), Cmid_p, 1).astype(jnp.bfloat16)
    w3_p = _pad_axis(_pad_axis(w3, Cmid_p, 0), Cout_p, 1).astype(jnp.bfloat16)
    # (3, 3*Cmid_p, Cmid_p): per-ky stack of the 3 kx taps along contraction.
    w2_p = jnp.stack([
        jnp.concatenate([_pad_axis(_pad_axis(w2[ky, kx], Cmid_p, 0), Cmid_p, 1)
                         for kx in range(3)], axis=0)
        for ky in range(3)], axis=0).astype(jnp.bfloat16)
    g1_p = _pad_axis(g1.reshape(-1), Cmid_p, 0)
    b1_p = _pad_axis(b1.reshape(-1), Cmid_p, 0)
    g2_p = _pad_axis(g2.reshape(-1), Cmid_p, 0)
    b2_p = _pad_axis(b2.reshape(-1), Cmid_p, 0)
    g3_p = _pad_axis(g3.reshape(-1), Cout_p, 0)
    b3_p = _pad_axis(b3.reshape(-1), Cout_p, 0)

    TM = _pick_tile_m(M)
    G = pl.cdiv(M, TM)
    ragged = (M % TM) != 0
    Wp = _round_up(W + 2, 8)          # sublane-aligned scratch width

    # ---- stage 1: conv1 (1x1) + bn1 partial stats (M-tiled, cdiv grid) ------
    vmem1 = 2 * (TM * Cin_p * 4 + Cin_p * Cmid_p * 2 + TM * Cmid_p * 2
                 + 2 * Cmid_p * 4) + TM * Cmid_p * 4
    y1, st1 = pl.pallas_call(
        functools.partial(conv1x1_stats_kernel, M=M, TM=TM, ragged=ragged),
        grid=(G,),
        in_specs=[pl.BlockSpec((TM, Cin_p), lambda i: (i, 0)),
                  pl.BlockSpec((Cin_p, Cmid_p), lambda i: (0, 0))],
        out_specs=[pl.BlockSpec((TM, Cmid_p), lambda i: (i, 0)),
                   pl.BlockSpec((1, 2, Cmid_p), lambda i: (i, 0, 0))],
        out_shape=[jax.ShapeDtypeStruct((M, Cmid_p), jnp.bfloat16),
                   jax.ShapeDtypeStruct((G, 2, Cmid_p), jnp.float32)],
        compiler_params=_mosaic(1, vmem1),
    )(x2d, w1_p)
    sc1, sh1 = _bn_scale_shift(st1, M, g1_p, b1_p)

    # ---- stage 2: bn1+lrelu + conv2 (3x3) + bn2 partial stats (per image) ---
    # No HBM spatial pad: the halo is built inside the kernel's VMEM scratch.
    vmem2 = (2 * (HW * Cmid_p * 2 + 9 * Cmid_p * Cmid_p * 2 + HW * Cmid_p * 2
                  + 4 * Cmid_p * 4)
             + (H + 2) * Wp * Cmid_p * 4            # halo'd scratch
             + HW * 3 * Cmid_p * 6 + HW * Cmid_p * 4)   # per-ky window + acc
    y2, st2 = pl.pallas_call(
        functools.partial(bn_act_conv3x3_stats_kernel, H=H, W=W, Wp=Wp),
        grid=(N,),
        in_specs=[pl.BlockSpec((1, H, W, Cmid_p), lambda n: (n, 0, 0, 0)),
                  pl.BlockSpec((1, 1, Cmid_p), lambda n: (0, 0, 0)),
                  pl.BlockSpec((1, 1, Cmid_p), lambda n: (0, 0, 0)),
                  pl.BlockSpec((3, 3 * Cmid_p, Cmid_p), lambda n: (0, 0, 0))],
        out_specs=[pl.BlockSpec((1, HW, Cmid_p), lambda n: (n, 0, 0)),
                   pl.BlockSpec((1, 2, Cmid_p), lambda n: (n, 0, 0))],
        out_shape=[jax.ShapeDtypeStruct((N, HW, Cmid_p), jnp.bfloat16),
                   jax.ShapeDtypeStruct((N, 2, Cmid_p), jnp.float32)],
        scratch_shapes=[pltpu.VMEM((H + 2, Wp, Cmid_p), jnp.float32)],
        compiler_params=_mosaic(1, vmem2),
    )(y1.reshape(N, H, W, Cmid_p),                       # free (bitcast) reshape
      sc1.reshape(1, 1, Cmid_p), sh1.reshape(1, 1, Cmid_p), w2_p)
    sc2, sh2 = _bn_scale_shift(st2, M, g2_p, b2_p)

    # ---- stage 3: bn2+lrelu + conv3 (1x1) + bn3 partial stats (M-tiled) -----
    vmem3 = 2 * (TM * Cmid_p * 2 + 2 * Cmid_p * 4 + Cmid_p * Cout_p * 2
                 + TM * Cout_p * 2 + 2 * Cout_p * 4) + TM * (Cmid_p + Cout_p) * 4
    y3, st3 = pl.pallas_call(
        functools.partial(bn_act_conv1x1_stats_kernel, M=M, TM=TM, ragged=ragged),
        grid=(G,),
        in_specs=[pl.BlockSpec((TM, Cmid_p), lambda i: (i, 0)),
                  pl.BlockSpec((1, Cmid_p), lambda i: (0, 0)),
                  pl.BlockSpec((1, Cmid_p), lambda i: (0, 0)),
                  pl.BlockSpec((Cmid_p, Cout_p), lambda i: (0, 0))],
        out_specs=[pl.BlockSpec((TM, Cout_p), lambda i: (i, 0)),
                   pl.BlockSpec((1, 2, Cout_p), lambda i: (i, 0, 0))],
        out_shape=[jax.ShapeDtypeStruct((M, Cout_p), jnp.bfloat16),
                   jax.ShapeDtypeStruct((G, 2, Cout_p), jnp.float32)],
        compiler_params=_mosaic(1, vmem3),
    )(y2.reshape(M, Cmid_p), sc2.reshape(1, Cmid_p), sh2.reshape(1, Cmid_p), w3_p)
    sc3, sh3 = _bn_scale_shift(st3, M, g3_p, b3_p)

    # ---- stage 4: bn3 + residual add + lrelu (M-tiled) ----------------------
    vmem4 = 2 * (TM * Cout_p * 2 + TM * Cout_p * 4 + 2 * Cout_p * 4
                 + TM * Cout_p * 4)
    out = pl.pallas_call(
        bn_add_act_kernel,
        grid=(G,),
        in_specs=[pl.BlockSpec((TM, Cout_p), lambda i: (i, 0)),
                  pl.BlockSpec((TM, Cout_p), lambda i: (i, 0)),
                  pl.BlockSpec((1, Cout_p), lambda i: (0, 0)),
                  pl.BlockSpec((1, Cout_p), lambda i: (0, 0))],
        out_specs=pl.BlockSpec((TM, Cout_p), lambda i: (i, 0)),
        out_shape=jax.ShapeDtypeStruct((M, Cout_p), jnp.float32),
        compiler_params=_mosaic(1, vmem4),
    )(y3, x2d, sc3.reshape(1, Cout_p), sh3.reshape(1, Cout_p))

    out = out[:, :Cout].reshape(N, H, W, Cout)
    return jnp.transpose(out, (0, 3, 1, 2))                       # NHWC -> NCHW


# ------------------------- pure-JAX references (check) ------------------------

def bottleneck_reference(x_nchw, params, *, bf16_matmuls, bf16_intermediates=False):
    """Pure-JAX reference.

    bf16_matmuls=True mirrors the kernels' MXU operand precision;
    bf16_intermediates=True additionally mirrors the bf16 HBM storage of the
    conv outputs (BN stats still taken from the exact f32 conv outputs).
    """
    w1, g1, b1, w2, g2, b2, w3, g3, b3 = params
    x = jnp.transpose(x_nchw, (0, 2, 3, 1)).astype(jnp.float32)
    N, H, W, Cin = x.shape
    Cmid, Cout = w1.shape[1], w3.shape[1]
    M = N * H * W

    def dot(a, b):
        if bf16_matmuls:
            a, b = a.astype(jnp.bfloat16), b.astype(jnp.bfloat16)
        return jnp.dot(a, b, preferred_element_type=jnp.float32)

    def rnd(y):
        if bf16_intermediates:
            return y.astype(jnp.bfloat16).astype(jnp.float32)
        return y

    def bn(y, g, b):
        mean = jnp.mean(y, axis=0)
        var = jnp.mean(y * y, axis=0) - mean * mean
        scale = g.reshape(-1) * jax.lax.rsqrt(var + EPS)
        return rnd(y) * scale + (b.reshape(-1) - mean * scale)

    def lrelu(y):
        return jnp.where(y > 0, y, NEG_SLOPE * y)

    h1 = lrelu(bn(dot(x.reshape(M, Cin), w1), g1, b1)).reshape(N, H, W, Cmid)
    hp = jnp.pad(h1, ((0, 0), (1, 1), (1, 1), (0, 0)))
    acc = jnp.zeros((M, Cmid), jnp.float32)
    for ky in range(3):
        for kx in range(3):
            acc = acc + dot(hp[:, ky:ky + H, kx:kx + W, :].reshape(M, Cmid),
                            w2[ky, kx])
    h2 = lrelu(bn(acc, g2, b2))
    y = bn(dot(h2, w3), g3, b3) + x.reshape(M, Cin)
    return jnp.transpose(lrelu(y).reshape(N, H, W, Cout), (0, 3, 1, 2))


# ----------------------------------- main ------------------------------------

if __name__ == "__main__":
    # Bottleneck(in_planes=16, out_planes=4, stride=1, downsample=None)
    in_planes, out_planes, expansion = 16, 4, 4
    N, H, W = 2, 16, 16

    key = jax.random.PRNGKey(0)
    kx, k1, k2, k3 = jax.random.split(key, 4)
    x = jax.random.normal(kx, (N, in_planes, H, W), jnp.float32)

    # Deterministic synthetic weights in channels-last matmul layout.
    w1 = jax.random.normal(k1, (in_planes, out_planes), jnp.float32) * 0.1
    w2 = jax.random.normal(k2, (3, 3, out_planes, out_planes), jnp.float32) * 0.1
    w3 = jax.random.normal(k3, (out_planes, out_planes * expansion), jnp.float32) * 0.1
    # BatchNorm affine params at PyTorch __init__ defaults (gamma=1, beta=0).
    g1, b1 = jnp.ones((1, out_planes)), jnp.zeros((1, out_planes))
    g2, b2 = jnp.ones((1, out_planes)), jnp.zeros((1, out_planes))
    g3 = jnp.ones((1, out_planes * expansion))
    b3 = jnp.zeros((1, out_planes * expansion))
    params = (w1, g1, b1, w2, g2, b2, w3, g3, b3)

    out = jax.jit(bottleneck_forward)(x, params)
    out = jax.block_until_ready(out)
    assert out.shape == x.shape, (out.shape, x.shape)

    # Tight check vs a reference mirroring the kernels' precision policy
    # (bf16 MXU operands + bf16 HBM intermediates, f32 everywhere else).
    ref_mirror = bottleneck_reference(x, params, bf16_matmuls=True,
                                      bf16_intermediates=True)
    err_mirror = float(jnp.max(jnp.abs(out - ref_mirror)))
    assert jnp.allclose(out, ref_mirror, atol=5e-3, rtol=5e-3), err_mirror

    # Loose check vs the full-f32 (PyTorch-faithful) reference; the gap is the
    # documented bf16 precision policy of the kernels.
    ref_f32 = bottleneck_reference(x, params, bf16_matmuls=False)
    err_f32 = float(jnp.max(jnp.abs(out - ref_f32)))
    assert jnp.allclose(out, ref_f32, atol=1e-1, rtol=1e-1), err_f32

    print("KERNEL_OK")
</pallas_src>

<mosaic_0001>
module attributes {stable_mosaic.version = 11 : i64} {
  func.func @conv1x1_stats_kernel(%arg0: i32, %arg1: memref<256x128xf32, #tpu.memory_space<vmem>>, %arg2: memref<128x128xbf16, #tpu.memory_space<vmem>>, %arg3: memref<256x128xbf16, #tpu.memory_space<vmem>>, %arg4: memref<1x2x128xf32, #tpu.memory_space<vmem>>) attributes {dimension_semantics = [#tpu.dimension_semantics<parallel>], iteration_bounds = array<i64: 2>, scalar_prefetch = 0 : i64, scratch_operands = 0 : i64, tpu.core_type = #tpu.core_type<tc>, window_params = [{transform_indices = @transform_0, window_bounds = array<i64: 256, 128>}, {pipeline_mode = #tpu.pipeline_mode<synchronous>, transform_indices = @transform_1, window_bounds = array<i64: 128, 128>}, {transform_indices = @transform_2, window_bounds = array<i64: 256, 128>}, {transform_indices = @transform_3, window_bounds = array<i64: 1, 2, 128>}]} {
    %c0 = arith.constant 0 : index
    %c0_0 = arith.constant 0 : index
    %0 = vector.load %arg1[%c0, %c0_0] : memref<256x128xf32, #tpu.memory_space<vmem>>, vector<256x128xf32>
    %1 = arith.truncf %0 : vector<256x128xf32> to vector<256x128xbf16>
    %c0_1 = arith.constant 0 : index
    %c0_2 = arith.constant 0 : index
    %2 = vector.load %arg2[%c0_1, %c0_2] : memref<128x128xbf16, #tpu.memory_space<vmem>>, vector<128x128xbf16>
    %cst = arith.constant dense<0.000000e+00> : vector<256x128xf32>
    %3 = tpu.matmul %1, %2, %cst {dimension_numbers = #tpu.dot_dimension_numbers<[1], [0], [0], [1], [0, 0, 1, 1], [], []>} : vector<256x128xbf16>, vector<128x128xbf16>, vector<256x128xf32> -> vector<256x128xf32>
    %4 = arith.truncf %3 : vector<256x128xf32> to vector<256x128xbf16>
    %c0_3 = arith.constant 0 : index
    %c0_4 = arith.constant 0 : index
    %5 = vector.load %arg3[%c0_3, %c0_4] : memref<256x128xbf16, #tpu.memory_space<vmem>>, vector<256x128xbf16>
    tpu.vector_store %arg3[%c0_3, %c0_4], %4 {strides = array<i32>} : memref<256x128xbf16, #tpu.memory_space<vmem>>, vector<256x128xbf16>,
    %cst_5 = arith.constant dense<0.000000e+00> : vector<128xf32>
    %6 = vector.multi_reduction <add>, %3, %cst_5 [0] : vector<256x128xf32> to vector<128xf32>
    %7 = vector.shape_cast %6 : vector<128xf32> to vector<1x128xf32>
    %8 = arith.mulf %3, %3 : vector<256x128xf32>
    %cst_6 = arith.constant dense<0.000000e+00> : vector<128xf32>
    %9 = vector.multi_reduction <add>, %8, %cst_6 [0] : vector<256x128xf32> to vector<128xf32>
    %10 = vector.shape_cast %9 : vector<128xf32> to vector<1x128xf32>
    %11 = tpu.concatenate %7, %10 in 0 : vector<1x128xf32>, vector<1x128xf32> -> vector<2x128xf32>
    %c0_7 = arith.constant 0 : index
    %c0_8 = arith.constant 0 : index
    %c0_9 = arith.constant 0 : index
    %12 = vector.load %arg4[%c0_7, %c0_8, %c0_9] : memref<1x2x128xf32, #tpu.memory_space<vmem>>, vector<1x2x128xf32>
    %13 = vector.shape_cast %12 : vector<1x2x128xf32> to vector<2x128xf32>
    %14 = vector.shape_cast %11 : vector<2x128xf32> to vector<1x2x128xf32>
    tpu.vector_store %arg4[%c0_7, %c0_8, %c0_9], %14 {strides = array<i32>} : memref<1x2x128xf32, #tpu.memory_space<vmem>>, vector<1x2x128xf32>,
    return
  }
  func.func @transform_0(%arg0: i32) -> (i32, i32) {
    %c0_i32 = arith.constant 0 : i32
    %c0_i32_0 = arith.constant 0 : i32
    return %arg0, %c0_i32 : i32, i32
  }
  func.func @transform_1(%arg0: i32) -> (i32, i32) {
    %c0_i32 = arith.constant 0 : i32
    %c0_i32_0 = arith.constant 0 : i32
    %c0_i32_1 = arith.constant 0 : i32
    return %c0_i32, %c0_i32_0 : i32, i32
  }
  func.func @transform_2(%arg0: i32) -> (i32, i32) {
    %c0_i32 = arith.constant 0 : i32
    %c0_i32_0 = arith.constant 0 : i32
    return %arg0, %c0_i32 : i32, i32
  }
  func.func @transform_3(%arg0: i32) -> (i32, i32, i32) {
    %c0_i32 = arith.constant 0 : i32
    %c0_i32_0 = arith.constant 0 : i32
    %c0_i32_1 = arith.constant 0 : i32
    return %arg0, %c0_i32, %c0_i32_0 : i32, i32, i32
  }
}

module attributes {stable_mosaic.version = 11 : i64} {
  func.func @bn_act_conv3x3_stats_kernel(%arg0: i32, %arg1: memref<1x16x16x128xbf16, #tpu.memory_space<vmem>>, %arg2: memref<1x1x128xf32, #tpu.memory_space<vmem>>, %arg3: memref<1x1x128xf32, #tpu.memory_space<vmem>>, %arg4: memref<3x384x128xbf16, #tpu.memory_space<vmem>>, %arg5: memref<1x256x128xbf16, #tpu.memory_space<vmem>>, %arg6: memref<1x2x128xf32, #tpu.memory_space<vmem>>, %arg7: memref<18x24x128xf32, #tpu.memory_space<vmem>>) attributes {dimension_semantics = [#tpu.dimension_semantics<parallel>], iteration_bounds = array<i64: 2>, scalar_prefetch = 0 : i64, scratch_operands = 1 : i64, tpu.core_type = #tpu.core_type<tc>, window_params = [{transform_indices = @transform_0, window_bounds = array<i64: 1, 16, 16, 128>}, {pipeline_mode = #tpu.pipeline_mode<synchronous>, transform_indices = @transform_1, window_bounds = array<i64: 1, 1, 128>}, {pipeline_mode = #tpu.pipeline_mode<synchronous>, transform_indices = @transform_2, window_bounds = array<i64: 1, 1, 128>}, {pipeline_mode = #tpu.pipeline_mode<synchronous>, transform_indices = @transform_3, window_bounds = array<i64: 3, 384, 128>}, {transform_indices = @transform_4, window_bounds = array<i64: 1, 256, 128>}, {transform_indices = @transform_5, window_bounds = array<i64: 1, 2, 128>}]} {
    %cst = arith.constant 0.000000e+00 : f32
    %0 = vector.broadcast %cst : f32 to vector<1x24x128xf32>
    %c0 = arith.constant 0 : index
    %c0_0 = arith.constant 0 : index
    %c0_1 = arith.constant 0 : index
    %1 = vector.load %arg7[%c0, %c0_0, %c0_1] : memref<18x24x128xf32, #tpu.memory_space<vmem>>, vector<1x24x128xf32>
    tpu.vector_store %arg7[%c0, %c0_0, %c0_1], %0 {strides = array<i32>} : memref<18x24x128xf32, #tpu.memory_space<vmem>>, vector<1x24x128xf32>,
    %cst_2 = arith.constant 0.000000e+00 : f32
    %2 = vector.broadcast %cst_2 : f32 to vector<1x24x128xf32>
    %c17 = arith.constant 17 : index
    %c0_3 = arith.constant 0 : index
    %c0_4 = arith.constant 0 : index
    %3 = vector.load %arg7[%c17, %c0_3, %c0_4] : memref<18x24x128xf32, #tpu.memory_space<vmem>>, vector<1x24x128xf32>
    tpu.vector_store %arg7[%c17, %c0_3, %c0_4], %2 {strides = array<i32>} : memref<18x24x128xf32, #tpu.memory_space<vmem>>, vector<1x24x128xf32>,
    %cst_5 = arith.constant 0.000000e+00 : f32
    %4 = vector.broadcast %cst_5 : f32 to vector<16x1x128xf32>
    %c1 = arith.constant 1 : index
    %c0_6 = arith.constant 0 : index
    %c0_7 = arith.constant 0 : index
    %5 = vector.load %arg7[%c1, %c0_6, %c0_7] : memref<18x24x128xf32, #tpu.memory_space<vmem>>, vector<16x1x128xf32>
    tpu.vector_store %arg7[%c1, %c0_6, %c0_7], %4 {strides = array<i32>} : memref<18x24x128xf32, #tpu.memory_space<vmem>>, vector<16x1x128xf32>,
    %cst_8 = arith.constant 0.000000e+00 : f32
    %6 = vector.broadcast %cst_8 : f32 to vector<16x1x128xf32>
    %c1_9 = arith.constant 1 : index
    %c17_10 = arith.constant 17 : index
    %c0_11 = arith.constant 0 : index
    %7 = vector.load %arg7[%c1_9, %c17_10, %c0_11] : memref<18x24x128xf32, #tpu.memory_space<vmem>>, vector<16x1x128xf32>
    tpu.vector_store %arg7[%c1_9, %c17_10, %c0_11], %6 {strides = array<i32>} : memref<18x24x128xf32, #tpu.memory_space<vmem>>, vector<16x1x128xf32>,
    %c0_12 = arith.constant 0 : index
    %c0_13 = arith.constant 0 : index
    %c0_14 = arith.constant 0 : index
    %c0_15 = arith.constant 0 : index
    %8 = vector.load %arg1[%c0_12, %c0_13, %c0_14, %c0_15] : memref<1x16x16x128xbf16, #tpu.memory_space<vmem>>, vector<1x16x16x128xbf16>
    %9 = vector.shape_cast %8 : vector<1x16x16x128xbf16> to vector<16x16x128xbf16>
    %10 = arith.extf %9 : vector<16x16x128xbf16> to vector<16x16x128xf32>
    %c0_16 = arith.constant 0 : index
    %c0_17 = arith.constant 0 : index
    %c0_18 = arith.constant 0 : index
    %11 = vector.load %arg2[%c0_16, %c0_17, %c0_18] : memref<1x1x128xf32, #tpu.memory_space<vmem>>, vector<1x1x128xf32>
    %12 = vector.shape_cast %11 : vector<1x1x128xf32> to vector<1x128xf32>
    %13 = vector.shape_cast %12 : vector<1x128xf32> to vector<1x1x128xf32>
    %14 = vector.broadcast %13 : vector<1x1x128xf32> to vector<16x16x128xf32>
    %15 = arith.mulf %10, %14 : vector<16x16x128xf32>
    %c0_19 = arith.constant 0 : index
    %c0_20 = arith.constant 0 : index
    %c0_21 = arith.constant 0 : index
    %16 = vector.load %arg3[%c0_19, %c0_20, %c0_21] : memref<1x1x128xf32, #tpu.memory_space<vmem>>, vector<1x1x128xf32>
    %17 = vector.shape_cast %16 : vector<1x1x128xf32> to vector<1x128xf32>
    %18 = vector.shape_cast %17 : vector<1x128xf32> to vector<1x1x128xf32>
    %19 = vector.broadcast %18 : vector<1x1x128xf32> to vector<16x16x128xf32>
    %20 = arith.addf %15, %19 : vector<16x16x128xf32>
    %cst_22 = arith.constant 0.000000e+00 : f32
    %21 = vector.broadcast %cst_22 : f32 to vector<16x16x128xf32>
    %22 = arith.cmpf ogt, %20, %21 : vector<16x16x128xf32>
    %cst_23 = arith.constant 0.00999999977 : f32
    %23 = vector.broadcast %cst_23 : f32 to vector<16x16x128xf32>
    %24 = arith.mulf %23, %20 : vector<16x16x128xf32>
    %25 = arith.select %22, %20, %24 : vector<16x16x128xi1>, vector<16x16x128xf32>
    %c1_24 = arith.constant 1 : index
    %c1_25 = arith.constant 1 : index
    %c0_26 = arith.constant 0 : index
    %26 = vector.load %arg7[%c1_24, %c1_25, %c0_26] : memref<18x24x128xf32, #tpu.memory_space<vmem>>, vector<16x16x128xf32>
    tpu.vector_store %arg7[%c1_24, %c1_25, %c0_26], %25 {strides = array<i32>} : memref<18x24x128xf32, #tpu.memory_space<vmem>>, vector<16x16x128xf32>,
    %cst_27 = arith.constant 0.000000e+00 : f32
    %27 = vector.broadcast %cst_27 : f32 to vector<256x128xf32>
    %c0_28 = arith.constant 0 : index
    %c0_29 = arith.constant 0 : index
    %c0_30 = arith.constant 0 : index
    %28 = vector.load %arg7[%c0_28, %c0_29, %c0_30] : memref<18x24x128xf32, #tpu.memory_space<vmem>>, vector<16x16x128xf32>
    %c0_31 = arith.constant 0 : index
    %c1_32 = arith.constant 1 : index
    %c0_33 = arith.constant 0 : index
    %29 = vector.load %arg7[%c0_31, %c1_32, %c0_33] : memref<18x24x128xf32, #tpu.memory_space<vmem>>, vector<16x16x128xf32>
    %c0_34 = arith.constant 0 : index
    %c2 = arith.constant 2 : index
    %c0_35 = arith.constant 0 : index
    %30 = vector.load %arg7[%c0_34, %c2, %c0_35] : memref<18x24x128xf32, #tpu.memory_space<vmem>>, vector<16x16x128xf32>
    %31 = tpu.concatenate %28, %29, %30 in 2 : vector<16x16x128xf32>, vector<16x16x128xf32>, vector<16x16x128xf32> -> vector<16x16x384xf32>
    %32 = vector.shape_cast %31 : vector<16x16x384xf32> to vector<256x384xf32>
    %33 = arith.truncf %32 : vector<256x384xf32> to vector<256x384xbf16>
    %c0_36 = arith.constant 0 : index
    %c0_37 = arith.constant 0 : index
    %c0_38 = arith.constant 0 : index
    %34 = vector.load %arg4[%c0_36, %c0_37, %c0_38] : memref<3x384x128xbf16, #tpu.memory_space<vmem>>, vector<1x384x128xbf16>
    %35 = vector.shape_cast %34 : vector<1x384x128xbf16> to vector<384x128xbf16>
    %cst_39 = arith.constant dense<0.000000e+00> : vector<256x128xf32>
    %36 = tpu.matmul %33, %35, %cst_39 {dimension_numbers = #tpu.dot_dimension_numbers<[1], [0], [0], [1], [0, 0, 1, 1], [], []>} : vector<256x384xbf16>, vector<384x128xbf16>, vector<256x128xf32> -> vector<256x128xf32>
    %37 = arith.addf %27, %36 : vector<256x128xf32>
    %c1_40 = arith.constant 1 : index
    %c0_41 = arith.constant 0 : index
    %c0_42 = arith.constant 0 : index
    %38 = vector.load %arg7[%c1_40, %c0_41, %c0_42] : memref<18x24x128xf32, #tpu.memory_space<vmem>>, vector<16x16x128xf32>
    %c1_43 = arith.constant 1 : index
    %c1_44 = arith.constant 1 : index
    %c0_45 = arith.constant 0 : index
    %39 = vector.load %arg7[%c1_43, %c1_44, %c0_45] : memref<18x24x128xf32, #tpu.memory_space<vmem>>, vector<16x16x128xf32>
    %c1_46 = arith.constant 1 : index
    %c2_47 = arith.constant 2 : index
    %c0_48 = arith.constant 0 : index
    %40 = vector.load %arg7[%c1_46, %c2_47, %c0_48] : memref<18x24x128xf32, #tpu.memory_space<vmem>>, vector<16x16x128xf32>
    %41 = tpu.concatenate %38, %39, %40 in 2 : vector<16x16x128xf32>, vector<16x16x128xf32>, vector<16x16x128xf32> -> vector<16x16x384xf32>
    %42 = vector.shape_cast %41 : vector<16x16x384xf32> to vector<256x384xf32>
    %43 = arith.truncf %42 : vector<256x384xf32> to vector<256x384xbf16>
    %c1_49 = arith.constant 1 : index
    %c0_50 = arith.constant 0 : index
    %c0_51 = arith.constant 0 : index
    %44 = vector.load %arg4[%c1_49, %c0_50, %c0_51] : memref<3x384x128xbf16, #tpu.memory_space<vmem>>, vector<1x384x128xbf16>
    %45 = vector.shape_cast %44 : vector<1x384x128xbf16> to vector<384x128xbf16>
    %cst_52 = arith.constant dense<0.000000e+00> : vector<256x128xf32>
    %46 = tpu.matmul %43, %45, %cst_52 {dimension_numbers = #tpu.dot_dimension_numbers<[1], [0], [0], [1], [0, 0, 1, 1], [], []>} : vector<256x384xbf16>, vector<384x128xbf16>, vector<256x128xf32> -> vector<256x128xf32>
    %47 = arith.addf %37, %46 : vector<256x128xf32>
    %c2_53 = arith.constant 2 : index
    %c0_54 = arith.constant 0 : index
    %c0_55 = arith.constant 0 : index
    %48 = vector.load %arg7[%c2_53, %c0_54, %c0_55] : memref<18x24x128xf32, #tpu.memory_space<vmem>>, vector<16x16x128xf32>
    %c2_56 = arith.constant 2 : index
    %c1_57 = arith.constant 1 : index
    %c0_58 = arith.constant 0 : index
    %49 = vector.load %arg7[%c2_56, %c1_57, %c0_58] : memref<18x24x128xf32, #tpu.memory_space<vmem>>, vector<16x16x128xf32>
    %c2_59 = arith.constant 2 : index
    %c2_60 = arith.constant 2 : index
    %c0_61 = arith.constant 0 : index
    %50 = vector.load %arg7[%c2_59, %c2_60, %c0_61] : memref<18x24x128xf32, #tpu.memory_space<vmem>>, vector<16x16x128xf32>
    %51 = tpu.concatenate %48, %49, %50 in 2 : vector<16x16x128xf32>, vector<16x16x128xf32>, vector<16x16x128xf32> -> vector<16x16x384xf32>
    %52 = vector.shape_cast %51 : vector<16x16x384xf32> to vector<256x384xf32>
    %53 = arith.truncf %52 : vector<256x384xf32> to vector<256x384xbf16>
    %c2_62 = arith.constant 2 : index
    %c0_63 = arith.constant 0 : index
    %c0_64 = arith.constant 0 : index
    %54 = vector.load %arg4[%c2_62, %c0_63, %c0_64] : memref<3x384x128xbf16, #tpu.memory_space<vmem>>, vector<1x384x128xbf16>
    %55 = vector.shape_cast %54 : vector<1x384x128xbf16> to vector<384x128xbf16>
    %cst_65 = arith.constant dense<0.000000e+00> : vector<256x128xf32>
    %56 = tpu.matmul %53, %55, %cst_65 {dimension_numbers = #tpu.dot_dimension_numbers<[1], [0], [0], [1], [0, 0, 1, 1], [], []>} : vector<256x384xbf16>, vector<384x128xbf16>, vector<256x128xf32> -> vector<256x128xf32>
    %57 = arith.addf %47, %56 : vector<256x128xf32>
    %58 = arith.truncf %57 : vector<256x128xf32> to vector<256x128xbf16>
    %c0_66 = arith.constant 0 : index
    %c0_67 = arith.constant 0 : index
    %c0_68 = arith.constant 0 : index
    %59 = vector.load %arg5[%c0_66, %c0_67, %c0_68] : memref<1x256x128xbf16, #tpu.memory_space<vmem>>, vector<1x256x128xbf16>
    %60 = vector.shape_cast %59 : vector<1x256x128xbf16> to vector<256x128xbf16>
    %61 = vector.shape_cast %58 : vector<256x128xbf16> to vector<1x256x128xbf16>
    tpu.vector_store %arg5[%c0_66, %c0_67, %c0_68], %61 {strides = array<i32>} : memref<1x256x128xbf16, #tpu.memory_space<vmem>>, vector<1x256x128xbf16>,
    %cst_69 = arith.constant dense<0.000000e+00> : vector<128xf32>
    %62 = vector.multi_reduction <add>, %57, %cst_69 [0] : vector<256x128xf32> to vector<128xf32>
    %63 = vector.shape_cast %62 : vector<128xf32> to vector<1x128xf32>
    %64 = arith.mulf %57, %57 : vector<256x128xf32>
    %cst_70 = arith.constant dense<0.000000e+00> : vector<128xf32>
    %65 = vector.multi_reduction <add>, %64, %cst_70 [0] : vector<256x128xf32> to vector<128xf32>
    %66 = vector.shape_cast %65 : vector<128xf32> to vector<1x128xf32>
    %67 = tpu.concatenate %63, %66 in 0 : vector<1x128xf32>, vector<1x128xf32> -> vector<2x128xf32>
    %c0_71 = arith.constant 0 : index
    %c0_72 = arith.constant 0 : index
    %c0_73 = arith.constant 0 : index
    %68 = vector.load %arg6[%c0_71, %c0_72, %c0_73] : memref<1x2x128xf32, #tpu.memory_space<vmem>>, vector<1x2x128xf32>
    %69 = vector.shape_cast %68 : vector<1x2x128xf32> to vector<2x128xf32>
    %70 = vector.shape_cast %67 : vector<2x128xf32> to vector<1x2x128xf32>
    tpu.vector_store %arg6[%c0_71, %c0_72, %c0_73], %70 {strides = array<i32>} : memref<1x2x128xf32, #tpu.memory_space<vmem>>, vector<1x2x128xf32>,
    return
  }
  func.func @transform_0(%arg0: i32) -> (i32, i32, i32, i32) {
    %c0_i32 = arith.constant 0 : i32
    %c0_i32_0 = arith.constant 0 : i32
    %c0_i32_1 = arith.constant 0 : i32
    %c0_i32_2 = arith.constant 0 : i32
    return %arg0, %c0_i32, %c0_i32_0, %c0_i32_1 : i32, i32, i32, i32
  }
  func.func @transform_1(%arg0: i32) -> (i32, i32, i32) {
    %c0_i32 = arith.constant 0 : i32
    %c0_i32_0 = arith.constant 0 : i32
    %c0_i32_1 = arith.constant 0 : i32
    %c0_i32_2 = arith.constant 0 : i32
    return %c0_i32, %c0_i32_0, %c0_i32_1 : i32, i32, i32
  }
  func.func @transform_2(%arg0: i32) -> (i32, i32, i32) {
    %c0_i32 = arith.constant 0 : i32
    %c0_i32_0 = arith.constant 0 : i32
    %c0_i32_1 = arith.constant 0 : i32
    %c0_i32_2 = arith.constant 0 : i32
    return %c0_i32, %c0_i32_0, %c0_i32_1 : i32, i32, i32
  }
  func.func @transform_3(%arg0: i32) -> (i32, i32, i32) {
    %c0_i32 = arith.constant 0 : i32
    %c0_i32_0 = arith.constant 0 : i32
    %c0_i32_1 = arith.constant 0 : i32
    %c0_i32_2 = arith.constant 0 : i32
    return %c0_i32, %c0_i32_0, %c0_i32_1 : i32, i32, i32
  }
  func.func @transform_4(%arg0: i32) -> (i32, i32, i32) {
    %c0_i32 = arith.constant 0 : i32
    %c0_i32_0 = arith.constant 0 : i32
    %c0_i32_1 = arith.constant 0 : i32
    return %arg0, %c0_i32, %c0_i32_0 : i32, i32, i32
  }
  func.func @transform_5(%arg0: i32) -> (i32, i32, i32) {
    %c0_i32 = arith.constant 0 : i32
    %c0_i32_0 = arith.constant 0 : i32
    %c0_i32_1 = arith.constant 0 : i32
    return %arg0, %c0_i32, %c0_i32_0 : i32, i32, i32
  }
}

module attributes {stable_mosaic.version = 11 : i64} {
  func.func @bn_act_conv1x1_stats_kernel(%arg0: i32, %arg1: memref<256x128xbf16, #tpu.memory_space<vmem>>, %arg2: memref<1x128xf32, #tpu.memory_space<vmem>>, %arg3: memref<1x128xf32, #tpu.memory_space<vmem>>, %arg4: memref<128x128xbf16, #tpu.memory_space<vmem>>, %arg5: memref<256x128xbf16, #tpu.memory_space<vmem>>, %arg6: memref<1x2x128xf32, #tpu.memory_space<vmem>>) attributes {dimension_semantics = [#tpu.dimension_semantics<parallel>], iteration_bounds = array<i64: 2>, scalar_prefetch = 0 : i64, scratch_operands = 0 : i64, tpu.core_type = #tpu.core_type<tc>, window_params = [{transform_indices = @transform_0, window_bounds = array<i64: 256, 128>}, {pipeline_mode = #tpu.pipeline_mode<synchronous>, transform_indices = @transform_1, window_bounds = array<i64: 1, 128>}, {pipeline_mode = #tpu.pipeline_mode<synchronous>, transform_indices = @transform_2, window_bounds = array<i64: 1, 128>}, {pipeline_mode = #tpu.pipeline_mode<synchronous>, transform_indices = @transform_3, window_bounds = array<i64: 128, 128>}, {transform_indices = @transform_4, window_bounds = array<i64: 256, 128>}, {transform_indices = @transform_5, window_bounds = array<i64: 1, 2, 128>}]} {
    %c0 = arith.constant 0 : index
    %c0_0 = arith.constant 0 : index
    %0 = vector.load %arg1[%c0, %c0_0] : memref<256x128xbf16, #tpu.memory_space<vmem>>, vector<256x128xbf16>
    %1 = arith.extf %0 : vector<256x128xbf16> to vector<256x128xf32>
    %c0_1 = arith.constant 0 : index
    %c0_2 = arith.constant 0 : index
    %2 = vector.load %arg2[%c0_1, %c0_2] : memref<1x128xf32, #tpu.memory_space<vmem>>, vector<1x128xf32>
    %3 = vector.broadcast %2 : vector<1x128xf32> to vector<256x128xf32>
    %4 = arith.mulf %1, %3 : vector<256x128xf32>
    %c0_3 = arith.constant 0 : index
    %c0_4 = arith.constant 0 : index
    %5 = vector.load %arg3[%c0_3, %c0_4] : memref<1x128xf32, #tpu.memory_space<vmem>>, vector<1x128xf32>
    %6 = vector.broadcast %5 : vector<1x128xf32> to vector<256x128xf32>
    %7 = arith.addf %4, %6 : vector<256x128xf32>
    %cst = arith.constant 0.000000e+00 : f32
    %8 = vector.broadcast %cst : f32 to vector<256x128xf32>
    %9 = arith.cmpf ogt, %7, %8 : vector<256x128xf32>
    %cst_5 = arith.constant 0.00999999977 : f32
    %10 = vector.broadcast %cst_5 : f32 to vector<256x128xf32>
    %11 = arith.mulf %10, %7 : vector<256x128xf32>
    %12 = arith.select %9, %7, %11 : vector<256x128xi1>, vector<256x128xf32>
    %13 = arith.truncf %12 : vector<256x128xf32> to vector<256x128xbf16>
    %c0_6 = arith.constant 0 : index
    %c0_7 = arith.constant 0 : index
    %14 = vector.load %arg4[%c0_6, %c0_7] : memref<128x128xbf16, #tpu.memory_space<vmem>>, vector<128x128xbf16>
    %cst_8 = arith.constant dense<0.000000e+00> : vector<256x128xf32>
    %15 = tpu.matmul %13, %14, %cst_8 {dimension_numbers = #tpu.dot_dimension_numbers<[1], [0], [0], [1], [0, 0, 1, 1], [], []>} : vector<256x128xbf16>, vector<128x128xbf16>, vector<256x128xf32> -> vector<256x128xf32>
    %16 = arith.truncf %15 : vector<256x128xf32> to vector<256x128xbf16>
    %c0_9 = arith.constant 0 : index
    %c0_10 = arith.constant 0 : index
    %17 = vector.load %arg5[%c0_9, %c0_10] : memref<256x128xbf16, #tpu.memory_space<vmem>>, vector<256x128xbf16>
    tpu.vector_store %arg5[%c0_9, %c0_10], %16 {strides = array<i32>} : memref<256x128xbf16, #tpu.memory_space<vmem>>, vector<256x128xbf16>,
    %cst_11 = arith.constant dense<0.000000e+00> : vector<128xf32>
    %18 = vector.multi_reduction <add>, %15, %cst_11 [0] : vector<256x128xf32> to vector<128xf32>
    %19 = vector.shape_cast %18 : vector<128xf32> to vector<1x128xf32>
    %20 = arith.mulf %15, %15 : vector<256x128xf32>
    %cst_12 = arith.constant dense<0.000000e+00> : vector<128xf32>
    %21 = vector.multi_reduction <add>, %20, %cst_12 [0] : vector<256x128xf32> to vector<128xf32>
    %22 = vector.shape_cast %21 : vector<128xf32> to vector<1x128xf32>
    %23 = tpu.concatenate %19, %22 in 0 : vector<1x128xf32>, vector<1x128xf32> -> vector<2x128xf32>
    %c0_13 = arith.constant 0 : index
    %c0_14 = arith.constant 0 : index
    %c0_15 = arith.constant 0 : index
    %24 = vector.load %arg6[%c0_13, %c0_14, %c0_15] : memref<1x2x128xf32, #tpu.memory_space<vmem>>, vector<1x2x128xf32>
    %25 = vector.shape_cast %24 : vector<1x2x128xf32> to vector<2x128xf32>
    %26 = vector.shape_cast %23 : vector<2x128xf32> to vector<1x2x128xf32>
    tpu.vector_store %arg6[%c0_13, %c0_14, %c0_15], %26 {strides = array<i32>} : memref<1x2x128xf32, #tpu.memory_space<vmem>>, vector<1x2x128xf32>,
    return
  }
  func.func @transform_0(%arg0: i32) -> (i32, i32) {
    %c0_i32 = arith.constant 0 : i32
    %c0_i32_0 = arith.constant 0 : i32
    return %arg0, %c0_i32 : i32, i32
  }
  func.func @transform_1(%arg0: i32) -> (i32, i32) {
    %c0_i32 = arith.constant 0 : i32
    %c0_i32_0 = arith.constant 0 : i32
    %c0_i32_1 = arith.constant 0 : i32
    return %c0_i32, %c0_i32_0 : i32, i32
  }
  func.func @transform_2(%arg0: i32) -> (i32, i32) {
    %c0_i32 = arith.constant 0 : i32
    %c0_i32_0 = arith.constant 0 : i32
    %c0_i32_1 = arith.constant 0 : i32
    return %c0_i32, %c0_i32_0 : i32, i32
  }
  func.func @transform_3(%arg0: i32) -> (i32, i32) {
    %c0_i32 = arith.constant 0 : i32
    %c0_i32_0 = arith.constant 0 : i32
    %c0_i32_1 = arith.constant 0 : i32
    return %c0_i32, %c0_i32_0 : i32, i32
  }
  func.func @transform_4(%arg0: i32) -> (i32, i32) {
    %c0_i32 = arith.constant 0 : i32
    %c0_i32_0 = arith.constant 0 : i32
    return %arg0, %c0_i32 : i32, i32
  }
  func.func @transform_5(%arg0: i32) -> (i32, i32, i32) {
    %c0_i32 = arith.constant 0 : i32
    %c0_i32_0 = arith.constant 0 : i32
    %c0_i32_1 = arith.constant 0 : i32
    return %arg0, %c0_i32, %c0_i32_0 : i32, i32, i32
  }
}

module attributes {stable_mosaic.version = 11 : i64} {
  func.func @bn_add_act_kernel(%arg0: i32, %arg1: memref<256x128xbf16, #tpu.memory_space<vmem>>, %arg2: memref<256x128xf32, #tpu.memory_space<vmem>>, %arg3: memref<1x128xf32, #tpu.memory_space<vmem>>, %arg4: memref<1x128xf32, #tpu.memory_space<vmem>>, %arg5: memref<256x128xf32, #tpu.memory_space<vmem>>) attributes {dimension_semantics = [#tpu.dimension_semantics<parallel>], iteration_bounds = array<i64: 2>, scalar_prefetch = 0 : i64, scratch_operands = 0 : i64, tpu.core_type = #tpu.core_type<tc>, window_params = [{transform_indices = @transform_0, window_bounds = array<i64: 256, 128>}, {transform_indices = @transform_1, window_bounds = array<i64: 256, 128>}, {pipeline_mode = #tpu.pipeline_mode<synchronous>, transform_indices = @transform_2, window_bounds = array<i64: 1, 128>}, {pipeline_mode = #tpu.pipeline_mode<synchronous>, transform_indices = @transform_3, window_bounds = array<i64: 1, 128>}, {transform_indices = @transform_4, window_bounds = array<i64: 256, 128>}]} {
    %c0 = arith.constant 0 : index
    %c0_0 = arith.constant 0 : index
    %0 = vector.load %arg1[%c0, %c0_0] : memref<256x128xbf16, #tpu.memory_space<vmem>>, vector<256x128xbf16>
    %1 = arith.extf %0 : vector<256x128xbf16> to vector<256x128xf32>
    %c0_1 = arith.constant 0 : index
    %c0_2 = arith.constant 0 : index
    %2 = vector.load %arg3[%c0_1, %c0_2] : memref<1x128xf32, #tpu.memory_space<vmem>>, vector<1x128xf32>
    %3 = vector.broadcast %2 : vector<1x128xf32> to vector<256x128xf32>
    %4 = arith.mulf %1, %3 : vector<256x128xf32>
    %c0_3 = arith.constant 0 : index
    %c0_4 = arith.constant 0 : index
    %5 = vector.load %arg4[%c0_3, %c0_4] : memref<1x128xf32, #tpu.memory_space<vmem>>, vector<1x128xf32>
    %6 = vector.broadcast %5 : vector<1x128xf32> to vector<256x128xf32>
    %7 = arith.addf %4, %6 : vector<256x128xf32>
    %c0_5 = arith.constant 0 : index
    %c0_6 = arith.constant 0 : index
    %8 = vector.load %arg2[%c0_5, %c0_6] : memref<256x128xf32, #tpu.memory_space<vmem>>, vector<256x128xf32>
    %9 = arith.addf %7, %8 : vector<256x128xf32>
    %cst = arith.constant 0.000000e+00 : f32
    %10 = vector.broadcast %cst : f32 to vector<256x128xf32>
    %11 = arith.cmpf ogt, %9, %10 : vector<256x128xf32>
    %cst_7 = arith.constant 0.00999999977 : f32
    %12 = vector.broadcast %cst_7 : f32 to vector<256x128xf32>
    %13 = arith.mulf %12, %9 : vector<256x128xf32>
    %14 = arith.select %11, %9, %13 : vector<256x128xi1>, vector<256x128xf32>
    %c0_8 = arith.constant 0 : index
    %c0_9 = arith.constant 0 : index
    %15 = vector.load %arg5[%c0_8, %c0_9] : memref<256x128xf32, #tpu.memory_space<vmem>>, vector<256x128xf32>
    tpu.vector_store %arg5[%c0_8, %c0_9], %14 {strides = array<i32>} : memref<256x128xf32, #tpu.memory_space<vmem>>, vector<256x128xf32>,
    return
  }
  func.func @transform_0(%arg0: i32) -> (i32, i32) {
    %c0_i32 = arith.constant 0 : i32
    %c0_i32_0 = arith.constant 0 : i32
    return %arg0, %c0_i32 : i32, i32
  }
  func.func @transform_1(%arg0: i32) -> (i32, i32) {
    %c0_i32 = arith.constant 0 : i32
    %c0_i32_0 = arith.constant 0 : i32
    return %arg0, %c0_i32 : i32, i32
  }
  func.func @transform_2(%arg0: i32) -> (i32, i32) {
    %c0_i32 = arith.constant 0 : i32
    %c0_i32_0 = arith.constant 0 : i32
    %c0_i32_1 = arith.constant 0 : i32
    return %c0_i32, %c0_i32_0 : i32, i32
  }
  func.func @transform_3(%arg0: i32) -> (i32, i32) {
    %c0_i32 = arith.constant 0 : i32
    %c0_i32_0 = arith.constant 0 : i32
    %c0_i32_1 = arith.constant 0 : i32
    return %c0_i32, %c0_i32_0 : i32, i32
  }
  func.func @transform_4(%arg0: i32) -> (i32, i32) {
    %c0_i32 = arith.constant 0 : i32
    %c0_i32_0 = arith.constant 0 : i32
    return %arg0, %c0_i32 : i32, i32
  }
}

</mosaic_0001>

<llo_original>
// kernel: bottleneck_forward.4
$region0: #{bottleneck_forward.4}
  #allocation0 [shape = 'u32[]', space=smem, size = 0x4, offset = 0x4, fixed_abs, tag = 'smem constant byte address 0x4 - core index']
  #allocation1 [shape = 'u32[144,128]{1,0:T(1,128)}', space=vmem, size = 0x12000, scoped, tag = 'internal scratch']
  %s0 = inlined_call_operand.vmem [shape: f32[512,128], index: 0, kind: input, shape index: {}]
  %s1 = inlined_call_operand.vmem [shape: bf16[128,128], index: 1, kind: input, shape index: {}]
  %s2 = inlined_call_operand.vmem [shape: bf16[512,128], index: 2, kind: output, shape index: {0}]
  %s3 = inlined_call_operand.vmem [shape: f32[2,2,128], index: 3, kind: output, shape index: {1}]
  %4 = xla_tuple %s2, %s3
  %s5 = sld [smem:[#allocation0]]
  $region49: #{bottleneck_forward.4} parent=0
    _
  %s7 = ssub.s32 1, %s5
  %s8 = scalar_select 0, %s7, %s5
  loop: start=0, step=1, limit=4
  $region2: #{bottleneck_forward.4} parent=0 // loop_pre_header
    _
  $region3: #{bottleneck_forward.4} parent=0 // loop_header
    %s10 = sphi 0, %s14
    %p11 = scmp.ge.s32.totalorder %s10, 4
    %s20 = sphi 0, %s22
    %s23 = sphi 0, %s20
    %s24 = sphi 0, %s23
    %s40 = sphi 0, %s24
    %s44 = sphi 0, %s44
    %s46 = sphi 0, %s44
    %s47 = sphi 0, %s46
    %s61 = sphi 0, %s47
    %s67 = sphi 0, %s69
    %s70 = sphi 0, %s67
    %s71 = sphi 0, %s70
    %s87 = sphi 0, %s71
    %s93 = sphi 0, %s95
    %s96 = sphi 0, %s93
    %s97 = sphi 0, %s96
    %s113 = sphi 0, %s97
  $region4: #{bottleneck_forward.4} parent=0 // loop_header_branch
    %13 = sbr.rel (%p11) target = $region8
  $region5: #{bottleneck_forward.4} parent=0 // loop_body
    %s15 = ssub.s32 %s10, 1
    %s16 = ssub.s32 %s10, 2
    %s17 = sadd.s32 %s10, 1
    %s18 = ssub.s32 %s10, %s17
    %p19 = scmp.eq.s32.totalorder %s18, 0
    %s21 = sadd.s32 %s20, 1
    %s22 = scalar_select %p19, %s20, %s21
    %p25 = pneg %p19
    %p26 = scmp.eq.s32.totalorder %s10, 1
    %p27 = por %p25, %p26
    %p28 = scmp.ne.s32.totalorder %s20, %s23
    %p29 = scmp.eq.s32.totalorder %s10, 0
    %p30 = por %p28, %p29
    %p31 = scmp.ne.s32.totalorder %s20, %s23
    %p32 = scmp.eq.s32.totalorder %s15, 1
    %p33 = por %p31, %p32
    %p34 = scmp.ne.s32.totalorder %s23, %s24
    %p35 = scmp.eq.s32.totalorder %s15, 0
    %p36 = por %p34, %p35
    %p37 = scmp.ne.s32.totalorder %s23, %s24
    %p38 = scmp.eq.s32.totalorder %s16, 1
    %p39 = por %p37, %p38
    %p41 = scmp.ne.s32.totalorder %s24, %s40
    %p42 = scmp.eq.s32.totalorder %s16, 0
    %p43 = por %p41, %p42
    %s45 = sadd.s32 %s44, 1
    %p48 = scmp.eq.s32.totalorder %s10, 1
    %p49 = scmp.ne.s32.totalorder %s44, %s46
    %p50 = scmp.eq.s32.totalorder %s10, 0
    %p51 = por %p49, %p50
    %p52 = scmp.ne.s32.totalorder %s44, %s46
    %p53 = scmp.eq.s32.totalorder %s15, 1
    %p54 = por %p52, %p53
    %p55 = scmp.ne.s32.totalorder %s46, %s47
    %p56 = scmp.eq.s32.totalorder %s15, 0
    %p57 = por %p55, %p56
    %p58 = scmp.ne.s32.totalorder %s46, %s47
    %p59 = scmp.eq.s32.totalorder %s16, 1
    %p60 = por %p58, %p59
    %p62 = scmp.ne.s32.totalorder %s47, %s61
    %p63 = scmp.eq.s32.totalorder %s16, 0
    %p64 = por %p62, %p63
    %s65 = ssub.s32 %s10, %s17
    %p66 = scmp.eq.s32.totalorder %s65, 0
    %s68 = sadd.s32 %s67, 1
    %s69 = scalar_select %p66, %s67, %s68
    %p72 = pneg %p66
    %p73 = scmp.eq.s32.totalorder %s10, 1
    %p74 = por %p72, %p73
    %p75 = scmp.ne.s32.totalorder %s67, %s70
    %p76 = scmp.eq.s32.totalorder %s10, 0
    %p77 = por %p75, %p76
    %p78 = scmp.ne.s32.totalorder %s67, %s70
    %p79 = scmp.eq.s32.totalorder %s15, 1
    %p80 = por %p78, %p79
    %p81 = scmp.ne.s32.totalorder %s70, %s71
    %p82 = scmp.eq.s32.totalorder %s15, 0
    %p83 = por %p81, %p82
    %p84 = scmp.ne.s32.totalorder %s70, %s71
    %p85 = scmp.eq.s32.totalorder %s16, 1
    %p86 = por %p84, %p85
    %p88 = scmp.ne.s32.totalorder %s71, %s87
    %p89 = scmp.eq.s32.totalorder %s16, 0
    %p90 = por %p88, %p89
    %s91 = ssub.s32 %s10, %s17
    %p92 = scmp.eq.s32.totalorder %s91, 0
    %s94 = sadd.s32 %s93, 1
    %s95 = scalar_select %p92, %s93, %s94
    %p98 = pneg %p92
    %p99 = scmp.eq.s32.totalorder %s10, 1
    %p100 = por %p98, %p99
    %p101 = scmp.ne.s32.totalorder %s93, %s96
    %p102 = scmp.eq.s32.totalorder %s10, 0
    %p103 = por %p101, %p102
    %p104 = scmp.ne.s32.totalorder %s93, %s96
    %p105 = scmp.eq.s32.totalorder %s15, 1
    %p106 = por %p104, %p105
    %p107 = scmp.ne.s32.totalorder %s96, %s97
    %p108 = scmp.eq.s32.totalorder %s15, 0
    %p109 = por %p107, %p108
    %p110 = scmp.ne.s32.totalorder %s96, %s97
    %p111 = scmp.eq.s32.totalorder %s16, 1
    %p112 = por %p110, %p111
    %p114 = scmp.ne.s32.totalorder %s97, %s113
    %p115 = scmp.eq.s32.totalorder %s16, 0
    %p116 = por %p114, %p115
    %p117 = scmp.le.s32.totalorder 1, %s10
    %p118 = scmp.lt.s32.totalorder %s10, 3
    %p119 = pnand %p117, %p118
    %p120 = pneg %p119
    // Predicated region
    $region9: #{bottleneck_forward.4} parent=5 // pred_check
      _
    $region10: #{bottleneck_forward.4} parent=5 // pred_check_branch
      %122 = sbr.rel (%p119) target = $region12
    $region11: #{bottleneck_forward.4} parent=5 // pred_region
      %s123 = ssub.s32 %s10, 1
      // Predicated region
      $region13: #{bottleneck_forward.4} parent=11 // pred_check
        %p124 = pneg %p57
      $region14: #{bottleneck_forward.4} parent=11 // pred_check_branch
        %126 = sbr.rel (%p124) target = $region16
      $region15: #{bottleneck_forward.4} parent=11 // pred_region
        _
      $region16: #{bottleneck_forward.4} parent=11 // pred_fallthru
        _
    $region12: #{bottleneck_forward.4} parent=5 // pred_fallthru
      _
    %p127 = scmp.lt.s32.totalorder %s10, 2
    // Predicated region
    $region17: #{bottleneck_forward.4} parent=5 // pred_check
      %p128 = pneg %p127
    $region18: #{bottleneck_forward.4} parent=5 // pred_check_branch
      %130 = sbr.rel (%p128) target = $region20
    $region19: #{bottleneck_forward.4} parent=5 // pred_region
      // Predicated region
      $region21: #{bottleneck_forward.4} parent=19 // pred_check
        %p131 = pneg %p30
      $region22: #{bottleneck_forward.4} parent=19 // pred_check_branch
        %133 = sbr.rel (%p131) target = $region24
      $region23: #{bottleneck_forward.4} parent=19 // pred_region
        %s134 = smul.u32 32, %s10
        %p135 = scmp.lt.s32.totalorder %s134, 63
        %s136 = scalar_select %p135, %s134, 63
        %s137 = smul.addr %s136, 8
        %s138 = scalar_lea.vmem %s0, %s137
        %s139 = smul.u32 32, %s10
      $region24: #{bottleneck_forward.4} parent=19 // pred_fallthru
        _
    $region20: #{bottleneck_forward.4} parent=5 // pred_fallthru
      _
    %p140 = scmp.le.s32.totalorder 1, %s10
    %p141 = scmp.lt.s32.totalorder %s10, 3
    %p142 = pnand %p140, %p141
    %p143 = pneg %p142
    // Predicated region
    $region25: #{bottleneck_forward.4} parent=5 // pred_check
      _
    $region26: #{bottleneck_forward.4} parent=5 // pred_check_branch
      %145 = sbr.rel (%p142) target = $region28
    $region27: #{bottleneck_forward.4} parent=5 // pred_region
      %s146 = ssub.s32 %s10, 1
      %s147 = smul.u32 32, %s15
      %p148 = scmp.lt.s32.totalorder %s147, 63
      %s149 = scalar_select %p148, %s147, 63
      %s150 = smul.addr %s149, 8
      %s151 = scalar_lea.vmem %s0, %s150
      %p152 = pneg %p36
      %p153 = pneg %p33
      %p154 = pneg %p57
      %p155 = pneg %p54
      %p156 = pneg %p83
      %p157 = pneg %p80
      %s158 = smul.u32 32, %s15
      %p159 = scmp.lt.s32.totalorder %s158, 63
      %s160 = scalar_select %p159, %s158, 63
      %s161 = smul.addr %s160, 4
      %s162 = scalar_lea.vmem %s2, %s161
      %p163 = pneg %p109
      %p164 = pneg %p106
      %p165 = scmp.lt.s32.totalorder %s15, 1
      %s166 = scalar_select %p165, %s15, 1
      %s167 = smul.addr %s166, 2
      %s168 = scalar_lea.vmem %s3, %s167
      %s169 = smul.u32 32, %s15
      %p170 = scmp.lt.s32.totalorder %s169, 63
      %s171 = scalar_select %p170, %s169, 63
      %s172 = smul.addr %s171, 8
      %s173 = scalar_lea.vmem %s0, %s172
      %s174 = smul.u32 32, %s15
      %s175 = smul.u32 32, %s15
      %p176 = scmp.lt.s32.totalorder %s175, 63
      %s177 = scalar_select %p176, %s175, 63
      %s178 = smul.addr %s177, 4
      %s179 = scalar_lea.vmem %s2, %s178
      %s180 = smul.u32 32, %s15
      %p181 = scmp.lt.s32.totalorder %s15, 1
      %s182 = scalar_select %p181, %s15, 1
      %s183 = smul.addr %s182, 2
      %s184 = scalar_lea.vmem %s3, %s183
      %v186 = vld [vmem:[%s173] sm:$0xff]
      %v187 = vld [vmem:[%s173 + $0x8] sm:$0xff]
      %v188 = vld [vmem:[%s173 + $0x10] sm:$0xff]
      %v189 = vld [vmem:[%s173 + $0x18] sm:$0xff]
      %v190 = vld [vmem:[%s173 + $0x20] sm:$0xff]
      %v191 = vld [vmem:[%s173 + $0x28] sm:$0xff]
      %v192 = vld [vmem:[%s173 + $0x30] sm:$0xff]
      %v193 = vld [vmem:[%s173 + $0x38] sm:$0xff]
      %v194 = vld [vmem:[%s173 + $0x40] sm:$0xff]
      %v195 = vld [vmem:[%s173 + $0x48] sm:$0xff]
      %v196 = vld [vmem:[%s173 + $0x50] sm:$0xff]
      %v197 = vld [vmem:[%s173 + $0x58] sm:$0xff]
      %v198 = vld [vmem:[%s173 + $0x60] sm:$0xff]
      %v199 = vld [vmem:[%s173 + $0x68] sm:$0xff]
      %v200 = vld [vmem:[%s173 + $0x70] sm:$0xff]
      %v201 = vld [vmem:[%s173 + $0x78] sm:$0xff]
      %v202 = vld [vmem:[%s173 + $0x80] sm:$0xff]
      %v203 = vld [vmem:[%s173 + $0x88] sm:$0xff]
      %v204 = vld [vmem:[%s173 + $0x90] sm:$0xff]
      %v205 = vld [vmem:[%s173 + $0x98] sm:$0xff]
      %v206 = vld [vmem:[%s173 + $0xa0] sm:$0xff]
      %v207 = vld [vmem:[%s173 + $0xa8] sm:$0xff]
      %v208 = vld [vmem:[%s173 + $0xb0] sm:$0xff]
      %v209 = vld [vmem:[%s173 + $0xb8] sm:$0xff]
      %v210 = vld [vmem:[%s173 + $0xc0] sm:$0xff]
      %v211 = vld [vmem:[%s173 + $0xc8] sm:$0xff]
      %v212 = vld [vmem:[%s173 + $0xd0] sm:$0xff]
      %v213 = vld [vmem:[%s173 + $0xd8] sm:$0xff]
      %v214 = vld [vmem:[%s173 + $0xe0] sm:$0xff]
      %v215 = vld [vmem:[%s173 + $0xe8] sm:$0xff]
      %v216 = vld [vmem:[%s173 + $0xf0] sm:$0xff]
      %v217 = vld [vmem:[%s173 + $0xf8] sm:$0xff]
      %v218 = vpack.c.bf16 %v187, %v186
      %v219 = vpack.c.bf16 %v189, %v188
      %v220 = vpack.c.bf16 %v191, %v190
      %v221 = vpack.c.bf16 %v193, %v192
      %v222 = vpack.c.bf16 %v195, %v194
      %v223 = vpack.c.bf16 %v197, %v196
      %v224 = vpack.c.bf16 %v199, %v198
      %v225 = vpack.c.bf16 %v201, %v200
      %v226 = vpack.c.bf16 %v203, %v202
      %v227 = vpack.c.bf16 %v205, %v204
      %v228 = vpack.c.bf16 %v207, %v206
      %v229 = vpack.c.bf16 %v209, %v208
      %v230 = vpack.c.bf16 %v211, %v210
      %v231 = vpack.c.bf16 %v213, %v212
      %v232 = vpack.c.bf16 %v215, %v214
      %v233 = vpack.c.bf16 %v217, %v216
      %v234 = vld [vmem:[%s1] sm:$0xf]
      %v235 = vld [vmem:[%s1 + $0x4] sm:$0xf]
      %v236 = vld [vmem:[%s1 + $0x8] sm:$0xf]
      %v237 = vld [vmem:[%s1 + $0xc] sm:$0xf]
      %v238 = vld [vmem:[%s1 + $0x10] sm:$0xf]
      %v239 = vld [vmem:[%s1 + $0x14] sm:$0xf]
      %v240 = vld [vmem:[%s1 + $0x18] sm:$0xf]
      %v241 = vld [vmem:[%s1 + $0x1c] sm:$0xf]
      %v242 = vld [vmem:[%s1 + $0x20] sm:$0xf]
      %v243 = vld [vmem:[%s1 + $0x24] sm:$0xf]
      %v244 = vld [vmem:[%s1 + $0x28] sm:$0xf]
      %v245 = vld [vmem:[%s1 + $0x2c] sm:$0xf]
      %v246 = vld [vmem:[%s1 + $0x30] sm:$0xf]
      %v247 = vld [vmem:[%s1 + $0x34] sm:$0xf]
      %v248 = vld [vmem:[%s1 + $0x38] sm:$0xf]
      %v249 = vld [vmem:[%s1 + $0x3c] sm:$0xf]
      %v266 = vunpack.c.l.b16 %v234
      %v267 = vunpack.c.l.b16 %v235
      %v268 = vunpack.c.l.b16 %v236
      %v269 = vunpack.c.l.b16 %v237
      %v270 = vunpack.c.l.b16 %v238
      %v271 = vunpack.c.l.b16 %v239
      %v272 = vunpack.c.l.b16 %v240
      %v273 = vunpack.c.l.b16 %v241
      %v274 = vunpack.c.l.b16 %v242
      %v275 = vunpack.c.l.b16 %v243
      %v276 = vunpack.c.l.b16 %v244
      %v277 = vunpack.c.l.b16 %v245
      %v278 = vunpack.c.l.b16 %v246
      %v279 = vunpack.c.l.b16 %v247
      %v280 = vunpack.c.l.b16 %v248
      %v281 = vunpack.c.l.b16 %v249
      %v282 = vpack.c.b16 %v267, %v266
      %v283 = vpack.c.b16 %v269, %v268
      %v284 = vpack.c.b16 %v271, %v270
      %v285 = vpack.c.b16 %v273, %v272
      %v286 = vpack.c.b16 %v275, %v274
      %v287 = vpack.c.b16 %v277, %v276
      %v288 = vpack.c.b16 %v279, %v278
      %v289 = vpack.c.b16 %v281, %v280
      %298 = vmatprep.subr.bf16.mxu0 0
      %299 = vmatpush1.bf16.msra.mxu0 %v289
      %300 = vmatprep.subr.bf16.mxu0 0
      %301 = vmatpush1.bf16.msra.mxu0 %v288
      %302 = vmatprep.subr.bf16.mxu0 0
      %303 = vmatpush1.bf16.msra.mxu0 %v287
      %304 = vmatprep.subr.bf16.mxu0 0
      %305 = vmatpush1.bf16.msra.mxu0 %v286
      %306 = vmatprep.subr.bf16.mxu0 0
      %307 = vmatpush1.bf16.msra.mxu0 %v285
      %308 = vmatprep.subr.bf16.mxu0 0
      %309 = vmatpush1.bf16.msra.mxu0 %v284
      %310 = vmatprep.subr.bf16.mxu0 0
      %311 = vmatpush1.bf16.msra.mxu0 %v283
      %312 = vmatprep.subr.bf16.mxu0 0
      %313 = vmatpush1.bf16.msra.mxu0 %v282
      %314 = vmatprep.subr.bf16.mxu0 0
      %315 = vmatpush2.bf16.msra.mxu0 0
      %316 = vmatprep.subr.bf16.mxu0 0
      %317 = vmatpush2.bf16.msra.mxu0 0
      %318 = vmatprep.subr.bf16.mxu0 0
      %319 = vmatpush2.bf16.msra.mxu0 0
      %320 = vmatprep.subr.bf16.mxu0 0
      %321 = vmatpush2.bf16.msra.mxu0 0
      %322 = vmatprep.subr.bf16.mxu0 0
      %323 = vmatpush2.bf16.msra.mxu0 0
      %324 = vmatprep.subr.bf16.mxu0 0
      %325 = vmatpush2.bf16.msra.mxu0 0
      %326 = vmatprep.subr.bf16.mxu0 0
      %327 = vmatpush2.bf16.msra.mxu0 0
      %328 = vmatprep.subr.bf16.mxu0 0
      %329 = vmatpush2.bf16.msra.mxu0 0
      %330 = vmatprep.mubr.bf16.mxu0 0
      %331 = vmatmul.mubr.bf16.gmra.mxu0 %v218
      %v332 = vpop.f32.mrf.mxu0
      %v333 = vadd.f32 0.0, %v332
      %v334 = vpop.f32.mrf.mxu0
      %v335 = vpop.f32.mrf.mxu0
      %v336 = vadd.f32 0.0, %v335
      %v337 = vpop.f32.mrf.mxu0
      %338 = vmatprep.mubr.bf16.mxu0 0
      %339 = vmatmul.mubr.bf16.gmra.mxu0 %v219
      %v340 = vpop.f32.mrf.mxu0
      %v341 = vadd.f32 0.0, %v340
      %v342 = vpop.f32.mrf.mxu0
      %v343 = vpop.f32.mrf.mxu0
      %v344 = vadd.f32 0.0, %v343
      %v345 = vpop.f32.mrf.mxu0
      %346 = vmatprep.mubr.bf16.mxu0 0
      %347 = vmatmul.mubr.bf16.gmra.mxu0 %v220
      %v348 = vpop.f32.mrf.mxu0
      %v349 = vadd.f32 0.0, %v348
      %v350 = vpop.f32.mrf.mxu0
      %v351 = vpop.f32.mrf.mxu0
      %v352 = vadd.f32 0.0, %v351
      %v353 = vpop.f32.mrf.mxu0
      %354 = vmatprep.mubr.bf16.mxu0 0
      %355 = vmatmul.mubr.bf16.gmra.mxu0 %v221
      %v356 = vpop.f32.mrf.mxu0
      %v357 = vadd.f32 0.0, %v356
      %v358 = vpop.f32.mrf.mxu0
      %v359 = vpop.f32.mrf.mxu0
      %v360 = vadd.f32 0.0, %v359
      %v361 = vpop.f32.mrf.mxu0
      %362 = vmatprep.mubr.bf16.mxu0 0
      %363 = vmatmul.mubr.bf16.gmra.mxu0 %v222
      %v364 = vpop.f32.mrf.mxu0
      %v365 = vadd.f32 0.0, %v364
      %v366 = vpop.f32.mrf.mxu0
      %v367 = vpop.f32.mrf.mxu0
      %v368 = vadd.f32 0.0, %v367
      %v369 = vpop.f32.mrf.mxu0
      %370 = vmatprep.mubr.bf16.mxu0 0
      %371 = vmatmul.mubr.bf16.gmra.mxu0 %v223
      %v372 = vpop.f32.mrf.mxu0
      %v373 = vadd.f32 0.0, %v372
      %v374 = vpop.f32.mrf.mxu0
      %v375 = vpop.f32.mrf.mxu0
      %v376 = vadd.f32 0.0, %v375
      %v377 = vpop.f32.mrf.mxu0
      %378 = vmatprep.mubr.bf16.mxu0 0
      %379 = vmatmul.mubr.bf16.gmra.mxu0 %v224
      %v380 = vpop.f32.mrf.mxu0
      %v381 = vadd.f32 0.0, %v380
      %v382 = vpop.f32.mrf.mxu0
      %v383 = vpop.f32.mrf.mxu0
      %v384 = vadd.f32 0.0, %v383
      %v385 = vpop.f32.mrf.mxu0
      %386 = vmatprep.mubr.bf16.mxu0 0
      %387 = vmatmul.mubr.bf16.gmra.mxu0 %v225
      %v388 = vpop.f32.mrf.mxu0
      %v389 = vadd.f32 0.0, %v388
      %v390 = vpop.f32.mrf.mxu0
      %v391 = vpop.f32.mrf.mxu0
      %v392 = vadd.f32 0.0, %v391
      %v393 = vpop.f32.mrf.mxu0
      %394 = vmatprep.mubr.bf16.mxu0 0
      %395 = vmatmul.mubr.bf16.gmra.mxu0 %v226
      %v396 = vpop.f32.mrf.mxu0
      %v397 = vadd.f32 0.0, %v396
      %v398 = vpop.f32.mrf.mxu0
      %v399 = vpop.f32.mrf.mxu0
      %v400 = vadd.f32 0.0, %v399
      %v401 = vpop.f32.mrf.mxu0
      %402 = vmatprep.mubr.bf16.mxu0 0
      %403 = vmatmul.mubr.bf16.gmra.mxu0 %v227
      %v404 = vpop.f32.mrf.mxu0
      %v405 = vadd.f32 0.0, %v404
      %v406 = vpop.f32.mrf.mxu0
      %v407 = vpop.f32.mrf.mxu0
      %v408 = vadd.f32 0.0, %v407
      %v409 = vpop.f32.mrf.mxu0
      %410 = vmatprep.mubr.bf16.mxu0 0
      %411 = vmatmul.mubr.bf16.gmra.mxu0 %v228
      %v412 = vpop.f32.mrf.mxu0
      %v413 = vadd.f32 0.0, %v412
      %v414 = vpop.f32.mrf.mxu0
      %v415 = vpop.f32.mrf.mxu0
      %v416 = vadd.f32 0.0, %v415
      %v417 = vpop.f32.mrf.mxu0
      %418 = vmatprep.mubr.bf16.mxu0 0
      %419 = vmatmul.mubr.bf16.gmra.mxu0 %v229
      %v420 = vpop.f32.mrf.mxu0
      %v421 = vadd.f32 0.0, %v420
      %v422 = vpop.f32.mrf.mxu0
      %v423 = vpop.f32.mrf.mxu0
      %v424 = vadd.f32 0.0, %v423
      %v425 = vpop.f32.mrf.mxu0
      %426 = vmatprep.mubr.bf16.mxu0 0
      %427 = vmatmul.mubr.bf16.gmra.mxu0 %v230
      %v428 = vpop.f32.mrf.mxu0
      %v429 = vadd.f32 0.0, %v428
      %v430 = vpop.f32.mrf.mxu0
      %v431 = vpop.f32.mrf.mxu0
      %v432 = vadd.f32 0.0, %v431
      %v433 = vpop.f32.mrf.mxu0
      %434 = vmatprep.mubr.bf16.mxu0 0
      %435 = vmatmul.mubr.bf16.gmra.mxu0 %v231
      %v436 = vpop.f32.mrf.mxu0
      %v437 = vadd.f32 0.0, %v436
      %v438 = vpop.f32.mrf.mxu0
      %v439 = vpop.f32.mrf.mxu0
      %v440 = vadd.f32 0.0, %v439
      %v441 = vpop.f32.mrf.mxu0
      %442 = vmatprep.mubr.bf16.mxu0 0
      %443 = vmatmul.mubr.bf16.gmra.mxu0 %v232
      %v444 = vpop.f32.mrf.mxu0
      %v445 = vadd.f32 0.0, %v444
      %v446 = vpop.f32.mrf.mxu0
      %v447 = vpop.f32.mrf.mxu0
      %v448 = vadd.f32 0.0, %v447
      %v449 = vpop.f32.mrf.mxu0
      %450 = vmatprep.mubr.bf16.mxu0 0
      %451 = vmatmul.mubr.bf16.gmra.mxu0 %v233
      %v452 = vpop.f32.mrf.mxu0
      %v453 = vadd.f32 0.0, %v452
      %v454 = vpop.f32.mrf.mxu0
      %v455 = vpop.f32.mrf.mxu0
      %v456 = vadd.f32 0.0, %v455
      %v457 = vpop.f32.mrf.mxu0
      %458 = vdwg.mxu0
      %v459 = vpack.c.bf16 %v336, %v333
      %v460 = vpack.c.bf16 %v344, %v341
      %v461 = vpack.c.bf16 %v352, %v349
      %v462 = vpack.c.bf16 %v360, %v357
      %v463 = vpack.c.bf16 %v368, %v365
      %v464 = vpack.c.bf16 %v376, %v373
      %v465 = vpack.c.bf16 %v384, %v381
      %v466 = vpack.c.bf16 %v392, %v389
      %v467 = vpack.c.bf16 %v400, %v397
      %v468 = vpack.c.bf16 %v408, %v405
      %v469 = vpack.c.bf16 %v416, %v413
      %v470 = vpack.c.bf16 %v424, %v421
      %v471 = vpack.c.bf16 %v432, %v429
      %v472 = vpack.c.bf16 %v440, %v437
      %v473 = vpack.c.bf16 %v448, %v445
      %v474 = vpack.c.bf16 %v456, %v453
      %v491 = vunpack.c.l.b16 %v459
      %v492 = vunpack.c.h.b16 %v459
      %v493 = vunpack.c.l.b16 %v460
      %v494 = vunpack.c.h.b16 %v460
      %v495 = vunpack.c.l.b16 %v461
      %v496 = vunpack.c.h.b16 %v461
      %v497 = vunpack.c.l.b16 %v462
      %v498 = vunpack.c.h.b16 %v462
      %v499 = vunpack.c.l.b16 %v463
      %v500 = vunpack.c.h.b16 %v463
      %v501 = vunpack.c.l.b16 %v464
      %v502 = vunpack.c.h.b16 %v464
      %v503 = vunpack.c.l.b16 %v465
      %v504 = vunpack.c.h.b16 %v465
      %v505 = vunpack.c.l.b16 %v466
      %v506 = vunpack.c.h.b16 %v466
      %v507 = vunpack.c.l.b16 %v467
      %v508 = vunpack.c.h.b16 %v467
      %v509 = vunpack.c.l.b16 %v468
      %v510 = vunpack.c.h.b16 %v468
      %v511 = vunpack.c.l.b16 %v469
      %v512 = vunpack.c.h.b16 %v469
      %v513 = vunpack.c.l.b16 %v470
      %v514 = vunpack.c.h.b16 %v470
      %v515 = vunpack.c.l.b16 %v471
      %v516 = vunpack.c.h.b16 %v471
      %v517 = vunpack.c.l.b16 %v472
      %v518 = vunpack.c.h.b16 %v472
      %v519 = vunpack.c.l.b16 %v473
      %v520 = vunpack.c.h.b16 %v473
      %v521 = vunpack.c.l.b16 %v474
      %v522 = vunpack.c.h.b16 %v474
      %v523 = vpack.c.b16 %v491, %v491
      %v524 = vpack.c.b16 %v492, %v492
      %v525 = vpack.c.b16 %v493, %v493
      %v526 = vpack.c.b16 %v494, %v494
      %v527 = vpack.c.b16 %v495, %v495
      %v528 = vpack.c.b16 %v496, %v496
      %v529 = vpack.c.b16 %v497, %v497
      %v530 = vpack.c.b16 %v498, %v498
      %v531 = vpack.c.b16 %v499, %v499
      %v532 = vpack.c.b16 %v500, %v500
      %v533 = vpack.c.b16 %v501, %v501
      %v534 = vpack.c.b16 %v502, %v502
      %v535 = vpack.c.b16 %v503, %v503
      %v536 = vpack.c.b16 %v504, %v504
      %v537 = vpack.c.b16 %v505, %v505
      %v538 = vpack.c.b16 %v506, %v506
      %v539 = vpack.c.b16 %v507, %v507
      %v540 = vpack.c.b16 %v508, %v508
      %v541 = vpack.c.b16 %v509, %v509
      %v542 = vpack.c.b16 %v510, %v510
      %v543 = vpack.c.b16 %v511, %v511
      %v544 = vpack.c.b16 %v512, %v512
      %v545 = vpack.c.b16 %v513, %v513
      %v546 = vpack.c.b16 %v514, %v514
      %v547 = vpack.c.b16 %v515, %v515
      %v548 = vpack.c.b16 %v516, %v516
      %v549 = vpack.c.b16 %v517, %v517
      %v550 = vpack.c.b16 %v518, %v518
      %v551 = vpack.c.b16 %v519, %v519
      %v552 = vpack.c.b16 %v520, %v520
      %v553 = vpack.c.b16 %v521, %v521
      %v554 = vpack.c.b16 %v522, %v522
      %587 = vst [vmem:[%s179] sm:$0xf] %v523
      %588 = vst [vmem:[%s179 + $0x4] sm:$0xf] %v524
      %589 = vst [vmem:[%s179 + $0x8] sm:$0xf] %v525
      %590 = vst [vmem:[%s179 + $0xc] sm:$0xf] %v526
      %591 = vst [vmem:[%s179 + $0x10] sm:$0xf] %v527
      %592 = vst [vmem:[%s179 + $0x14] sm:$0xf] %v528
      %593 = vst [vmem:[%s179 + $0x18] sm:$0xf] %v529
      %594 = vst [vmem:[%s179 + $0x1c] sm:$0xf] %v530
      %595 = vst [vmem:[%s179 + $0x20] sm:$0xf] %v531
      %596 = vst [vmem:[%s179 + $0x24] sm:$0xf] %v532
      %597 = vst [vmem:[%s179 + $0x28] sm:$0xf] %v533
      %598 = vst [vmem:[%s179 + $0x2c] sm:$0xf] %v534
      %599 = vst [vmem:[%s179 + $0x30] sm:$0xf] %v535
      %600 = vst [vmem:[%s179 + $0x34] sm:$0xf] %v536
      %601 = vst [vmem:[%s179 + $0x38] sm:$0xf] %v537
      %602 = vst [vmem:[%s179 + $0x3c] sm:$0xf] %v538
      %603 = vst [vmem:[%s179 + $0x40] sm:$0xf] %v539
      %604 = vst [vmem:[%s179 + $0x44] sm:$0xf] %v540
      %605 = vst [vmem:[%s179 + $0x48] sm:$0xf] %v541
      %606 = vst [vmem:[%s179 + $0x4c] sm:$0xf] %v542
      %607 = vst [vmem:[%s179 + $0x50] sm:$0xf] %v543
      %608 = vst [vmem:[%s179 + $0x54] sm:$0xf] %v544
      %609 = vst [vmem:[%s179 + $0x58] sm:$0xf] %v545
      %610 = vst [vmem:[%s179 + $0x5c] sm:$0xf] %v546
      %611 = vst [vmem:[%s179 + $0x60] sm:$0xf] %v547
      %612 = vst [vmem:[%s179 + $0x64] sm:$0xf] %v548
      %613 = vst [vmem:[%s179 + $0x68] sm:$0xf] %v549
      %614 = vst [vmem:[%s179 + $0x6c] sm:$0xf] %v550
      %615 = vst [vmem:[%s179 + $0x70] sm:$0xf] %v551
      %616 = vst [vmem:[%s179 + $0x74] sm:$0xf] %v552
      %617 = vst [vmem:[%s179 + $0x78] sm:$0xf] %v553
      %618 = vst [vmem:[%s179 + $0x7c] sm:$0xf] %v554
      %v619 = vadd.f32 %v333, %v336
      %v620 = vadd.f32 %v619, %v341
      %v621 = vadd.f32 %v620, %v344
      %v622 = vadd.f32 %v621, %v349
      %v623 = vadd.f32 %v622, %v352
      %v624 = vadd.f32 %v623, %v357
      %v625 = vadd.f32 %v624, %v360
      %v626 = vadd.f32 %v625, %v365
      %v627 = vadd.f32 %v626, %v368
      %v628 = vadd.f32 %v627, %v373
      %v629 = vadd.f32 %v628, %v376
      %v630 = vadd.f32 %v629, %v381
      %v631 = vadd.f32 %v630, %v384
      %v632 = vadd.f32 %v631, %v389
      %v633 = vadd.f32 %v632, %v392
      %v634 = vadd.f32 %v633, %v397
      %v635 = vadd.f32 %v634, %v400
      %v636 = vadd.f32 %v635, %v405
      %v637 = vadd.f32 %v636, %v408
      %v638 = vadd.f32 %v637, %v413
      %v639 = vadd.f32 %v638, %v416
      %v640 = vadd.f32 %v639, %v421
      %v641 = vadd.f32 %v640, %v424
      %v642 = vadd.f32 %v641, %v429
      %v643 = vadd.f32 %v642, %v432
      %v644 = vadd.f32 %v643, %v437
      %v645 = vadd.f32 %v644, %v440
      %v646 = vadd.f32 %v645, %v445
      %v647 = vadd.f32 %v646, %v448
      %v648 = vadd.f32 %v647, %v453
      %v649 = vadd.f32 %v648, %v456
      %v650 = vrot.slane %v649, 4
      %v651 = vadd.f32 %v649, %v650
      %v652 = vrot.slane %v651, 2
      %v653 = vadd.f32 %v651, %v652
      %v654 = vrot.slane %v653, 1
      %v655 = vadd.f32 %v653, %v654
      %v656 = vmul.f32 %v333, %v333
      %v657 = vmul.f32 %v336, %v336
      %v658 = vmul.f32 %v341, %v341
      %v659 = vmul.f32 %v344, %v344
      %v660 = vmul.f32 %v349, %v349
      %v661 = vmul.f32 %v352, %v352
      %v662 = vmul.f32 %v357, %v357
      %v663 = vmul.f32 %v360, %v360
      %v664 = vmul.f32 %v365, %v365
      %v665 = vmul.f32 %v368, %v368
      %v666 = vmul.f32 %v373, %v373
      %v667 = vmul.f32 %v376, %v376
      %v668 = vmul.f32 %v381, %v381
      %v669 = vmul.f32 %v384, %v384
      %v670 = vmul.f32 %v389, %v389
      %v671 = vmul.f32 %v392, %v392
      %v672 = vmul.f32 %v397, %v397
      %v673 = vmul.f32 %v400, %v400
      %v674 = vmul.f32 %v405, %v405
      %v675 = vmul.f32 %v408, %v408
      %v676 = vmul.f32 %v413, %v413
      %v677 = vmul.f32 %v416, %v416
      %v678 = vmul.f32 %v421, %v421
      %v679 = vmul.f32 %v424, %v424
      %v680 = vmul.f32 %v429, %v429
      %v681 = vmul.f32 %v432, %v432
      %v682 = vmul.f32 %v437, %v437
      %v683 = vmul.f32 %v440, %v440
      %v684 = vmul.f32 %v445, %v445
      %v685 = vmul.f32 %v448, %v448
      %v686 = vmul.f32 %v453, %v453
      %v687 = vmul.f32 %v456, %v456
      %v688 = vadd.f32 %v656, %v657
      %v689 = vadd.f32 %v688, %v658
      %v690 = vadd.f32 %v689, %v659
      %v691 = vadd.f32 %v690, %v660
      %v692 = vadd.f32 %v691, %v661
      %v693 = vadd.f32 %v692, %v662
      %v694 = vadd.f32 %v693, %v663
      %v695 = vadd.f32 %v694, %v664
      %v696 = vadd.f32 %v695, %v665
      %v697 = vadd.f32 %v696, %v666
      %v698 = vadd.f32 %v697, %v667
      %v699 = vadd.f32 %v698, %v668
      %v700 = vadd.f32 %v699, %v669
      %v701 = vadd.f32 %v700, %v670
      %v702 = vadd.f32 %v701, %v671
      %v703 = vadd.f32 %v702, %v672
      %v704 = vadd.f32 %v703, %v673
      %v705 = vadd.f32 %v704, %v674
      %v706 = vadd.f32 %v705, %v675
      %v707 = vadd.f32 %v706, %v676
      %v708 = vadd.f32 %v707, %v677
      %v709 = vadd.f32 %v708, %v678
      %v710 = vadd.f32 %v709, %v679
      %v711 = vadd.f32 %v710, %v680
      %v712 = vadd.f32 %v711, %v681
      %v713 = vadd.f32 %v712, %v682
      %v714 = vadd.f32 %v713, %v683
      %v715 = vadd.f32 %v714, %v684
      %v716 = vadd.f32 %v715, %v685
      %v717 = vadd.f32 %v716, %v686
      %v718 = vadd.f32 %v717, %v687
      %v719 = vrot.slane %v718, 4
      %v720 = vadd.f32 %v718, %v719
      %v721 = vrot.slane %v720, 2
      %v722 = vadd.f32 %v720, %v721
      %v723 = vrot.slane %v722, 1
      %v724 = vadd.f32 %v722, %v723
      %vm725 = vcmask 1040384
      %v726 = vsel %vm725, %v655, %v724
      %727 = vst [vmem:[%s184] sm:$0x3] %v726
      %s728 = smul.u32 32, %s15
      %p729 = scmp.lt.s32.totalorder %s728, 63
      %s730 = scalar_select %p729, %s728, 63
      %s731 = smul.addr %s730, 4
      %s732 = scalar_lea.vmem %s2, %s731
      %p733 = scmp.lt.s32.totalorder %s15, 1
      %s734 = scalar_select %p733, %s15, 1
      %s735 = smul.addr %s734, 2
      %s736 = scalar_lea.vmem %s3, %s735
      // Predicated region
      $region29: #{bottleneck_forward.4} parent=27 // pred_check
        %p737 = pneg %p80
      $region30: #{bottleneck_forward.4} parent=27 // pred_check_branch
        %739 = sbr.rel (%p737) target = $region32
      $region31: #{bottleneck_forward.4} parent=27 // pred_region
        %s740 = smul.u32 32, %s15
      $region32: #{bottleneck_forward.4} parent=27 // pred_fallthru
        _
      // Predicated region
      $region33: #{bottleneck_forward.4} parent=27 // pred_check
        %p741 = pneg %p106
      $region34: #{bottleneck_forward.4} parent=27 // pred_check_branch
        %743 = sbr.rel (%p741) target = $region36
      $region35: #{bottleneck_forward.4} parent=27 // pred_region
        _
      $region36: #{bottleneck_forward.4} parent=27 // pred_fallthru
        _
    $region28: #{bottleneck_forward.4} parent=5 // pred_fallthru
      _
    %p744 = scmp.le.s32.totalorder 2, %s10
    // Predicated region
    $region37: #{bottleneck_forward.4} parent=5 // pred_check
      %p745 = pneg %p744
    $region38: #{bottleneck_forward.4} parent=5 // pred_check_branch
      %747 = sbr.rel (%p745) target = $region40
    $region39: #{bottleneck_forward.4} parent=5 // pred_region
      %s748 = ssub.s32 %s10, 2
      // Predicated region
      $region41: #{bottleneck_forward.4} parent=39 // pred_check
        %p749 = pneg %p86
      $region42: #{bottleneck_forward.4} parent=39 // pred_check_branch
        %751 = sbr.rel (%p749) target = $region44
      $region43: #{bottleneck_forward.4} parent=39 // pred_region
        %s752 = smul.u32 32, %s16
        %p753 = scmp.lt.s32.totalorder %s752, 63
        %s754 = scalar_select %p753, %s752, 63
        %s755 = smul.addr %s754, 4
        %s756 = scalar_lea.vmem %s2, %s755
      $region44: #{bottleneck_forward.4} parent=39 // pred_fallthru
        _
      // Predicated region
      $region45: #{bottleneck_forward.4} parent=39 // pred_check
        %p757 = pneg %p112
      $region46: #{bottleneck_forward.4} parent=39 // pred_check_branch
        %759 = sbr.rel (%p757) target = $region48
      $region47: #{bottleneck_forward.4} parent=39 // pred_region
        %p760 = scmp.lt.s32.totalorder %s16, 1
        %s761 = scalar_select %p760, %s16, 1
        %s762 = smul.addr %s761, 2
        %s763 = scalar_lea.vmem %s3, %s762
      $region48: #{bottleneck_forward.4} parent=39 // pred_fallthru
        _
    $region40: #{bottleneck_forward.4} parent=5 // pred_fallthru
      _
  $region6: #{bottleneck_forward.4} parent=0 // loop_footer
    %s14 = sadd.s32 1, %s10
  $region7: #{bottleneck_forward.4} parent=0 // loop_footer_branch
    %9 = sbr.rel target = $region3
  $region8: #{bottleneck_forward.4} parent=0 // loop_exit
    _

// kernel: bottleneck_forward.7
$region0: #{bottleneck_forward.7}
  #allocation0 [shape = 'u32[]', space=smem, size = 0x4, offset = 0x4, fixed_abs, tag = 'smem constant byte address 0x4 - core index']
  #allocation1 [shape = 'u32[144,128]{1,0:T(1,128)}', space=vmem, size = 0x12000, scoped, tag = 'internal scratch']
  %s0 = inlined_call_operand.vmem [shape: bf16[512,128], index: 0, kind: input, shape index: {}]
  %s1 = inlined_call_operand.vmem [shape: f32[512,128], index: 1, kind: input, shape index: {}]
  %s2 = inlined_call_operand.vmem [shape: f32[1,128], index: 2, kind: input, shape index: {}]
  %s3 = inlined_call_operand.vmem [shape: f32[1,128], index: 3, kind: input, shape index: {}]
  %s4 = inlined_call_operand.vmem [shape: f32[512,128], index: 4, kind: output, shape index: {}]
  %s5 = sld [smem:[#allocation0]]
  $region49: #{bottleneck_forward.7} parent=0
    _
  %s7 = ssub.s32 1, %s5
  %s8 = scalar_select 0, %s7, %s5
  loop: start=0, step=1, limit=4
  $region2: #{bottleneck_forward.7} parent=0 // loop_pre_header
    _
  $region3: #{bottleneck_forward.7} parent=0 // loop_header
    %s10 = sphi 0, %s14
    %p11 = scmp.ge.s32.totalorder %s10, 4
    %s20 = sphi 0, %s22
    %s23 = sphi 0, %s20
    %s24 = sphi 0, %s23
    %s40 = sphi 0, %s24
    %s46 = sphi 0, %s48
    %s49 = sphi 0, %s46
    %s50 = sphi 0, %s49
    %s66 = sphi 0, %s50
    %s70 = sphi 0, %s70
    %s72 = sphi 0, %s70
    %s73 = sphi 0, %s72
    %s87 = sphi 0, %s73
    %s91 = sphi 0, %s91
    %s93 = sphi 0, %s91
    %s94 = sphi 0, %s93
    %s108 = sphi 0, %s94
    %s114 = sphi 0, %s116
    %s117 = sphi 0, %s114
    %s118 = sphi 0, %s117
    %s134 = sphi 0, %s118
  $region4: #{bottleneck_forward.7} parent=0 // loop_header_branch
    %13 = sbr.rel (%p11) target = $region8
  $region5: #{bottleneck_forward.7} parent=0 // loop_body
    %s15 = ssub.s32 %s10, 1
    %s16 = ssub.s32 %s10, 2
    %s17 = sadd.s32 %s10, 1
    %s18 = ssub.s32 %s10, %s17
    %p19 = scmp.eq.s32.totalorder %s18, 0
    %s21 = sadd.s32 %s20, 1
    %s22 = scalar_select %p19, %s20, %s21
    %p25 = pneg %p19
    %p26 = scmp.eq.s32.totalorder %s10, 1
    %p27 = por %p25, %p26
    %p28 = scmp.ne.s32.totalorder %s20, %s23
    %p29 = scmp.eq.s32.totalorder %s10, 0
    %p30 = por %p28, %p29
    %p31 = scmp.ne.s32.totalorder %s20, %s23
    %p32 = scmp.eq.s32.totalorder %s15, 1
    %p33 = por %p31, %p32
    %p34 = scmp.ne.s32.totalorder %s23, %s24
    %p35 = scmp.eq.s32.totalorder %s15, 0
    %p36 = por %p34, %p35
    %p37 = scmp.ne.s32.totalorder %s23, %s24
    %p38 = scmp.eq.s32.totalorder %s16, 1
    %p39 = por %p37, %p38
    %p41 = scmp.ne.s32.totalorder %s24, %s40
    %p42 = scmp.eq.s32.totalorder %s16, 0
    %p43 = por %p41, %p42
    %s44 = ssub.s32 %s10, %s17
    %p45 = scmp.eq.s32.totalorder %s44, 0
    %s47 = sadd.s32 %s46, 1
    %s48 = scalar_select %p45, %s46, %s47
    %p51 = pneg %p45
    %p52 = scmp.eq.s32.totalorder %s10, 1
    %p53 = por %p51, %p52
    %p54 = scmp.ne.s32.totalorder %s46, %s49
    %p55 = scmp.eq.s32.totalorder %s10, 0
    %p56 = por %p54, %p55
    %p57 = scmp.ne.s32.totalorder %s46, %s49
    %p58 = scmp.eq.s32.totalorder %s15, 1
    %p59 = por %p57, %p58
    %p60 = scmp.ne.s32.totalorder %s49, %s50
    %p61 = scmp.eq.s32.totalorder %s15, 0
    %p62 = por %p60, %p61
    %p63 = scmp.ne.s32.totalorder %s49, %s50
    %p64 = scmp.eq.s32.totalorder %s16, 1
    %p65 = por %p63, %p64
    %p67 = scmp.ne.s32.totalorder %s50, %s66
    %p68 = scmp.eq.s32.totalorder %s16, 0
    %p69 = por %p67, %p68
    %s71 = sadd.s32 %s70, 1
    %p74 = scmp.eq.s32.totalorder %s10, 1
    %p75 = scmp.ne.s32.totalorder %s70, %s72
    %p76 = scmp.eq.s32.totalorder %s10, 0
    %p77 = por %p75, %p76
    %p78 = scmp.ne.s32.totalorder %s70, %s72
    %p79 = scmp.eq.s32.totalorder %s15, 1
    %p80 = por %p78, %p79
    %p81 = scmp.ne.s32.totalorder %s72, %s73
    %p82 = scmp.eq.s32.totalorder %s15, 0
    %p83 = por %p81, %p82
    %p84 = scmp.ne.s32.totalorder %s72, %s73
    %p85 = scmp.eq.s32.totalorder %s16, 1
    %p86 = por %p84, %p85
    %p88 = scmp.ne.s32.totalorder %s73, %s87
    %p89 = scmp.eq.s32.totalorder %s16, 0
    %p90 = por %p88, %p89
    %s92 = sadd.s32 %s91, 1
    %p95 = scmp.eq.s32.totalorder %s10, 1
    %p96 = scmp.ne.s32.totalorder %s91, %s93
    %p97 = scmp.eq.s32.totalorder %s10, 0
    %p98 = por %p96, %p97
    %p99 = scmp.ne.s32.totalorder %s91, %s93
    %p100 = scmp.eq.s32.totalorder %s15, 1
    %p101 = por %p99, %p100
    %p102 = scmp.ne.s32.totalorder %s93, %s94
    %p103 = scmp.eq.s32.totalorder %s15, 0
    %p104 = por %p102, %p103
    %p105 = scmp.ne.s32.totalorder %s93, %s94
    %p106 = scmp.eq.s32.totalorder %s16, 1
    %p107 = por %p105, %p106
    %p109 = scmp.ne.s32.totalorder %s94, %s108
    %p110 = scmp.eq.s32.totalorder %s16, 0
    %p111 = por %p109, %p110
    %s112 = ssub.s32 %s10, %s17
    %p113 = scmp.eq.s32.totalorder %s112, 0
    %s115 = sadd.s32 %s114, 1
    %s116 = scalar_select %p113, %s114, %s115
    %p119 = pneg %p113
    %p120 = scmp.eq.s32.totalorder %s10, 1
    %p121 = por %p119, %p120
    %p122 = scmp.ne.s32.totalorder %s114, %s117
    %p123 = scmp.eq.s32.totalorder %s10, 0
    %p124 = por %p122, %p123
    %p125 = scmp.ne.s32.totalorder %s114, %s117
    %p126 = scmp.eq.s32.totalorder %s15, 1
    %p127 = por %p125, %p126
    %p128 = scmp.ne.s32.totalorder %s117, %s118
    %p129 = scmp.eq.s32.totalorder %s15, 0
    %p130 = por %p128, %p129
    %p131 = scmp.ne.s32.totalorder %s117, %s118
    %p132 = scmp.eq.s32.totalorder %s16, 1
    %p133 = por %p131, %p132
    %p135 = scmp.ne.s32.totalorder %s118, %s134
    %p136 = scmp.eq.s32.totalorder %s16, 0
    %p137 = por %p135, %p136
    %p138 = scmp.le.s32.totalorder 1, %s10
    %p139 = scmp.lt.s32.totalorder %s10, 3
    %p140 = pnand %p138, %p139
    %p141 = pneg %p140
    // Predicated region
    $region9: #{bottleneck_forward.7} parent=5 // pred_check
      _
    $region10: #{bottleneck_forward.7} parent=5 // pred_check_branch
      %143 = sbr.rel (%p140) target = $region12
    $region11: #{bottleneck_forward.7} parent=5 // pred_region
      %s144 = ssub.s32 %s10, 1
      // Predicated region
      $region13: #{bottleneck_forward.7} parent=11 // pred_check
        %p145 = pneg %p83
      $region14: #{bottleneck_forward.7} parent=11 // pred_check_branch
        %147 = sbr.rel (%p145) target = $region16
      $region15: #{bottleneck_forward.7} parent=11 // pred_region
        _
      $region16: #{bottleneck_forward.7} parent=11 // pred_fallthru
        _
      // Predicated region
      $region17: #{bottleneck_forward.7} parent=11 // pred_check
        %p148 = pneg %p104
      $region18: #{bottleneck_forward.7} parent=11 // pred_check_branch
        %150 = sbr.rel (%p148) target = $region20
      $region19: #{bottleneck_forward.7} parent=11 // pred_region
        _
      $region20: #{bottleneck_forward.7} parent=11 // pred_fallthru
        _
    $region12: #{bottleneck_forward.7} parent=5 // pred_fallthru
      _
    %p151 = scmp.lt.s32.totalorder %s10, 2
    // Predicated region
    $region21: #{bottleneck_forward.7} parent=5 // pred_check
      %p152 = pneg %p151
    $region22: #{bottleneck_forward.7} parent=5 // pred_check_branch
      %154 = sbr.rel (%p152) target = $region24
    $region23: #{bottleneck_forward.7} parent=5 // pred_region
      // Predicated region
      $region25: #{bottleneck_forward.7} parent=23 // pred_check
        %p155 = pneg %p30
      $region26: #{bottleneck_forward.7} parent=23 // pred_check_branch
        %157 = sbr.rel (%p155) target = $region28
      $region27: #{bottleneck_forward.7} parent=23 // pred_region
        %s158 = smul.u32 32, %s10
        %p159 = scmp.lt.s32.totalorder %s158, 63
        %s160 = scalar_select %p159, %s158, 63
        %s161 = smul.addr %s160, 4
        %s162 = scalar_lea.vmem %s0, %s161
        %s163 = smul.u32 32, %s10
      $region28: #{bottleneck_forward.7} parent=23 // pred_fallthru
        _
      // Predicated region
      $region29: #{bottleneck_forward.7} parent=23 // pred_check
        %p164 = pneg %p56
      $region30: #{bottleneck_forward.7} parent=23 // pred_check_branch
        %166 = sbr.rel (%p164) target = $region32
      $region31: #{bottleneck_forward.7} parent=23 // pred_region
        %s167 = smul.u32 32, %s10
        %p168 = scmp.lt.s32.totalorder %s167, 63
        %s169 = scalar_select %p168, %s167, 63
        %s170 = smul.addr %s169, 8
        %s171 = scalar_lea.vmem %s1, %s170
        %s172 = smul.u32 32, %s10
      $region32: #{bottleneck_forward.7} parent=23 // pred_fallthru
        _
    $region24: #{bottleneck_forward.7} parent=5 // pred_fallthru
      _
    %p173 = scmp.le.s32.totalorder 1, %s10
    %p174 = scmp.lt.s32.totalorder %s10, 3
    %p175 = pnand %p173, %p174
    %p176 = pneg %p175
    // Predicated region
    $region33: #{bottleneck_forward.7} parent=5 // pred_check
      _
    $region34: #{bottleneck_forward.7} parent=5 // pred_check_branch
      %178 = sbr.rel (%p175) target = $region36
    $region35: #{bottleneck_forward.7} parent=5 // pred_region
      %s179 = ssub.s32 %s10, 1
      %s180 = smul.u32 32, %s15
      %p181 = scmp.lt.s32.totalorder %s180, 63
      %s182 = scalar_select %p181, %s180, 63
      %s183 = smul.addr %s182, 4
      %s184 = scalar_lea.vmem %s0, %s183
      %p185 = pneg %p36
      %p186 = pneg %p33
      %s187 = smul.u32 32, %s15
      %p188 = scmp.lt.s32.totalorder %s187, 63
      %s189 = scalar_select %p188, %s187, 63
      %s190 = smul.addr %s189, 8
      %s191 = scalar_lea.vmem %s1, %s190
      %p192 = pneg %p62
      %p193 = pneg %p59
      %p194 = pneg %p83
      %p195 = pneg %p80
      %p196 = pneg %p104
      %p197 = pneg %p101
      %p198 = pneg %p130
      %p199 = pneg %p127
      %s200 = smul.u32 32, %s15
      %p201 = scmp.lt.s32.totalorder %s200, 63
      %s202 = scalar_select %p201, %s200, 63
      %s203 = smul.addr %s202, 8
      %s204 = scalar_lea.vmem %s4, %s203
      %s205 = smul.u32 32, %s15
      %p206 = scmp.lt.s32.totalorder %s205, 63
      %s207 = scalar_select %p206, %s205, 63
      %s208 = smul.addr %s207, 4
      %s209 = scalar_lea.vmem %s0, %s208
      %s210 = smul.u32 32, %s15
      %s211 = smul.u32 32, %s15
      %p212 = scmp.lt.s32.totalorder %s211, 63
      %s213 = scalar_select %p212, %s211, 63
      %s214 = smul.addr %s213, 8
      %s215 = scalar_lea.vmem %s1, %s214
      %s216 = smul.u32 32, %s15
      %s217 = smul.u32 32, %s15
      %p218 = scmp.lt.s32.totalorder %s217, 63
      %s219 = scalar_select %p218, %s217, 63
      %s220 = smul.addr %s219, 8
      %s221 = scalar_lea.vmem %s4, %s220
      %s222 = smul.u32 32, %s15
      %v223 = vld [vmem:[%s209] sm:$0xf]
      %v224 = vld [vmem:[%s209 + $0x4] sm:$0xf]
      %v225 = vld [vmem:[%s209 + $0x8] sm:$0xf]
      %v226 = vld [vmem:[%s209 + $0xc] sm:$0xf]
      %v227 = vld [vmem:[%s209 + $0x10] sm:$0xf]
      %v228 = vld [vmem:[%s209 + $0x14] sm:$0xf]
      %v229 = vld [vmem:[%s209 + $0x18] sm:$0xf]
      %v230 = vld [vmem:[%s209 + $0x1c] sm:$0xf]
      %v231 = vld [vmem:[%s209 + $0x20] sm:$0xf]
      %v232 = vld [vmem:[%s209 + $0x24] sm:$0xf]
      %v233 = vld [vmem:[%s209 + $0x28] sm:$0xf]
      %v234 = vld [vmem:[%s209 + $0x2c] sm:$0xf]
      %v235 = vld [vmem:[%s209 + $0x30] sm:$0xf]
      %v236 = vld [vmem:[%s209 + $0x34] sm:$0xf]
      %v237 = vld [vmem:[%s209 + $0x38] sm:$0xf]
      %v238 = vld [vmem:[%s209 + $0x3c] sm:$0xf]
      %v239 = vld [vmem:[%s209 + $0x40] sm:$0xf]
      %v240 = vld [vmem:[%s209 + $0x44] sm:$0xf]
      %v241 = vld [vmem:[%s209 + $0x48] sm:$0xf]
      %v242 = vld [vmem:[%s209 + $0x4c] sm:$0xf]
      %v243 = vld [vmem:[%s209 + $0x50] sm:$0xf]
      %v244 = vld [vmem:[%s209 + $0x54] sm:$0xf]
      %v245 = vld [vmem:[%s209 + $0x58] sm:$0xf]
      %v246 = vld [vmem:[%s209 + $0x5c] sm:$0xf]
      %v247 = vld [vmem:[%s209 + $0x60] sm:$0xf]
      %v248 = vld [vmem:[%s209 + $0x64] sm:$0xf]
      %v249 = vld [vmem:[%s209 + $0x68] sm:$0xf]
      %v250 = vld [vmem:[%s209 + $0x6c] sm:$0xf]
      %v251 = vld [vmem:[%s209 + $0x70] sm:$0xf]
      %v252 = vld [vmem:[%s209 + $0x74] sm:$0xf]
      %v253 = vld [vmem:[%s209 + $0x78] sm:$0xf]
      %v254 = vld [vmem:[%s209 + $0x7c] sm:$0xf]
      %v255 = vunpack.c.l.bf16 %v223
      %v256 = vunpack.c.l.bf16 %v224
      %v257 = vunpack.c.l.bf16 %v225
      %v258 = vunpack.c.l.bf16 %v226
      %v259 = vunpack.c.l.bf16 %v227
      %v260 = vunpack.c.l.bf16 %v228
      %v261 = vunpack.c.l.bf16 %v229
      %v262 = vunpack.c.l.bf16 %v230
      %v263 = vunpack.c.l.bf16 %v231
      %v264 = vunpack.c.l.bf16 %v232
      %v265 = vunpack.c.l.bf16 %v233
      %v266 = vunpack.c.l.bf16 %v234
      %v267 = vunpack.c.l.bf16 %v235
      %v268 = vunpack.c.l.bf16 %v236
      %v269 = vunpack.c.l.bf16 %v237
      %v270 = vunpack.c.l.bf16 %v238
      %v271 = vunpack.c.l.bf16 %v239
      %v272 = vunpack.c.l.bf16 %v240
      %v273 = vunpack.c.l.bf16 %v241
      %v274 = vunpack.c.l.bf16 %v242
      %v275 = vunpack.c.l.bf16 %v243
      %v276 = vunpack.c.l.bf16 %v244
      %v277 = vunpack.c.l.bf16 %v245
      %v278 = vunpack.c.l.bf16 %v246
      %v279 = vunpack.c.l.bf16 %v247
      %v280 = vunpack.c.l.bf16 %v248
      %v281 = vunpack.c.l.bf16 %v249
      %v282 = vunpack.c.l.bf16 %v250
      %v283 = vunpack.c.l.bf16 %v251
      %v284 = vunpack.c.l.bf16 %v252
      %v285 = vunpack.c.l.bf16 %v253
      %v286 = vunpack.c.l.bf16 %v254
      %v287 = vld [vmem:[%s2] sm:$0x1]
      %v289 = vlaneseq
      %v290 = vshrl.u32 %v289, 7
      %v291 = vsub.s32 0, %v290
      %v292 = vrot.slane %v287, %v291
      %v294 = vmul.f32 %v255, %v292
      %v295 = vmul.f32 %v256, %v292
      %v296 = vmul.f32 %v257, %v292
      %v297 = vmul.f32 %v258, %v292
      %v298 = vmul.f32 %v259, %v292
      %v299 = vmul.f32 %v260, %v292
      %v300 = vmul.f32 %v261, %v292
      %v301 = vmul.f32 %v262, %v292
      %v302 = vmul.f32 %v263, %v292
      %v303 = vmul.f32 %v264, %v292
      %v304 = vmul.f32 %v265, %v292
      %v305 = vmul.f32 %v266, %v292
      %v306 = vmul.f32 %v267, %v292
      %v307 = vmul.f32 %v268, %v292
      %v308 = vmul.f32 %v269, %v292
      %v309 = vmul.f32 %v270, %v292
      %v310 = vmul.f32 %v271, %v292
      %v311 = vmul.f32 %v272, %v292
      %v312 = vmul.f32 %v273, %v292
      %v313 = vmul.f32 %v274, %v292
      %v314 = vmul.f32 %v275, %v292
      %v315 = vmul.f32 %v276, %v292
      %v316 = vmul.f32 %v277, %v292
      %v317 = vmul.f32 %v278, %v292
      %v318 = vmul.f32 %v279, %v292
      %v319 = vmul.f32 %v280, %v292
      %v320 = vmul.f32 %v281, %v292
      %v321 = vmul.f32 %v282, %v292
      %v322 = vmul.f32 %v283, %v292
      %v323 = vmul.f32 %v284, %v292
      %v324 = vmul.f32 %v285, %v292
      %v325 = vmul.f32 %v286, %v292
      %v326 = vld [vmem:[%s3] sm:$0x1]
      %v328 = vlaneseq
      %v329 = vshrl.u32 %v328, 7
      %v330 = vsub.s32 0, %v329
      %v331 = vrot.slane %v326, %v330
      %v333 = vadd.f32 %v294, %v331
      %v334 = vadd.f32 %v295, %v331
      %v335 = vadd.f32 %v296, %v331
      %v336 = vadd.f32 %v297, %v331
      %v337 = vadd.f32 %v298, %v331
      %v338 = vadd.f32 %v299, %v331
      %v339 = vadd.f32 %v300, %v331
      %v340 = vadd.f32 %v301, %v331
      %v341 = vadd.f32 %v302, %v331
      %v342 = vadd.f32 %v303, %v331
      %v343 = vadd.f32 %v304, %v331
      %v344 = vadd.f32 %v305, %v331
      %v345 = vadd.f32 %v306, %v331
      %v346 = vadd.f32 %v307, %v331
      %v347 = vadd.f32 %v308, %v331
      %v348 = vadd.f32 %v309, %v331
      %v349 = vadd.f32 %v310, %v331
      %v350 = vadd.f32 %v311, %v331
      %v351 = vadd.f32 %v312, %v331
      %v352 = vadd.f32 %v313, %v331
      %v353 = vadd.f32 %v314, %v331
      %v354 = vadd.f32 %v315, %v331
      %v355 = vadd.f32 %v316, %v331
      %v356 = vadd.f32 %v317, %v331
      %v357 = vadd.f32 %v318, %v331
      %v358 = vadd.f32 %v319, %v331
      %v359 = vadd.f32 %v320, %v331
      %v360 = vadd.f32 %v321, %v331
      %v361 = vadd.f32 %v322, %v331
      %v362 = vadd.f32 %v323, %v331
      %v363 = vadd.f32 %v324, %v331
      %v364 = vadd.f32 %v325, %v331
      %v365 = vld [vmem:[%s215] sm:$0xff]
      %v366 = vld [vmem:[%s215 + $0x8] sm:$0xff]
      %v367 = vld [vmem:[%s215 + $0x10] sm:$0xff]
      %v368 = vld [vmem:[%s215 + $0x18] sm:$0xff]
      %v369 = vld [vmem:[%s215 + $0x20] sm:$0xff]
      %v370 = vld [vmem:[%s215 + $0x28] sm:$0xff]
      %v371 = vld [vmem:[%s215 + $0x30] sm:$0xff]
      %v372 = vld [vmem:[%s215 + $0x38] sm:$0xff]
      %v373 = vld [vmem:[%s215 + $0x40] sm:$0xff]
      %v374 = vld [vmem:[%s215 + $0x48] sm:$0xff]
      %v375 = vld [vmem:[%s215 + $0x50] sm:$0xff]
      %v376 = vld [vmem:[%s215 + $0x58] sm:$0xff]
      %v377 = vld [vmem:[%s215 + $0x60] sm:$0xff]
      %v378 = vld [vmem:[%s215 + $0x68] sm:$0xff]
      %v379 = vld [vmem:[%s215 + $0x70] sm:$0xff]
      %v380 = vld [vmem:[%s215 + $0x78] sm:$0xff]
      %v381 = vld [vmem:[%s215 + $0x80] sm:$0xff]
      %v382 = vld [vmem:[%s215 + $0x88] sm:$0xff]
      %v383 = vld [vmem:[%s215 + $0x90] sm:$0xff]
      %v384 = vld [vmem:[%s215 + $0x98] sm:$0xff]
      %v385 = vld [vmem:[%s215 + $0xa0] sm:$0xff]
      %v386 = vld [vmem:[%s215 + $0xa8] sm:$0xff]
      %v387 = vld [vmem:[%s215 + $0xb0] sm:$0xff]
      %v388 = vld [vmem:[%s215 + $0xb8] sm:$0xff]
      %v389 = vld [vmem:[%s215 + $0xc0] sm:$0xff]
      %v390 = vld [vmem:[%s215 + $0xc8] sm:$0xff]
      %v391 = vld [vmem:[%s215 + $0xd0] sm:$0xff]
      %v392 = vld [vmem:[%s215 + $0xd8] sm:$0xff]
      %v393 = vld [vmem:[%s215 + $0xe0] sm:$0xff]
      %v394 = vld [vmem:[%s215 + $0xe8] sm:$0xff]
      %v395 = vld [vmem:[%s215 + $0xf0] sm:$0xff]
      %v396 = vld [vmem:[%s215 + $0xf8] sm:$0xff]
      %v397 = vadd.f32 %v333, %v365
      %v398 = vadd.f32 %v334, %v366
      %v399 = vadd.f32 %v335, %v367
      %v400 = vadd.f32 %v336, %v368
      %v401 = vadd.f32 %v337, %v369
      %v402 = vadd.f32 %v338, %v370
      %v403 = vadd.f32 %v339, %v371
      %v404 = vadd.f32 %v340, %v372
      %v405 = vadd.f32 %v341, %v373
      %v406 = vadd.f32 %v342, %v374
      %v407 = vadd.f32 %v343, %v375
      %v408 = vadd.f32 %v344, %v376
      %v409 = vadd.f32 %v345, %v377
      %v410 = vadd.f32 %v346, %v378
      %v411 = vadd.f32 %v347, %v379
      %v412 = vadd.f32 %v348, %v380
      %v413 = vadd.f32 %v349, %v381
      %v414 = vadd.f32 %v350, %v382
      %v415 = vadd.f32 %v351, %v383
      %v416 = vadd.f32 %v352, %v384
      %v417 = vadd.f32 %v353, %v385
      %v418 = vadd.f32 %v354, %v386
      %v419 = vadd.f32 %v355, %v387
      %v420 = vadd.f32 %v356, %v388
      %v421 = vadd.f32 %v357, %v389
      %v422 = vadd.f32 %v358, %v390
      %v423 = vadd.f32 %v359, %v391
      %v424 = vadd.f32 %v360, %v392
      %v425 = vadd.f32 %v361, %v393
      %v426 = vadd.f32 %v362, %v394
      %v427 = vadd.f32 %v363, %v395
      %v428 = vadd.f32 %v364, %v396
      %vm429 = vcmp.gt.f32.partialorder %v397, 0.0
      %vm430 = vcmp.gt.f32.partialorder %v398, 0.0
      %vm431 = vcmp.gt.f32.partialorder %v399, 0.0
      %vm432 = vcmp.gt.f32.partialorder %v400, 0.0
      %vm433 = vcmp.gt.f32.partialorder %v401, 0.0
      %vm434 = vcmp.gt.f32.partialorder %v402, 0.0
      %vm435 = vcmp.gt.f32.partialorder %v403, 0.0
      %vm436 = vcmp.gt.f32.partialorder %v404, 0.0
      %vm437 = vcmp.gt.f32.partialorder %v405, 0.0
      %vm438 = vcmp.gt.f32.partialorder %v406, 0.0
      %vm439 = vcmp.gt.f32.partialorder %v407, 0.0
      %vm440 = vcmp.gt.f32.partialorder %v408, 0.0
      %vm441 = vcmp.gt.f32.partialorder %v409, 0.0
      %vm442 = vcmp.gt.f32.partialorder %v410, 0.0
      %vm443 = vcmp.gt.f32.partialorder %v411, 0.0
      %vm444 = vcmp.gt.f32.partialorder %v412, 0.0
      %vm445 = vcmp.gt.f32.partialorder %v413, 0.0
      %vm446 = vcmp.gt.f32.partialorder %v414, 0.0
      %vm447 = vcmp.gt.f32.partialorder %v415, 0.0
      %vm448 = vcmp.gt.f32.partialorder %v416, 0.0
      %vm449 = vcmp.gt.f32.partialorder %v417, 0.0
      %vm450 = vcmp.gt.f32.partialorder %v418, 0.0
      %vm451 = vcmp.gt.f32.partialorder %v419, 0.0
      %vm452 = vcmp.gt.f32.partialorder %v420, 0.0
      %vm453 = vcmp.gt.f32.partialorder %v421, 0.0
      %vm454 = vcmp.gt.f32.partialorder %v422, 0.0
      %vm455 = vcmp.gt.f32.partialorder %v423, 0.0
      %vm456 = vcmp.gt.f32.partialorder %v424, 0.0
      %vm457 = vcmp.gt.f32.partialorder %v425, 0.0
      %vm458 = vcmp.gt.f32.partialorder %v426, 0.0
      %vm459 = vcmp.gt.f32.partialorder %v427, 0.0
      %vm460 = vcmp.gt.f32.partialorder %v428, 0.0
      %v461 = vmul.f32 %v397, 0.01
      %v462 = vmul.f32 %v398, 0.01
      %v463 = vmul.f32 %v399, 0.01
      %v464 = vmul.f32 %v400, 0.01
      %v465 = vmul.f32 %v401, 0.01
      %v466 = vmul.f32 %v402, 0.01
      %v467 = vmul.f32 %v403, 0.01
      %v468 = vmul.f32 %v404, 0.01
      %v469 = vmul.f32 %v405, 0.01
      %v470 = vmul.f32 %v406, 0.01
      %v471 = vmul.f32 %v407, 0.01
      %v472 = vmul.f32 %v408, 0.01
      %v473 = vmul.f32 %v409, 0.01
      %v474 = vmul.f32 %v410, 0.01
      %v475 = vmul.f32 %v411, 0.01
      %v476 = vmul.f32 %v412, 0.01
      %v477 = vmul.f32 %v413, 0.01
      %v478 = vmul.f32 %v414, 0.01
      %v479 = vmul.f32 %v415, 0.01
      %v480 = vmul.f32 %v416, 0.01
      %v481 = vmul.f32 %v417, 0.01
      %v482 = vmul.f32 %v418, 0.01
      %v483 = vmul.f32 %v419, 0.01
      %v484 = vmul.f32 %v420, 0.01
      %v485 = vmul.f32 %v421, 0.01
      %v486 = vmul.f32 %v422, 0.01
      %v487 = vmul.f32 %v423, 0.01
      %v488 = vmul.f32 %v424, 0.01
      %v489 = vmul.f32 %v425, 0.01
      %v490 = vmul.f32 %v426, 0.01
      %v491 = vmul.f32 %v427, 0.01
      %v492 = vmul.f32 %v428, 0.01
      %v493 = vsel %vm429, %v397, %v461
      %v494 = vsel %vm430, %v398, %v462
      %v495 = vsel %vm431, %v399, %v463
      %v496 = vsel %vm432, %v400, %v464
      %v497 = vsel %vm433, %v401, %v465
      %v498 = vsel %vm434, %v402, %v466
      %v499 = vsel %vm435, %v403, %v467
      %v500 = vsel %vm436, %v404, %v468
      %v501 = vsel %vm437, %v405, %v469
      %v502 = vsel %vm438, %v406, %v470
      %v503 = vsel %vm439, %v407, %v471
      %v504 = vsel %vm440, %v408, %v472
      %v505 = vsel %vm441, %v409, %v473
      %v506 = vsel %vm442, %v410, %v474
      %v507 = vsel %vm443, %v411, %v475
      %v508 = vsel %vm444, %v412, %v476
      %v509 = vsel %vm445, %v413, %v477
      %v510 = vsel %vm446, %v414, %v478
      %v511 = vsel %vm447, %v415, %v479
      %v512 = vsel %vm448, %v416, %v480
      %v513 = vsel %vm449, %v417, %v481
      %v514 = vsel %vm450, %v418, %v482
      %v515 = vsel %vm451, %v419, %v483
      %v516 = vsel %vm452, %v420, %v484
      %v517 = vsel %vm453, %v421, %v485
      %v518 = vsel %vm454, %v422, %v486
      %v519 = vsel %vm455, %v423, %v487
      %v520 = vsel %vm456, %v424, %v488
      %v521 = vsel %vm457, %v425, %v489
      %v522 = vsel %vm458, %v426, %v490
      %v523 = vsel %vm459, %v427, %v491
      %v524 = vsel %vm460, %v428, %v492
      %525 = vst [vmem:[%s221] sm:$0xff] %v493
      %526 = vst [vmem:[%s221 + $0x8] sm:$0xff] %v494
      %527 = vst [vmem:[%s221 + $0x10] sm:$0xff] %v495
      %528 = vst [vmem:[%s221 + $0x18] sm:$0xff] %v496
      %529 = vst [vmem:[%s221 + $0x20] sm:$0xff] %v497
      %530 = vst [vmem:[%s221 + $0x28] sm:$0xff] %v498
      %531 = vst [vmem:[%s221 + $0x30] sm:$0xff] %v499
      %532 = vst [vmem:[%s221 + $0x38] sm:$0xff] %v500
      %533 = vst [vmem:[%s221 + $0x40] sm:$0xff] %v501
      %534 = vst [vmem:[%s221 + $0x48] sm:$0xff] %v502
      %535 = vst [vmem:[%s221 + $0x50] sm:$0xff] %v503
      %536 = vst [vmem:[%s221 + $0x58] sm:$0xff] %v504
      %537 = vst [vmem:[%s221 + $0x60] sm:$0xff] %v505
      %538 = vst [vmem:[%s221 + $0x68] sm:$0xff] %v506
      %539 = vst [vmem:[%s221 + $0x70] sm:$0xff] %v507
      %540 = vst [vmem:[%s221 + $0x78] sm:$0xff] %v508
      %541 = vst [vmem:[%s221 + $0x80] sm:$0xff] %v509
      %542 = vst [vmem:[%s221 + $0x88] sm:$0xff] %v510
      %543 = vst [vmem:[%s221 + $0x90] sm:$0xff] %v511
      %544 = vst [vmem:[%s221 + $0x98] sm:$0xff] %v512
      %545 = vst [vmem:[%s221 + $0xa0] sm:$0xff] %v513
      %546 = vst [vmem:[%s221 + $0xa8] sm:$0xff] %v514
      %547 = vst [vmem:[%s221 + $0xb0] sm:$0xff] %v515
      %548 = vst [vmem:[%s221 + $0xb8] sm:$0xff] %v516
      %549 = vst [vmem:[%s221 + $0xc0] sm:$0xff] %v517
      %550 = vst [vmem:[%s221 + $0xc8] sm:$0xff] %v518
      %551 = vst [vmem:[%s221 + $0xd0] sm:$0xff] %v519
      %552 = vst [vmem:[%s221 + $0xd8] sm:$0xff] %v520
      %553 = vst [vmem:[%s221 + $0xe0] sm:$0xff] %v521
      %554 = vst [vmem:[%s221 + $0xe8] sm:$0xff] %v522
      %555 = vst [vmem:[%s221 + $0xf0] sm:$0xff] %v523
      %556 = vst [vmem:[%s221 + $0xf8] sm:$0xff] %v524
      %s557 = smul.u32 32, %s15
      %p558 = scmp.lt.s32.totalorder %s557, 63
      %s559 = scalar_select %p558, %s557, 63
      %s560 = smul.addr %s559, 8
      %s561 = scalar_lea.vmem %s4, %s560
      // Predicated region
      $region37: #{bottleneck_forward.7} parent=35 // pred_check
        %p562 = pneg %p127
      $region38: #{bottleneck_forward.7} parent=35 // pred_check_branch
        %564 = sbr.rel (%p562) target = $region40
      $region39: #{bottleneck_forward.7} parent=35 // pred_region
        %s565 = smul.u32 32, %s15
      $region40: #{bottleneck_forward.7} parent=35 // pred_fallthru
        _
    $region36: #{bottleneck_forward.7} parent=5 // pred_fallthru
      _
    %p566 = scmp.le.s32.totalorder 2, %s10
    // Predicated region
    $region41: #{bottleneck_forward.7} parent=5 // pred_check
      %p567 = pneg %p566
    $region42: #{bottleneck_forward.7} parent=5 // pred_check_branch
      %569 = sbr.rel (%p567) target = $region44
    $region43: #{bottleneck_forward.7} parent=5 // pred_region
      %s570 = ssub.s32 %s10, 2
      // Predicated region
      $region45: #{bottleneck_forward.7} parent=43 // pred_check
        %p571 = pneg %p133
      $region46: #{bottleneck_forward.7} parent=43 // pred_check_branch
        %573 = sbr.rel (%p571) target = $region48
      $region47: #{bottleneck_forward.7} parent=43 // pred_region
        %s574 = smul.u32 32, %s16
        %p575 = scmp.lt.s32.totalorder %s574, 63
        %s576 = scalar_select %p575, %s574, 63
        %s577 = smul.addr %s576, 8
        %s578 = scalar_lea.vmem %s4, %s577
      $region48: #{bottleneck_forward.7} parent=43 // pred_fallthru
        _
    $region44: #{bottleneck_forward.7} parent=5 // pred_fallthru
      _
  $region6: #{bottleneck_forward.7} parent=0 // loop_footer
    %s14 = sadd.s32 1, %s10
  $region7: #{bottleneck_forward.7} parent=0 // loop_footer_branch
    %9 = sbr.rel target = $region3
  $region8: #{bottleneck_forward.7} parent=0 // loop_exit
    _

// kernel: bottleneck_forward.6
$region0: #{bottleneck_forward.6}
  #allocation0 [shape = 'u32[]', space=smem, size = 0x4, offset = 0x4, fixed_abs, tag = 'smem constant byte address 0x4 - core index']
  #allocation1 [shape = 'u32[144,128]{1,0:T(1,128)}', space=vmem, size = 0x12000, scoped, tag = 'internal scratch']
  %s0 = inlined_call_operand.vmem [shape: bf16[512,128], index: 0, kind: input, shape index: {}]
  %s1 = inlined_call_operand.vmem [shape: f32[1,128], index: 1, kind: input, shape index: {}]
  %s2 = inlined_call_operand.vmem [shape: f32[1,128], index: 2, kind: input, shape index: {}]
  %s3 = inlined_call_operand.vmem [shape: bf16[128,128], index: 3, kind: input, shape index: {}]
  %s4 = inlined_call_operand.vmem [shape: bf16[512,128], index: 4, kind: output, shape index: {0}]
  %s5 = inlined_call_operand.vmem [shape: f32[2,2,128], index: 5, kind: output, shape index: {1}]
  %6 = xla_tuple %s4, %s5
  %s7 = sld [smem:[#allocation0]]
  $region57: #{bottleneck_forward.6} parent=0
    _
  %s9 = ssub.s32 1, %s7
  %s10 = scalar_select 0, %s9, %s7
  loop: start=0, step=1, limit=4
  $region2: #{bottleneck_forward.6} parent=0 // loop_pre_header
    _
  $region3: #{bottleneck_forward.6} parent=0 // loop_header
    %s12 = sphi 0, %s16
    %p13 = scmp.ge.s32.totalorder %s12, 4
    %s22 = sphi 0, %s24
    %s25 = sphi 0, %s22
    %s26 = sphi 0, %s25
    %s42 = sphi 0, %s26
    %s46 = sphi 0, %s46
    %s48 = sphi 0, %s46
    %s49 = sphi 0, %s48
    %s63 = sphi 0, %s49
    %s67 = sphi 0, %s67
    %s69 = sphi 0, %s67
    %s70 = sphi 0, %s69
    %s84 = sphi 0, %s70
    %s88 = sphi 0, %s88
    %s90 = sphi 0, %s88
    %s91 = sphi 0, %s90
    %s105 = sphi 0, %s91
    %s111 = sphi 0, %s113
    %s114 = sphi 0, %s111
    %s115 = sphi 0, %s114
    %s131 = sphi 0, %s115
    %s137 = sphi 0, %s139
    %s140 = sphi 0, %s137
    %s141 = sphi 0, %s140
    %s157 = sphi 0, %s141
  $region4: #{bottleneck_forward.6} parent=0 // loop_header_branch
    %15 = sbr.rel (%p13) target = $region8
  $region5: #{bottleneck_forward.6} parent=0 // loop_body
    %s17 = ssub.s32 %s12, 1
    %s18 = ssub.s32 %s12, 2
    %s19 = sadd.s32 %s12, 1
    %s20 = ssub.s32 %s12, %s19
    %p21 = scmp.eq.s32.totalorder %s20, 0
    %s23 = sadd.s32 %s22, 1
    %s24 = scalar_select %p21, %s22, %s23
    %p27 = pneg %p21
    %p28 = scmp.eq.s32.totalorder %s12, 1
    %p29 = por %p27, %p28
    %p30 = scmp.ne.s32.totalorder %s22, %s25
    %p31 = scmp.eq.s32.totalorder %s12, 0
    %p32 = por %p30, %p31
    %p33 = scmp.ne.s32.totalorder %s22, %s25
    %p34 = scmp.eq.s32.totalorder %s17, 1
    %p35 = por %p33, %p34
    %p36 = scmp.ne.s32.totalorder %s25, %s26
    %p37 = scmp.eq.s32.totalorder %s17, 0
    %p38 = por %p36, %p37
    %p39 = scmp.ne.s32.totalorder %s25, %s26
    %p40 = scmp.eq.s32.totalorder %s18, 1
    %p41 = por %p39, %p40
    %p43 = scmp.ne.s32.totalorder %s26, %s42
    %p44 = scmp.eq.s32.totalorder %s18, 0
    %p45 = por %p43, %p44
    %s47 = sadd.s32 %s46, 1
    %p50 = scmp.eq.s32.totalorder %s12, 1
    %p51 = scmp.ne.s32.totalorder %s46, %s48
    %p52 = scmp.eq.s32.totalorder %s12, 0
    %p53 = por %p51, %p52
    %p54 = scmp.ne.s32.totalorder %s46, %s48
    %p55 = scmp.eq.s32.totalorder %s17, 1
    %p56 = por %p54, %p55
    %p57 = scmp.ne.s32.totalorder %s48, %s49
    %p58 = scmp.eq.s32.totalorder %s17, 0
    %p59 = por %p57, %p58
    %p60 = scmp.ne.s32.totalorder %s48, %s49
    %p61 = scmp.eq.s32.totalorder %s18, 1
    %p62 = por %p60, %p61
    %p64 = scmp.ne.s32.totalorder %s49, %s63
    %p65 = scmp.eq.s32.totalorder %s18, 0
    %p66 = por %p64, %p65
    %s68 = sadd.s32 %s67, 1
    %p71 = scmp.eq.s32.totalorder %s12, 1
    %p72 = scmp.ne.s32.totalorder %s67, %s69
    %p73 = scmp.eq.s32.totalorder %s12, 0
    %p74 = por %p72, %p73
    %p75 = scmp.ne.s32.totalorder %s67, %s69
    %p76 = scmp.eq.s32.totalorder %s17, 1
    %p77 = por %p75, %p76
    %p78 = scmp.ne.s32.totalorder %s69, %s70
    %p79 = scmp.eq.s32.totalorder %s17, 0
    %p80 = por %p78, %p79
    %p81 = scmp.ne.s32.totalorder %s69, %s70
    %p82 = scmp.eq.s32.totalorder %s18, 1
    %p83 = por %p81, %p82
    %p85 = scmp.ne.s32.totalorder %s70, %s84
    %p86 = scmp.eq.s32.totalorder %s18, 0
    %p87 = por %p85, %p86
    %s89 = sadd.s32 %s88, 1
    %p92 = scmp.eq.s32.totalorder %s12, 1
    %p93 = scmp.ne.s32.totalorder %s88, %s90
    %p94 = scmp.eq.s32.totalorder %s12, 0
    %p95 = por %p93, %p94
    %p96 = scmp.ne.s32.totalorder %s88, %s90
    %p97 = scmp.eq.s32.totalorder %s17, 1
    %p98 = por %p96, %p97
    %p99 = scmp.ne.s32.totalorder %s90, %s91
    %p100 = scmp.eq.s32.totalorder %s17, 0
    %p101 = por %p99, %p100
    %p102 = scmp.ne.s32.totalorder %s90, %s91
    %p103 = scmp.eq.s32.totalorder %s18, 1
    %p104 = por %p102, %p103
    %p106 = scmp.ne.s32.totalorder %s91, %s105
    %p107 = scmp.eq.s32.totalorder %s18, 0
    %p108 = por %p106, %p107
    %s109 = ssub.s32 %s12, %s19
    %p110 = scmp.eq.s32.totalorder %s109, 0
    %s112 = sadd.s32 %s111, 1
    %s113 = scalar_select %p110, %s111, %s112
    %p116 = pneg %p110
    %p117 = scmp.eq.s32.totalorder %s12, 1
    %p118 = por %p116, %p117
    %p119 = scmp.ne.s32.totalorder %s111, %s114
    %p120 = scmp.eq.s32.totalorder %s12, 0
    %p121 = por %p119, %p120
    %p122 = scmp.ne.s32.totalorder %s111, %s114
    %p123 = scmp.eq.s32.totalorder %s17, 1
    %p124 = por %p122, %p123
    %p125 = scmp.ne.s32.totalorder %s114, %s115
    %p126 = scmp.eq.s32.totalorder %s17, 0
    %p127 = por %p125, %p126
    %p128 = scmp.ne.s32.totalorder %s114, %s115
    %p129 = scmp.eq.s32.totalorder %s18, 1
    %p130 = por %p128, %p129
    %p132 = scmp.ne.s32.totalorder %s115, %s131
    %p133 = scmp.eq.s32.totalorder %s18, 0
    %p134 = por %p132, %p133
    %s135 = ssub.s32 %s12, %s19
    %p136 = scmp.eq.s32.totalorder %s135, 0
    %s138 = sadd.s32 %s137, 1
    %s139 = scalar_select %p136, %s137, %s138
    %p142 = pneg %p136
    %p143 = scmp.eq.s32.totalorder %s12, 1
    %p144 = por %p142, %p143
    %p145 = scmp.ne.s32.totalorder %s137, %s140
    %p146 = scmp.eq.s32.totalorder %s12, 0
    %p147 = por %p145, %p146
    %p148 = scmp.ne.s32.totalorder %s137, %s140
    %p149 = scmp.eq.s32.totalorder %s17, 1
    %p150 = por %p148, %p149
    %p151 = scmp.ne.s32.totalorder %s140, %s141
    %p152 = scmp.eq.s32.totalorder %s17, 0
    %p153 = por %p151, %p152
    %p154 = scmp.ne.s32.totalorder %s140, %s141
    %p155 = scmp.eq.s32.totalorder %s18, 1
    %p156 = por %p154, %p155
    %p158 = scmp.ne.s32.totalorder %s141, %s157
    %p159 = scmp.eq.s32.totalorder %s18, 0
    %p160 = por %p158, %p159
    %p161 = scmp.le.s32.totalorder 1, %s12
    %p162 = scmp.lt.s32.totalorder %s12, 3
    %p163 = pnand %p161, %p162
    %p164 = pneg %p163
    // Predicated region
    $region9: #{bottleneck_forward.6} parent=5 // pred_check
      _
    $region10: #{bottleneck_forward.6} parent=5 // pred_check_branch
      %166 = sbr.rel (%p163) target = $region12
    $region11: #{bottleneck_forward.6} parent=5 // pred_region
      %s167 = ssub.s32 %s12, 1
      // Predicated region
      $region13: #{bottleneck_forward.6} parent=11 // pred_check
        %p168 = pneg %p59
      $region14: #{bottleneck_forward.6} parent=11 // pred_check_branch
        %170 = sbr.rel (%p168) target = $region16
      $region15: #{bottleneck_forward.6} parent=11 // pred_region
        _
      $region16: #{bottleneck_forward.6} parent=11 // pred_fallthru
        _
      // Predicated region
      $region17: #{bottleneck_forward.6} parent=11 // pred_check
        %p171 = pneg %p80
      $region18: #{bottleneck_forward.6} parent=11 // pred_check_branch
        %173 = sbr.rel (%p171) target = $region20
      $region19: #{bottleneck_forward.6} parent=11 // pred_region
        _
      $region20: #{bottleneck_forward.6} parent=11 // pred_fallthru
        _
      // Predicated region
      $region21: #{bottleneck_forward.6} parent=11 // pred_check
        %p174 = pneg %p101
      $region22: #{bottleneck_forward.6} parent=11 // pred_check_branch
        %176 = sbr.rel (%p174) target = $region24
      $region23: #{bottleneck_forward.6} parent=11 // pred_region
        _
      $region24: #{bottleneck_forward.6} parent=11 // pred_fallthru
        _
    $region12: #{bottleneck_forward.6} parent=5 // pred_fallthru
      _
    %p177 = scmp.lt.s32.totalorder %s12, 2
    // Predicated region
    $region25: #{bottleneck_forward.6} parent=5 // pred_check
      %p178 = pneg %p177
    $region26: #{bottleneck_forward.6} parent=5 // pred_check_branch
      %180 = sbr.rel (%p178) target = $region28
    $region27: #{bottleneck_forward.6} parent=5 // pred_region
      // Predicated region
      $region29: #{bottleneck_forward.6} parent=27 // pred_check
        %p181 = pneg %p32
      $region30: #{bottleneck_forward.6} parent=27 // pred_check_branch
        %183 = sbr.rel (%p181) target = $region32
      $region31: #{bottleneck_forward.6} parent=27 // pred_region
        %s184 = smul.u32 32, %s12
        %p185 = scmp.lt.s32.totalorder %s184, 63
        %s186 = scalar_select %p185, %s184, 63
        %s187 = smul.addr %s186, 4
        %s188 = scalar_lea.vmem %s0, %s187
        %s189 = smul.u32 32, %s12
      $region32: #{bottleneck_forward.6} parent=27 // pred_fallthru
        _
    $region28: #{bottleneck_forward.6} parent=5 // pred_fallthru
      _
    %p190 = scmp.le.s32.totalorder 1, %s12
    %p191 = scmp.lt.s32.totalorder %s12, 3
    %p192 = pnand %p190, %p191
    %p193 = pneg %p192
    // Predicated region
    $region33: #{bottleneck_forward.6} parent=5 // pred_check
      _
    $region34: #{bottleneck_forward.6} parent=5 // pred_check_branch
      %195 = sbr.rel (%p192) target = $region36
    $region35: #{bottleneck_forward.6} parent=5 // pred_region
      %s196 = ssub.s32 %s12, 1
      %s197 = smul.u32 32, %s17
      %p198 = scmp.lt.s32.totalorder %s197, 63
      %s199 = scalar_select %p198, %s197, 63
      %s200 = smul.addr %s199, 4
      %s201 = scalar_lea.vmem %s0, %s200
      %p202 = pneg %p38
      %p203 = pneg %p35
      %p204 = pneg %p59
      %p205 = pneg %p56
      %p206 = pneg %p80
      %p207 = pneg %p77
      %p208 = pneg %p101
      %p209 = pneg %p98
      %p210 = pneg %p127
      %p211 = pneg %p124
      %s212 = smul.u32 32, %s17
      %p213 = scmp.lt.s32.totalorder %s212, 63
      %s214 = scalar_select %p213, %s212, 63
      %s215 = smul.addr %s214, 4
      %s216 = scalar_lea.vmem %s4, %s215
      %p217 = pneg %p153
      %p218 = pneg %p150
      %p219 = scmp.lt.s32.totalorder %s17, 1
      %s220 = scalar_select %p219, %s17, 1
      %s221 = smul.addr %s220, 2
      %s222 = scalar_lea.vmem %s5, %s221
      %s223 = smul.u32 32, %s17
      %p224 = scmp.lt.s32.totalorder %s223, 63
      %s225 = scalar_select %p224, %s223, 63
      %s226 = smul.addr %s225, 4
      %s227 = scalar_lea.vmem %s0, %s226
      %s228 = smul.u32 32, %s17
      %s229 = smul.u32 32, %s17
      %p230 = scmp.lt.s32.totalorder %s229, 63
      %s231 = scalar_select %p230, %s229, 63
      %s232 = smul.addr %s231, 4
      %s233 = scalar_lea.vmem %s4, %s232
      %s234 = smul.u32 32, %s17
      %p235 = scmp.lt.s32.totalorder %s17, 1
      %s236 = scalar_select %p235, %s17, 1
      %s237 = smul.addr %s236, 2
      %s238 = scalar_lea.vmem %s5, %s237
      %v240 = vld [vmem:[%s227] sm:$0xf]
      %v241 = vld [vmem:[%s227 + $0x4] sm:$0xf]
      %v242 = vld [vmem:[%s227 + $0x8] sm:$0xf]
      %v243 = vld [vmem:[%s227 + $0xc] sm:$0xf]
      %v244 = vld [vmem:[%s227 + $0x10] sm:$0xf]
      %v245 = vld [vmem:[%s227 + $0x14] sm:$0xf]
      %v246 = vld [vmem:[%s227 + $0x18] sm:$0xf]
      %v247 = vld [vmem:[%s227 + $0x1c] sm:$0xf]
      %v248 = vld [vmem:[%s227 + $0x20] sm:$0xf]
      %v249 = vld [vmem:[%s227 + $0x24] sm:$0xf]
      %v250 = vld [vmem:[%s227 + $0x28] sm:$0xf]
      %v251 = vld [vmem:[%s227 + $0x2c] sm:$0xf]
      %v252 = vld [vmem:[%s227 + $0x30] sm:$0xf]
      %v253 = vld [vmem:[%s227 + $0x34] sm:$0xf]
      %v254 = vld [vmem:[%s227 + $0x38] sm:$0xf]
      %v255 = vld [vmem:[%s227 + $0x3c] sm:$0xf]
      %v256 = vld [vmem:[%s227 + $0x40] sm:$0xf]
      %v257 = vld [vmem:[%s227 + $0x44] sm:$0xf]
      %v258 = vld [vmem:[%s227 + $0x48] sm:$0xf]
      %v259 = vld [vmem:[%s227 + $0x4c] sm:$0xf]
      %v260 = vld [vmem:[%s227 + $0x50] sm:$0xf]
      %v261 = vld [vmem:[%s227 + $0x54] sm:$0xf]
      %v262 = vld [vmem:[%s227 + $0x58] sm:$0xf]
      %v263 = vld [vmem:[%s227 + $0x5c] sm:$0xf]
      %v264 = vld [vmem:[%s227 + $0x60] sm:$0xf]
      %v265 = vld [vmem:[%s227 + $0x64] sm:$0xf]
      %v266 = vld [vmem:[%s227 + $0x68] sm:$0xf]
      %v267 = vld [vmem:[%s227 + $0x6c] sm:$0xf]
      %v268 = vld [vmem:[%s227 + $0x70] sm:$0xf]
      %v269 = vld [vmem:[%s227 + $0x74] sm:$0xf]
      %v270 = vld [vmem:[%s227 + $0x78] sm:$0xf]
      %v271 = vld [vmem:[%s227 + $0x7c] sm:$0xf]
      %v272 = vunpack.c.l.bf16 %v240
      %v273 = vunpack.c.l.bf16 %v241
      %v274 = vunpack.c.l.bf16 %v242
      %v275 = vunpack.c.l.bf16 %v243
      %v276 = vunpack.c.l.bf16 %v244
      %v277 = vunpack.c.l.bf16 %v245
      %v278 = vunpack.c.l.bf16 %v246
      %v279 = vunpack.c.l.bf16 %v247
      %v280 = vunpack.c.l.bf16 %v248
      %v281 = vunpack.c.l.bf16 %v249
      %v282 = vunpack.c.l.bf16 %v250
      %v283 = vunpack.c.l.bf16 %v251
      %v284 = vunpack.c.l.bf16 %v252
      %v285 = vunpack.c.l.bf16 %v253
      %v286 = vunpack.c.l.bf16 %v254
      %v287 = vunpack.c.l.bf16 %v255
      %v288 = vunpack.c.l.bf16 %v256
      %v289 = vunpack.c.l.bf16 %v257
      %v290 = vunpack.c.l.bf16 %v258
      %v291 = vunpack.c.l.bf16 %v259
      %v292 = vunpack.c.l.bf16 %v260
      %v293 = vunpack.c.l.bf16 %v261
      %v294 = vunpack.c.l.bf16 %v262
      %v295 = vunpack.c.l.bf16 %v263
      %v296 = vunpack.c.l.bf16 %v264
      %v297 = vunpack.c.l.bf16 %v265
      %v298 = vunpack.c.l.bf16 %v266
      %v299 = vunpack.c.l.bf16 %v267
      %v300 = vunpack.c.l.bf16 %v268
      %v301 = vunpack.c.l.bf16 %v269
      %v302 = vunpack.c.l.bf16 %v270
      %v303 = vunpack.c.l.bf16 %v271
      %v304 = vld [vmem:[%s1] sm:$0x1]
      %v306 = vlaneseq
      %v307 = vshrl.u32 %v306, 7
      %v308 = vsub.s32 0, %v307
      %v309 = vrot.slane %v304, %v308
      %v311 = vmul.f32 %v272, %v309
      %v312 = vmul.f32 %v273, %v309
      %v313 = vmul.f32 %v274, %v309
      %v314 = vmul.f32 %v275, %v309
      %v315 = vmul.f32 %v276, %v309
      %v316 = vmul.f32 %v277, %v309
      %v317 = vmul.f32 %v278, %v309
      %v318 = vmul.f32 %v279, %v309
      %v319 = vmul.f32 %v280, %v309
      %v320 = vmul.f32 %v281, %v309
      %v321 = vmul.f32 %v282, %v309
      %v322 = vmul.f32 %v283, %v309
      %v323 = vmul.f32 %v284, %v309
      %v324 = vmul.f32 %v285, %v309
      %v325 = vmul.f32 %v286, %v309
      %v326 = vmul.f32 %v287, %v309
      %v327 = vmul.f32 %v288, %v309
      %v328 = vmul.f32 %v289, %v309
      %v329 = vmul.f32 %v290, %v309
      %v330 = vmul.f32 %v291, %v309
      %v331 = vmul.f32 %v292, %v309
      %v332 = vmul.f32 %v293, %v309
      %v333 = vmul.f32 %v294, %v309
      %v334 = vmul.f32 %v295, %v309
      %v335 = vmul.f32 %v296, %v309
      %v336 = vmul.f32 %v297, %v309
      %v337 = vmul.f32 %v298, %v309
      %v338 = vmul.f32 %v299, %v309
      %v339 = vmul.f32 %v300, %v309
      %v340 = vmul.f32 %v301, %v309
      %v341 = vmul.f32 %v302, %v309
      %v342 = vmul.f32 %v303, %v309
      %v343 = vld [vmem:[%s2] sm:$0x1]
      %v345 = vlaneseq
      %v346 = vshrl.u32 %v345, 7
      %v347 = vsub.s32 0, %v346
      %v348 = vrot.slane %v343, %v347
      %v350 = vadd.f32 %v311, %v348
      %v351 = vadd.f32 %v312, %v348
      %v352 = vadd.f32 %v313, %v348
      %v353 = vadd.f32 %v314, %v348
      %v354 = vadd.f32 %v315, %v348
      %v355 = vadd.f32 %v316, %v348
      %v356 = vadd.f32 %v317, %v348
      %v357 = vadd.f32 %v318, %v348
      %v358 = vadd.f32 %v319, %v348
      %v359 = vadd.f32 %v320, %v348
      %v360 = vadd.f32 %v321, %v348
      %v361 = vadd.f32 %v322, %v348
      %v362 = vadd.f32 %v323, %v348
      %v363 = vadd.f32 %v324, %v348
      %v364 = vadd.f32 %v325, %v348
      %v365 = vadd.f32 %v326, %v348
      %v366 = vadd.f32 %v327, %v348
      %v367 = vadd.f32 %v328, %v348
      %v368 = vadd.f32 %v329, %v348
      %v369 = vadd.f32 %v330, %v348
      %v370 = vadd.f32 %v331, %v348
      %v371 = vadd.f32 %v332, %v348
      %v372 = vadd.f32 %v333, %v348
      %v373 = vadd.f32 %v334, %v348
      %v374 = vadd.f32 %v335, %v348
      %v375 = vadd.f32 %v336, %v348
      %v376 = vadd.f32 %v337, %v348
      %v377 = vadd.f32 %v338, %v348
      %v378 = vadd.f32 %v339, %v348
      %v379 = vadd.f32 %v340, %v348
      %v380 = vadd.f32 %v341, %v348
      %v381 = vadd.f32 %v342, %v348
      %vm382 = vcmp.gt.f32.partialorder %v350, 0.0
      %vm383 = vcmp.gt.f32.partialorder %v351, 0.0
      %vm384 = vcmp.gt.f32.partialorder %v352, 0.0
      %vm385 = vcmp.gt.f32.partialorder %v353, 0.0
      %vm386 = vcmp.gt.f32.partialorder %v354, 0.0
      %vm387 = vcmp.gt.f32.partialorder %v355, 0.0
      %vm388 = vcmp.gt.f32.partialorder %v356, 0.0
      %vm389 = vcmp.gt.f32.partialorder %v357, 0.0
      %vm390 = vcmp.gt.f32.partialorder %v358, 0.0
      %vm391 = vcmp.gt.f32.partialorder %v359, 0.0
      %vm392 = vcmp.gt.f32.partialorder %v360, 0.0
      %vm393 = vcmp.gt.f32.partialorder %v361, 0.0
      %vm394 = vcmp.gt.f32.partialorder %v362, 0.0
      %vm395 = vcmp.gt.f32.partialorder %v363, 0.0
      %vm396 = vcmp.gt.f32.partialorder %v364, 0.0
      %vm397 = vcmp.gt.f32.partialorder %v365, 0.0
      %vm398 = vcmp.gt.f32.partialorder %v366, 0.0
      %vm399 = vcmp.gt.f32.partialorder %v367, 0.0
      %vm400 = vcmp.gt.f32.partialorder %v368, 0.0
      %vm401 = vcmp.gt.f32.partialorder %v369, 0.0
      %vm402 = vcmp.gt.f32.partialorder %v370, 0.0
      %vm403 = vcmp.gt.f32.partialorder %v371, 0.0
      %vm404 = vcmp.gt.f32.partialorder %v372, 0.0
      %vm405 = vcmp.gt.f32.partialorder %v373, 0.0
      %vm406 = vcmp.gt.f32.partialorder %v374, 0.0
      %vm407 = vcmp.gt.f32.partialorder %v375, 0.0
      %vm408 = vcmp.gt.f32.partialorder %v376, 0.0
      %vm409 = vcmp.gt.f32.partialorder %v377, 0.0
      %vm410 = vcmp.gt.f32.partialorder %v378, 0.0
      %vm411 = vcmp.gt.f32.partialorder %v379, 0.0
      %vm412 = vcmp.gt.f32.partialorder %v380, 0.0
      %vm413 = vcmp.gt.f32.partialorder %v381, 0.0
      %v414 = vmul.f32 %v350, 0.01
      %v415 = vmul.f32 %v351, 0.01
      %v416 = vmul.f32 %v352, 0.01
      %v417 = vmul.f32 %v353, 0.01
      %v418 = vmul.f32 %v354, 0.01
      %v419 = vmul.f32 %v355, 0.01
      %v420 = vmul.f32 %v356, 0.01
      %v421 = vmul.f32 %v357, 0.01
      %v422 = vmul.f32 %v358, 0.01
      %v423 = vmul.f32 %v359, 0.01
      %v424 = vmul.f32 %v360, 0.01
      %v425 = vmul.f32 %v361, 0.01
      %v426 = vmul.f32 %v362, 0.01
      %v427 = vmul.f32 %v363, 0.01
      %v428 = vmul.f32 %v364, 0.01
      %v429 = vmul.f32 %v365, 0.01
      %v430 = vmul.f32 %v366, 0.01
      %v431 = vmul.f32 %v367, 0.01
      %v432 = vmul.f32 %v368, 0.01
      %v433 = vmul.f32 %v369, 0.01
      %v434 = vmul.f32 %v370, 0.01
      %v435 = vmul.f32 %v371, 0.01
      %v436 = vmul.f32 %v372, 0.01
      %v437 = vmul.f32 %v373, 0.01
      %v438 = vmul.f32 %v374, 0.01
      %v439 = vmul.f32 %v375, 0.01
      %v440 = vmul.f32 %v376, 0.01
      %v441 = vmul.f32 %v377, 0.01
      %v442 = vmul.f32 %v378, 0.01
      %v443 = vmul.f32 %v379, 0.01
      %v444 = vmul.f32 %v380, 0.01
      %v445 = vmul.f32 %v381, 0.01
      %v446 = vsel %vm382, %v350, %v414
      %v447 = vsel %vm383, %v351, %v415
      %v448 = vsel %vm384, %v352, %v416
      %v449 = vsel %vm385, %v353, %v417
      %v450 = vsel %vm386, %v354, %v418
      %v451 = vsel %vm387, %v355, %v419
      %v452 = vsel %vm388, %v356, %v420
      %v453 = vsel %vm389, %v357, %v421
      %v454 = vsel %vm390, %v358, %v422
      %v455 = vsel %vm391, %v359, %v423
      %v456 = vsel %vm392, %v360, %v424
      %v457 = vsel %vm393, %v361, %v425
      %v458 = vsel %vm394, %v362, %v426
      %v459 = vsel %vm395, %v363, %v427
      %v460 = vsel %vm396, %v364, %v428
      %v461 = vsel %vm397, %v365, %v429
      %v462 = vsel %vm398, %v366, %v430
      %v463 = vsel %vm399, %v367, %v431
      %v464 = vsel %vm400, %v368, %v432
      %v465 = vsel %vm401, %v369, %v433
      %v466 = vsel %vm402, %v370, %v434
      %v467 = vsel %vm403, %v371, %v435
      %v468 = vsel %vm404, %v372, %v436
      %v469 = vsel %vm405, %v373, %v437
      %v470 = vsel %vm406, %v374, %v438
      %v471 = vsel %vm407, %v375, %v439
      %v472 = vsel %vm408, %v376, %v440
      %v473 = vsel %vm409, %v377, %v441
      %v474 = vsel %vm410, %v378, %v442
      %v475 = vsel %vm411, %v379, %v443
      %v476 = vsel %vm412, %v380, %v444
      %v477 = vsel %vm413, %v381, %v445
      %v478 = vpack.c.bf16 %v447, %v446
      %v479 = vpack.c.bf16 %v449, %v448
      %v480 = vpack.c.bf16 %v451, %v450
      %v481 = vpack.c.bf16 %v453, %v452
      %v482 = vpack.c.bf16 %v455, %v454
      %v483 = vpack.c.bf16 %v457, %v456
      %v484 = vpack.c.bf16 %v459, %v458
      %v485 = vpack.c.bf16 %v461, %v460
      %v486 = vpack.c.bf16 %v463, %v462
      %v487 = vpack.c.bf16 %v465, %v464
      %v488 = vpack.c.bf16 %v467, %v466
      %v489 = vpack.c.bf16 %v469, %v468
      %v490 = vpack.c.bf16 %v471, %v470
      %v491 = vpack.c.bf16 %v473, %v472
      %v492 = vpack.c.bf16 %v475, %v474
      %v493 = vpack.c.bf16 %v477, %v476
      %v494 = vld [vmem:[%s3] sm:$0xf]
      %v495 = vld [vmem:[%s3 + $0x4] sm:$0xf]
      %v496 = vld [vmem:[%s3 + $0x8] sm:$0xf]
      %v497 = vld [vmem:[%s3 + $0xc] sm:$0xf]
      %v498 = vld [vmem:[%s3 + $0x10] sm:$0xf]
      %v499 = vld [vmem:[%s3 + $0x14] sm:$0xf]
      %v500 = vld [vmem:[%s3 + $0x18] sm:$0xf]
      %v501 = vld [vmem:[%s3 + $0x1c] sm:$0xf]
      %v502 = vld [vmem:[%s3 + $0x20] sm:$0xf]
      %v503 = vld [vmem:[%s3 + $0x24] sm:$0xf]
      %v504 = vld [vmem:[%s3 + $0x28] sm:$0xf]
      %v505 = vld [vmem:[%s3 + $0x2c] sm:$0xf]
      %v506 = vld [vmem:[%s3 + $0x30] sm:$0xf]
      %v507 = vld [vmem:[%s3 + $0x34] sm:$0xf]
      %v508 = vld [vmem:[%s3 + $0x38] sm:$0xf]
      %v509 = vld [vmem:[%s3 + $0x3c] sm:$0xf]
      %v526 = vunpack.c.l.b16 %v494
      %v527 = vunpack.c.l.b16 %v495
      %v528 = vunpack.c.l.b16 %v496
      %v529 = vunpack.c.l.b16 %v497
      %v530 = vunpack.c.l.b16 %v498
      %v531 = vunpack.c.l.b16 %v499
      %v532 = vunpack.c.l.b16 %v500
      %v533 = vunpack.c.l.b16 %v501
      %v534 = vunpack.c.l.b16 %v502
      %v535 = vunpack.c.l.b16 %v503
      %v536 = vunpack.c.l.b16 %v504
      %v537 = vunpack.c.l.b16 %v505
      %v538 = vunpack.c.l.b16 %v506
      %v539 = vunpack.c.l.b16 %v507
      %v540 = vunpack.c.l.b16 %v508
      %v541 = vunpack.c.l.b16 %v509
      %v542 = vpack.c.b16 %v527, %v526
      %v543 = vpack.c.b16 %v529, %v528
      %v544 = vpack.c.b16 %v531, %v530
      %v545 = vpack.c.b16 %v533, %v532
      %v546 = vpack.c.b16 %v535, %v534
      %v547 = vpack.c.b16 %v537, %v536
      %v548 = vpack.c.b16 %v539, %v538
      %v549 = vpack.c.b16 %v541, %v540
      %558 = vmatprep.subr.bf16.mxu0 0
      %559 = vmatpush1.bf16.msra.mxu0 %v549
      %560 = vmatprep.subr.bf16.mxu0 0
      %561 = vmatpush1.bf16.msra.mxu0 %v548
      %562 = vmatprep.subr.bf16.mxu0 0
      %563 = vmatpush1.bf16.msra.mxu0 %v547
      %564 = vmatprep.subr.bf16.mxu0 0
      %565 = vmatpush1.bf16.msra.mxu0 %v546
      %566 = vmatprep.subr.bf16.mxu0 0
      %567 = vmatpush1.bf16.msra.mxu0 %v545
      %568 = vmatprep.subr.bf16.mxu0 0
      %569 = vmatpush1.bf16.msra.mxu0 %v544
      %570 = vmatprep.subr.bf16.mxu0 0
      %571 = vmatpush1.bf16.msra.mxu0 %v543
      %572 = vmatprep.subr.bf16.mxu0 0
      %573 = vmatpush1.bf16.msra.mxu0 %v542
      %574 = vmatprep.subr.bf16.mxu0 0
      %575 = vmatpush2.bf16.msra.mxu0 0
      %576 = vmatprep.subr.bf16.mxu0 0
      %577 = vmatpush2.bf16.msra.mxu0 0
      %578 = vmatprep.subr.bf16.mxu0 0
      %579 = vmatpush2.bf16.msra.mxu0 0
      %580 = vmatprep.subr.bf16.mxu0 0
      %581 = vmatpush2.bf16.msra.mxu0 0
      %582 = vmatprep.subr.bf16.mxu0 0
      %583 = vmatpush2.bf16.msra.mxu0 0
      %584 = vmatprep.subr.bf16.mxu0 0
      %585 = vmatpush2.bf16.msra.mxu0 0
      %586 = vmatprep.subr.bf16.mxu0 0
      %587 = vmatpush2.bf16.msra.mxu0 0
      %588 = vmatprep.subr.bf16.mxu0 0
      %589 = vmatpush2.bf16.msra.mxu0 0
      %590 = vmatprep.mubr.bf16.mxu0 0
      %591 = vmatmul.mubr.bf16.gmra.mxu0 %v478
      %v592 = vpop.f32.mrf.mxu0
      %v593 = vadd.f32 0.0, %v592
      %v594 = vpop.f32.mrf.mxu0
      %v595 = vpop.f32.mrf.mxu0
      %v596 = vadd.f32 0.0, %v595
      %v597 = vpop.f32.mrf.mxu0
      %598 = vmatprep.mubr.bf16.mxu0 0
      %599 = vmatmul.mubr.bf16.gmra.mxu0 %v479
      %v600 = vpop.f32.mrf.mxu0
      %v601 = vadd.f32 0.0, %v600
      %v602 = vpop.f32.mrf.mxu0
      %v603 = vpop.f32.mrf.mxu0
      %v604 = vadd.f32 0.0, %v603
      %v605 = vpop.f32.mrf.mxu0
      %606 = vmatprep.mubr.bf16.mxu0 0
      %607 = vmatmul.mubr.bf16.gmra.mxu0 %v480
      %v608 = vpop.f32.mrf.mxu0
      %v609 = vadd.f32 0.0, %v608
      %v610 = vpop.f32.mrf.mxu0
      %v611 = vpop.f32.mrf.mxu0
      %v612 = vadd.f32 0.0, %v611
      %v613 = vpop.f32.mrf.mxu0
      %614 = vmatprep.mubr.bf16.mxu0 0
      %615 = vmatmul.mubr.bf16.gmra.mxu0 %v481
      %v616 = vpop.f32.mrf.mxu0
      %v617 = vadd.f32 0.0, %v616
      %v618 = vpop.f32.mrf.mxu0
      %v619 = vpop.f32.mrf.mxu0
      %v620 = vadd.f32 0.0, %v619
      %v621 = vpop.f32.mrf.mxu0
      %622 = vmatprep.mubr.bf16.mxu0 0
      %623 = vmatmul.mubr.bf16.gmra.mxu0 %v482
      %v624 = vpop.f32.mrf.mxu0
      %v625 = vadd.f32 0.0, %v624
      %v626 = vpop.f32.mrf.mxu0
      %v627 = vpop.f32.mrf.mxu0
      %v628 = vadd.f32 0.0, %v627
      %v629 = vpop.f32.mrf.mxu0
      %630 = vmatprep.mubr.bf16.mxu0 0
      %631 = vmatmul.mubr.bf16.gmra.mxu0 %v483
      %v632 = vpop.f32.mrf.mxu0
      %v633 = vadd.f32 0.0, %v632
      %v634 = vpop.f32.mrf.mxu0
      %v635 = vpop.f32.mrf.mxu0
      %v636 = vadd.f32 0.0, %v635
      %v637 = vpop.f32.mrf.mxu0
      %638 = vmatprep.mubr.bf16.mxu0 0
      %639 = vmatmul.mubr.bf16.gmra.mxu0 %v484
      %v640 = vpop.f32.mrf.mxu0
      %v641 = vadd.f32 0.0, %v640
      %v642 = vpop.f32.mrf.mxu0
      %v643 = vpop.f32.mrf.mxu0
      %v644 = vadd.f32 0.0, %v643
      %v645 = vpop.f32.mrf.mxu0
      %646 = vmatprep.mubr.bf16.mxu0 0
      %647 = vmatmul.mubr.bf16.gmra.mxu0 %v485
      %v648 = vpop.f32.mrf.mxu0
      %v649 = vadd.f32 0.0, %v648
      %v650 = vpop.f32.mrf.mxu0
      %v651 = vpop.f32.mrf.mxu0
      %v652 = vadd.f32 0.0, %v651
      %v653 = vpop.f32.mrf.mxu0
      %654 = vmatprep.mubr.bf16.mxu0 0
      %655 = vmatmul.mubr.bf16.gmra.mxu0 %v486
      %v656 = vpop.f32.mrf.mxu0
      %v657 = vadd.f32 0.0, %v656
      %v658 = vpop.f32.mrf.mxu0
      %v659 = vpop.f32.mrf.mxu0
      %v660 = vadd.f32 0.0, %v659
      %v661 = vpop.f32.mrf.mxu0
      %662 = vmatprep.mubr.bf16.mxu0 0
      %663 = vmatmul.mubr.bf16.gmra.mxu0 %v487
      %v664 = vpop.f32.mrf.mxu0
      %v665 = vadd.f32 0.0, %v664
      %v666 = vpop.f32.mrf.mxu0
      %v667 = vpop.f32.mrf.mxu0
      %v668 = vadd.f32 0.0, %v667
      %v669 = vpop.f32.mrf.mxu0
      %670 = vmatprep.mubr.bf16.mxu0 0
      %671 = vmatmul.mubr.bf16.gmra.mxu0 %v488
      %v672 = vpop.f32.mrf.mxu0
      %v673 = vadd.f32 0.0, %v672
      %v674 = vpop.f32.mrf.mxu0
      %v675 = vpop.f32.mrf.mxu0
      %v676 = vadd.f32 0.0, %v675
      %v677 = vpop.f32.mrf.mxu0
      %678 = vmatprep.mubr.bf16.mxu0 0
      %679 = vmatmul.mubr.bf16.gmra.mxu0 %v489
      %v680 = vpop.f32.mrf.mxu0
      %v681 = vadd.f32 0.0, %v680
      %v682 = vpop.f32.mrf.mxu0
      %v683 = vpop.f32.mrf.mxu0
      %v684 = vadd.f32 0.0, %v683
      %v685 = vpop.f32.mrf.mxu0
      %686 = vmatprep.mubr.bf16.mxu0 0
      %687 = vmatmul.mubr.bf16.gmra.mxu0 %v490
      %v688 = vpop.f32.mrf.mxu0
      %v689 = vadd.f32 0.0, %v688
      %v690 = vpop.f32.mrf.mxu0
      %v691 = vpop.f32.mrf.mxu0
      %v692 = vadd.f32 0.0, %v691
      %v693 = vpop.f32.mrf.mxu0
      %694 = vmatprep.mubr.bf16.mxu0 0
      %695 = vmatmul.mubr.bf16.gmra.mxu0 %v491
      %v696 = vpop.f32.mrf.mxu0
      %v697 = vadd.f32 0.0, %v696
      %v698 = vpop.f32.mrf.mxu0
      %v699 = vpop.f32.mrf.mxu0
      %v700 = vadd.f32 0.0, %v699
      %v701 = vpop.f32.mrf.mxu0
      %702 = vmatprep.mubr.bf16.mxu0 0
      %703 = vmatmul.mubr.bf16.gmra.mxu0 %v492
      %v704 = vpop.f32.mrf.mxu0
      %v705 = vadd.f32 0.0, %v704
      %v706 = vpop.f32.mrf.mxu0
      %v707 = vpop.f32.mrf.mxu0
      %v708 = vadd.f32 0.0, %v707
      %v709 = vpop.f32.mrf.mxu0
      %710 = vmatprep.mubr.bf16.mxu0 0
      %711 = vmatmul.mubr.bf16.gmra.mxu0 %v493
      %v712 = vpop.f32.mrf.mxu0
      %v713 = vadd.f32 0.0, %v712
      %v714 = vpop.f32.mrf.mxu0
      %v715 = vpop.f32.mrf.mxu0
      %v716 = vadd.f32 0.0, %v715
      %v717 = vpop.f32.mrf.mxu0
      %718 = vdwg.mxu0
      %v719 = vpack.c.bf16 %v596, %v593
      %v720 = vpack.c.bf16 %v604, %v601
      %v721 = vpack.c.bf16 %v612, %v609
      %v722 = vpack.c.bf16 %v620, %v617
      %v723 = vpack.c.bf16 %v628, %v625
      %v724 = vpack.c.bf16 %v636, %v633
      %v725 = vpack.c.bf16 %v644, %v641
      %v726 = vpack.c.bf16 %v652, %v649
      %v727 = vpack.c.bf16 %v660, %v657
      %v728 = vpack.c.bf16 %v668, %v665
      %v729 = vpack.c.bf16 %v676, %v673
      %v730 = vpack.c.bf16 %v684, %v681
      %v731 = vpack.c.bf16 %v692, %v689
      %v732 = vpack.c.bf16 %v700, %v697
      %v733 = vpack.c.bf16 %v708, %v705
      %v734 = vpack.c.bf16 %v716, %v713
      %v751 = vunpack.c.l.b16 %v719
      %v752 = vunpack.c.h.b16 %v719
      %v753 = vunpack.c.l.b16 %v720
      %v754 = vunpack.c.h.b16 %v720
      %v755 = vunpack.c.l.b16 %v721
      %v756 = vunpack.c.h.b16 %v721
      %v757 = vunpack.c.l.b16 %v722
      %v758 = vunpack.c.h.b16 %v722
      %v759 = vunpack.c.l.b16 %v723
      %v760 = vunpack.c.h.b16 %v723
      %v761 = vunpack.c.l.b16 %v724
      %v762 = vunpack.c.h.b16 %v724
      %v763 = vunpack.c.l.b16 %v725
      %v764 = vunpack.c.h.b16 %v725
      %v765 = vunpack.c.l.b16 %v726
      %v766 = vunpack.c.h.b16 %v726
      %v767 = vunpack.c.l.b16 %v727
      %v768 = vunpack.c.h.b16 %v727
      %v769 = vunpack.c.l.b16 %v728
      %v770 = vunpack.c.h.b16 %v728
      %v771 = vunpack.c.l.b16 %v729
      %v772 = vunpack.c.h.b16 %v729
      %v773 = vunpack.c.l.b16 %v730
      %v774 = vunpack.c.h.b16 %v730
      %v775 = vunpack.c.l.b16 %v731
      %v776 = vunpack.c.h.b16 %v731
      %v777 = vunpack.c.l.b16 %v732
      %v778 = vunpack.c.h.b16 %v732
      %v779 = vunpack.c.l.b16 %v733
      %v780 = vunpack.c.h.b16 %v733
      %v781 = vunpack.c.l.b16 %v734
      %v782 = vunpack.c.h.b16 %v734
      %v783 = vpack.c.b16 %v751, %v751
      %v784 = vpack.c.b16 %v752, %v752
      %v785 = vpack.c.b16 %v753, %v753
      %v786 = vpack.c.b16 %v754, %v754
      %v787 = vpack.c.b16 %v755, %v755
      %v788 = vpack.c.b16 %v756, %v756
      %v789 = vpack.c.b16 %v757, %v757
      %v790 = vpack.c.b16 %v758, %v758
      %v791 = vpack.c.b16 %v759, %v759
      %v792 = vpack.c.b16 %v760, %v760
      %v793 = vpack.c.b16 %v761, %v761
      %v794 = vpack.c.b16 %v762, %v762
      %v795 = vpack.c.b16 %v763, %v763
      %v796 = vpack.c.b16 %v764, %v764
      %v797 = vpack.c.b16 %v765, %v765
      %v798 = vpack.c.b16 %v766, %v766
      %v799 = vpack.c.b16 %v767, %v767
      %v800 = vpack.c.b16 %v768, %v768
      %v801 = vpack.c.b16 %v769, %v769
      %v802 = vpack.c.b16 %v770, %v770
      %v803 = vpack.c.b16 %v771, %v771
      %v804 = vpack.c.b16 %v772, %v772
      %v805 = vpack.c.b16 %v773, %v773
      %v806 = vpack.c.b16 %v774, %v774
      %v807 = vpack.c.b16 %v775, %v775
      %v808 = vpack.c.b16 %v776, %v776
      %v809 = vpack.c.b16 %v777, %v777
      %v810 = vpack.c.b16 %v778, %v778
      %v811 = vpack.c.b16 %v779, %v779
      %v812 = vpack.c.b16 %v780, %v780
      %v813 = vpack.c.b16 %v781, %v781
      %v814 = vpack.c.b16 %v782, %v782
      %847 = vst [vmem:[%s233] sm:$0xf] %v783
      %848 = vst [vmem:[%s233 + $0x4] sm:$0xf] %v784
      %849 = vst [vmem:[%s233 + $0x8] sm:$0xf] %v785
      %850 = vst [vmem:[%s233 + $0xc] sm:$0xf] %v786
      %851 = vst [vmem:[%s233 + $0x10] sm:$0xf] %v787
      %852 = vst [vmem:[%s233 + $0x14] sm:$0xf] %v788
      %853 = vst [vmem:[%s233 + $0x18] sm:$0xf] %v789
      %854 = vst [vmem:[%s233 + $0x1c] sm:$0xf] %v790
      %855 = vst [vmem:[%s233 + $0x20] sm:$0xf] %v791
      %856 = vst [vmem:[%s233 + $0x24] sm:$0xf] %v792
      %857 = vst [vmem:[%s233 + $0x28] sm:$0xf] %v793
      %858 = vst [vmem:[%s233 + $0x2c] sm:$0xf] %v794
      %859 = vst [vmem:[%s233 + $0x30] sm:$0xf] %v795
      %860 = vst [vmem:[%s233 + $0x34] sm:$0xf] %v796
      %861 = vst [vmem:[%s233 + $0x38] sm:$0xf] %v797
      %862 = vst [vmem:[%s233 + $0x3c] sm:$0xf] %v798
      %863 = vst [vmem:[%s233 + $0x40] sm:$0xf] %v799
      %864 = vst [vmem:[%s233 + $0x44] sm:$0xf] %v800
      %865 = vst [vmem:[%s233 + $0x48] sm:$0xf] %v801
      %866 = vst [vmem:[%s233 + $0x4c] sm:$0xf] %v802
      %867 = vst [vmem:[%s233 + $0x50] sm:$0xf] %v803
      %868 = vst [vmem:[%s233 + $0x54] sm:$0xf] %v804
      %869 = vst [vmem:[%s233 + $0x58] sm:$0xf] %v805
      %870 = vst [vmem:[%s233 + $0x5c] sm:$0xf] %v806
      %871 = vst [vmem:[%s233 + $0x60] sm:$0xf] %v807
      %872 = vst [vmem:[%s233 + $0x64] sm:$0xf] %v808
      %873 = vst [vmem:[%s233 + $0x68] sm:$0xf] %v809
      %874 = vst [vmem:[%s233 + $0x6c] sm:$0xf] %v810
      %875 = vst [vmem:[%s233 + $0x70] sm:$0xf] %v811
      %876 = vst [vmem:[%s233 + $0x74] sm:$0xf] %v812
      %877 = vst [vmem:[%s233 + $0x78] sm:$0xf] %v813
      %878 = vst [vmem:[%s233 + $0x7c] sm:$0xf] %v814
      %v879 = vadd.f32 %v593, %v596
      %v880 = vadd.f32 %v879, %v601
      %v881 = vadd.f32 %v880, %v604
      %v882 = vadd.f32 %v881, %v609
      %v883 = vadd.f32 %v882, %v612
      %v884 = vadd.f32 %v883, %v617
      %v885 = vadd.f32 %v884, %v620
      %v886 = vadd.f32 %v885, %v625
      %v887 = vadd.f32 %v886, %v628
      %v888 = vadd.f32 %v887, %v633
      %v889 = vadd.f32 %v888, %v636
      %v890 = vadd.f32 %v889, %v641
      %v891 = vadd.f32 %v890, %v644
      %v892 = vadd.f32 %v891, %v649
      %v893 = vadd.f32 %v892, %v652
      %v894 = vadd.f32 %v893, %v657
      %v895 = vadd.f32 %v894, %v660
      %v896 = vadd.f32 %v895, %v665
      %v897 = vadd.f32 %v896, %v668
      %v898 = vadd.f32 %v897, %v673
      %v899 = vadd.f32 %v898, %v676
      %v900 = vadd.f32 %v899, %v681
      %v901 = vadd.f32 %v900, %v684
      %v902 = vadd.f32 %v901, %v689
      %v903 = vadd.f32 %v902, %v692
      %v904 = vadd.f32 %v903, %v697
      %v905 = vadd.f32 %v904, %v700
      %v906 = vadd.f32 %v905, %v705
      %v907 = vadd.f32 %v906, %v708
      %v908 = vadd.f32 %v907, %v713
      %v909 = vadd.f32 %v908, %v716
      %v910 = vrot.slane %v909, 4
      %v911 = vadd.f32 %v909, %v910
      %v912 = vrot.slane %v911, 2
      %v913 = vadd.f32 %v911, %v912
      %v914 = vrot.slane %v913, 1
      %v915 = vadd.f32 %v913, %v914
      %v916 = vmul.f32 %v593, %v593
      %v917 = vmul.f32 %v596, %v596
      %v918 = vmul.f32 %v601, %v601
      %v919 = vmul.f32 %v604, %v604
      %v920 = vmul.f32 %v609, %v609
      %v921 = vmul.f32 %v612, %v612
      %v922 = vmul.f32 %v617, %v617
      %v923 = vmul.f32 %v620, %v620
      %v924 = vmul.f32 %v625, %v625
      %v925 = vmul.f32 %v628, %v628
      %v926 = vmul.f32 %v633, %v633
      %v927 = vmul.f32 %v636, %v636
      %v928 = vmul.f32 %v641, %v641
      %v929 = vmul.f32 %v644, %v644
      %v930 = vmul.f32 %v649, %v649
      %v931 = vmul.f32 %v652, %v652
      %v932 = vmul.f32 %v657, %v657
      %v933 = vmul.f32 %v660, %v660
      %v934 = vmul.f32 %v665, %v665
      %v935 = vmul.f32 %v668, %v668
      %v936 = vmul.f32 %v673, %v673
      %v937 = vmul.f32 %v676, %v676
      %v938 = vmul.f32 %v681, %v681
      %v939 = vmul.f32 %v684, %v684
      %v940 = vmul.f32 %v689, %v689
      %v941 = vmul.f32 %v692, %v692
      %v942 = vmul.f32 %v697, %v697
      %v943 = vmul.f32 %v700, %v700
      %v944 = vmul.f32 %v705, %v705
      %v945 = vmul.f32 %v708, %v708
      %v946 = vmul.f32 %v713, %v713
      %v947 = vmul.f32 %v716, %v716
      %v948 = vadd.f32 %v916, %v917
      %v949 = vadd.f32 %v948, %v918
      %v950 = vadd.f32 %v949, %v919
      %v951 = vadd.f32 %v950, %v920
      %v952 = vadd.f32 %v951, %v921
      %v953 = vadd.f32 %v952, %v922
      %v954 = vadd.f32 %v953, %v923
      %v955 = vadd.f32 %v954, %v924
      %v956 = vadd.f32 %v955, %v925
      %v957 = vadd.f32 %v956, %v926
      %v958 = vadd.f32 %v957, %v927
      %v959 = vadd.f32 %v958, %v928
      %v960 = vadd.f32 %v959, %v929
      %v961 = vadd.f32 %v960, %v930
      %v962 = vadd.f32 %v961, %v931
      %v963 = vadd.f32 %v962, %v932
      %v964 = vadd.f32 %v963, %v933
      %v965 = vadd.f32 %v964, %v934
      %v966 = vadd.f32 %v965, %v935
      %v967 = vadd.f32 %v966, %v936
      %v968 = vadd.f32 %v967, %v937
      %v969 = vadd.f32 %v968, %v938
      %v970 = vadd.f32 %v969, %v939
      %v971 = vadd.f32 %v970, %v940
      %v972 = vadd.f32 %v971, %v941
      %v973 = vadd.f32 %v972, %v942
      %v974 = vadd.f32 %v973, %v943
      %v975 = vadd.f32 %v974, %v944
      %v976 = vadd.f32 %v975, %v945
      %v977 = vadd.f32 %v976, %v946
      %v978 = vadd.f32 %v977, %v947
      %v979 = vrot.slane %v978, 4
      %v980 = vadd.f32 %v978, %v979
      %v981 = vrot.slane %v980, 2
      %v982 = vadd.f32 %v980, %v981
      %v983 = vrot.slane %v982, 1
      %v984 = vadd.f32 %v982, %v983
      %vm985 = vcmask 1040384
      %v986 = vsel %vm985, %v915, %v984
      %987 = vst [vmem:[%s238] sm:$0x3] %v986
      %s988 = smul.u32 32, %s17
      %p989 = scmp.lt.s32.totalorder %s988, 63
      %s990 = scalar_select %p989, %s988, 63
      %s991 = smul.addr %s990, 4
      %s992 = scalar_lea.vmem %s4, %s991
      %p993 = scmp.lt.s32.totalorder %s17, 1
      %s994 = scalar_select %p993, %s17, 1
      %s995 = smul.addr %s994, 2
      %s996 = scalar_lea.vmem %s5, %s995
      // Predicated region
      $region37: #{bottleneck_forward.6} parent=35 // pred_check
        %p997 = pneg %p124
      $region38: #{bottleneck_forward.6} parent=35 // pred_check_branch
        %999 = sbr.rel (%p997) target = $region40
      $region39: #{bottleneck_forward.6} parent=35 // pred_region
        %s1000 = smul.u32 32, %s17
      $region40: #{bottleneck_forward.6} parent=35 // pred_fallthru
        _
      // Predicated region
      $region41: #{bottleneck_forward.6} parent=35 // pred_check
        %p1001 = pneg %p150
      $region42: #{bottleneck_forward.6} parent=35 // pred_check_branch
        %1003 = sbr.rel (%p1001) target = $region44
      $region43: #{bottleneck_forward.6} parent=35 // pred_region
        _
      $region44: #{bottleneck_forward.6} parent=35 // pred_fallthru
        _
    $region36: #{bottleneck_forward.6} parent=5 // pred_fallthru
      _
    %p1004 = scmp.le.s32.totalorder 2, %s12
    // Predicated region
    $region45: #{bottleneck_forward.6} parent=5 // pred_check
      %p1005 = pneg %p1004
    $region46: #{bottleneck_forward.6} parent=5 // pred_check_branch
      %1007 = sbr.rel (%p1005) target = $region48
    $region47: #{bottleneck_forward.6} parent=5 // pred_region
      %s1008 = ssub.s32 %s12, 2
      // Predicated region
      $region49: #{bottleneck_forward.6} parent=47 // pred_check
        %p1009 = pneg %p130
      $region50: #{bottleneck_forward.6} parent=47 // pred_check_branch
        %1011 = sbr.rel (%p1009) target = $region52
      $region51: #{bottleneck_forward.6} parent=47 // pred_region
        %s1012 = smul.u32 32, %s18
        %p1013 = scmp.lt.s32.totalorder %s1012, 63
        %s1014 = scalar_select %p1013, %s1012, 63
        %s1015 = smul.addr %s1014, 4
        %s1016 = scalar_lea.vmem %s4, %s1015
      $region52: #{bottleneck_forward.6} parent=47 // pred_fallthru
        _
      // Predicated region
      $region53: #{bottleneck_forward.6} parent=47 // pred_check
        %p1017 = pneg %p156
      $region54: #{bottleneck_forward.6} parent=47 // pred_check_branch
        %1019 = sbr.rel (%p1017) target = $region56
      $region55: #{bottleneck_forward.6} parent=47 // pred_region
        %p1020 = scmp.lt.s32.totalorder %s18, 1
        %s1021 = scalar_select %p1020, %s18, 1
        %s1022 = smul.addr %s1021, 2
        %s1023 = scalar_lea.vmem %s5, %s1022
      $region56: #{bottleneck_forward.6} parent=47 // pred_fallthru
        _
    $region48: #{bottleneck_forward.6} parent=5 // pred_fallthru
      _
  $region6: #{bottleneck_forward.6} parent=0 // loop_footer
    %s16 = sadd.s32 1, %s12
  $region7: #{bottleneck_forward.6} parent=0 // loop_footer_branch
    %11 = sbr.rel target = $region3
  $region8: #{bottleneck_forward.6} parent=0 // loop_exit
    _

// kernel: bottleneck_forward.5
$region0: #{bottleneck_forward.5}
  #allocation0 [shape = 'u32[]', space=smem, size = 0x4, offset = 0x4, fixed_abs, tag = 'smem constant byte address 0x4 - core index']
  #allocation1 [shape = 'u32[144,128]{1,0:T(1,128)}', space=vmem, size = 0x12000, scoped, tag = 'internal scratch']
  #allocation2 [shape = 'f32[18,24,128]{2,1,0:T(8,128)}', space=vmem, size = 0x36000, scoped, tag = 'scratch operand']
  %s0 = inlined_call_operand.vmem [shape: bf16[2,16,16,128], index: 0, kind: input, shape index: {}]
  %s1 = inlined_call_operand.vmem [shape: f32[1,1,128], index: 1, kind: input, shape index: {}]
  %s2 = inlined_call_operand.vmem [shape: f32[1,1,128], index: 2, kind: input, shape index: {}]
  %s3 = inlined_call_operand.vmem [shape: bf16[3,384,128], index: 3, kind: input, shape index: {}]
  %s4 = inlined_call_operand.vmem [shape: bf16[2,256,128], index: 4, kind: output, shape index: {0}]
  %s5 = inlined_call_operand.vmem [shape: f32[2,2,128], index: 5, kind: output, shape index: {1}]
  %6 = xla_tuple %s4, %s5
  %s7 = sld [smem:[#allocation0]]
  $region57: #{bottleneck_forward.5} parent=0
    _
  %s9 = ssub.s32 1, %s7
  %s10 = scalar_select 0, %s9, %s7
  loop: start=0, step=1, limit=4
  $region2: #{bottleneck_forward.5} parent=0 // loop_pre_header
    _
  $region3: #{bottleneck_forward.5} parent=0 // loop_header
    %s12 = sphi 0, %s16
    %p13 = scmp.ge.s32.totalorder %s12, 4
    %s22 = sphi 0, %s24
    %s25 = sphi 0, %s22
    %s26 = sphi 0, %s25
    %s42 = sphi 0, %s26
    %s46 = sphi 0, %s46
    %s48 = sphi 0, %s46
    %s49 = sphi 0, %s48
    %s63 = sphi 0, %s49
    %s67 = sphi 0, %s67
    %s69 = sphi 0, %s67
    %s70 = sphi 0, %s69
    %s84 = sphi 0, %s70
    %s88 = sphi 0, %s88
    %s90 = sphi 0, %s88
    %s91 = sphi 0, %s90
    %s105 = sphi 0, %s91
    %s111 = sphi 0, %s113
    %s114 = sphi 0, %s111
    %s115 = sphi 0, %s114
    %s131 = sphi 0, %s115
    %s137 = sphi 0, %s139
    %s140 = sphi 0, %s137
    %s141 = sphi 0, %s140
    %s157 = sphi 0, %s141
  $region4: #{bottleneck_forward.5} parent=0 // loop_header_branch
    %15 = sbr.rel (%p13) target = $region8
  $region5: #{bottleneck_forward.5} parent=0 // loop_body
    %s17 = ssub.s32 %s12, 1
    %s18 = ssub.s32 %s12, 2
    %s19 = sadd.s32 %s12, 1
    %s20 = ssub.s32 %s12, %s19
    %p21 = scmp.eq.s32.totalorder %s20, 0
    %s23 = sadd.s32 %s22, 1
    %s24 = scalar_select %p21, %s22, %s23
    %p27 = pneg %p21
    %p28 = scmp.eq.s32.totalorder %s12, 1
    %p29 = por %p27, %p28
    %p30 = scmp.ne.s32.totalorder %s22, %s25
    %p31 = scmp.eq.s32.totalorder %s12, 0
    %p32 = por %p30, %p31
    %p33 = scmp.ne.s32.totalorder %s22, %s25
    %p34 = scmp.eq.s32.totalorder %s17, 1
    %p35 = por %p33, %p34
    %p36 = scmp.ne.s32.totalorder %s25, %s26
    %p37 = scmp.eq.s32.totalorder %s17, 0
    %p38 = por %p36, %p37
    %p39 = scmp.ne.s32.totalorder %s25, %s26
    %p40 = scmp.eq.s32.totalorder %s18, 1
    %p41 = por %p39, %p40
    %p43 = scmp.ne.s32.totalorder %s26, %s42
    %p44 = scmp.eq.s32.totalorder %s18, 0
    %p45 = por %p43, %p44
    %s47 = sadd.s32 %s46, 1
    %p50 = scmp.eq.s32.totalorder %s12, 1
    %p51 = scmp.ne.s32.totalorder %s46, %s48
    %p52 = scmp.eq.s32.totalorder %s12, 0
    %p53 = por %p51, %p52
    %p54 = scmp.ne.s32.totalorder %s46, %s48
    %p55 = scmp.eq.s32.totalorder %s17, 1
    %p56 = por %p54, %p55
    %p57 = scmp.ne.s32.totalorder %s48, %s49
    %p58 = scmp.eq.s32.totalorder %s17, 0
    %p59 = por %p57, %p58
    %p60 = scmp.ne.s32.totalorder %s48, %s49
    %p61 = scmp.eq.s32.totalorder %s18, 1
    %p62 = por %p60, %p61
    %p64 = scmp.ne.s32.totalorder %s49, %s63
    %p65 = scmp.eq.s32.totalorder %s18, 0
    %p66 = por %p64, %p65
    %s68 = sadd.s32 %s67, 1
    %p71 = scmp.eq.s32.totalorder %s12, 1
    %p72 = scmp.ne.s32.totalorder %s67, %s69
    %p73 = scmp.eq.s32.totalorder %s12, 0
    %p74 = por %p72, %p73
    %p75 = scmp.ne.s32.totalorder %s67, %s69
    %p76 = scmp.eq.s32.totalorder %s17, 1
    %p77 = por %p75, %p76
    %p78 = scmp.ne.s32.totalorder %s69, %s70
    %p79 = scmp.eq.s32.totalorder %s17, 0
    %p80 = por %p78, %p79
    %p81 = scmp.ne.s32.totalorder %s69, %s70
    %p82 = scmp.eq.s32.totalorder %s18, 1
    %p83 = por %p81, %p82
    %p85 = scmp.ne.s32.totalorder %s70, %s84
    %p86 = scmp.eq.s32.totalorder %s18, 0
    %p87 = por %p85, %p86
    %s89 = sadd.s32 %s88, 1
    %p92 = scmp.eq.s32.totalorder %s12, 1
    %p93 = scmp.ne.s32.totalorder %s88, %s90
    %p94 = scmp.eq.s32.totalorder %s12, 0
    %p95 = por %p93, %p94
    %p96 = scmp.ne.s32.totalorder %s88, %s90
    %p97 = scmp.eq.s32.totalorder %s17, 1
    %p98 = por %p96, %p97
    %p99 = scmp.ne.s32.totalorder %s90, %s91
    %p100 = scmp.eq.s32.totalorder %s17, 0
    %p101 = por %p99, %p100
    %p102 = scmp.ne.s32.totalorder %s90, %s91
    %p103 = scmp.eq.s32.totalorder %s18, 1
    %p104 = por %p102, %p103
    %p106 = scmp.ne.s32.totalorder %s91, %s105
    %p107 = scmp.eq.s32.totalorder %s18, 0
    %p108 = por %p106, %p107
    %s109 = ssub.s32 %s12, %s19
    %p110 = scmp.eq.s32.totalorder %s109, 0
    %s112 = sadd.s32 %s111, 1
    %s113 = scalar_select %p110, %s111, %s112
    %p116 = pneg %p110
    %p117 = scmp.eq.s32.totalorder %s12, 1
    %p118 = por %p116, %p117
    %p119 = scmp.ne.s32.totalorder %s111, %s114
    %p120 = scmp.eq.s32.totalorder %s12, 0
    %p121 = por %p119, %p120
    %p122 = scmp.ne.s32.totalorder %s111, %s114
    %p123 = scmp.eq.s32.totalorder %s17, 1
    %p124 = por %p122, %p123
    %p125 = scmp.ne.s32.totalorder %s114, %s115
    %p126 = scmp.eq.s32.totalorder %s17, 0
    %p127 = por %p125, %p126
    %p128 = scmp.ne.s32.totalorder %s114, %s115
    %p129 = scmp.eq.s32.totalorder %s18, 1
    %p130 = por %p128, %p129
    %p132 = scmp.ne.s32.totalorder %s115, %s131
    %p133 = scmp.eq.s32.totalorder %s18, 0
    %p134 = por %p132, %p133
    %s135 = ssub.s32 %s12, %s19
    %p136 = scmp.eq.s32.totalorder %s135, 0
    %s138 = sadd.s32 %s137, 1
    %s139 = scalar_select %p136, %s137, %s138
    %p142 = pneg %p136
    %p143 = scmp.eq.s32.totalorder %s12, 1
    %p144 = por %p142, %p143
    %p145 = scmp.ne.s32.totalorder %s137, %s140
    %p146 = scmp.eq.s32.totalorder %s12, 0
    %p147 = por %p145, %p146
    %p148 = scmp.ne.s32.totalorder %s137, %s140
    %p149 = scmp.eq.s32.totalorder %s17, 1
    %p150 = por %p148, %p149
    %p151 = scmp.ne.s32.totalorder %s140, %s141
    %p152 = scmp.eq.s32.totalorder %s17, 0
    %p153 = por %p151, %p152
    %p154 = scmp.ne.s32.totalorder %s140, %s141
    %p155 = scmp.eq.s32.totalorder %s18, 1
    %p156 = por %p154, %p155
    %p158 = scmp.ne.s32.totalorder %s141, %s157
    %p159 = scmp.eq.s32.totalorder %s18, 0
    %p160 = por %p158, %p159
    %p161 = scmp.le.s32.totalorder 1, %s12
    %p162 = scmp.lt.s32.totalorder %s12, 3
    %p163 = pnand %p161, %p162
    %p164 = pneg %p163
    // Predicated region
    $region9: #{bottleneck_forward.5} parent=5 // pred_check
      _
    $region10: #{bottleneck_forward.5} parent=5 // pred_check_branch
      %166 = sbr.rel (%p163) target = $region12
    $region11: #{bottleneck_forward.5} parent=5 // pred_region
      %s167 = ssub.s32 %s12, 1
      // Predicated region
      $region13: #{bottleneck_forward.5} parent=11 // pred_check
        %p168 = pneg %p59
      $region14: #{bottleneck_forward.5} parent=11 // pred_check_branch
        %170 = sbr.rel (%p168) target = $region16
      $region15: #{bottleneck_forward.5} parent=11 // pred_region
        _
      $region16: #{bottleneck_forward.5} parent=11 // pred_fallthru
        _
      // Predicated region
      $region17: #{bottleneck_forward.5} parent=11 // pred_check
        %p171 = pneg %p80
      $region18: #{bottleneck_forward.5} parent=11 // pred_check_branch
        %173 = sbr.rel (%p171) target = $region20
      $region19: #{bottleneck_forward.5} parent=11 // pred_region
        _
      $region20: #{bottleneck_forward.5} parent=11 // pred_fallthru
        _
      // Predicated region
      $region21: #{bottleneck_forward.5} parent=11 // pred_check
        %p174 = pneg %p101
      $region22: #{bottleneck_forward.5} parent=11 // pred_check_branch
        %176 = sbr.rel (%p174) target = $region24
      $region23: #{bottleneck_forward.5} parent=11 // pred_region
        _
      $region24: #{bottleneck_forward.5} parent=11 // pred_fallthru
        _
    $region12: #{bottleneck_forward.5} parent=5 // pred_fallthru
      _
    %p177 = scmp.lt.s32.totalorder %s12, 2
    // Predicated region
    $region25: #{bottleneck_forward.5} parent=5 // pred_check
      %p178 = pneg %p177
    $region26: #{bottleneck_forward.5} parent=5 // pred_check_branch
      %180 = sbr.rel (%p178) target = $region28
    $region27: #{bottleneck_forward.5} parent=5 // pred_region
      // Predicated region
      $region29: #{bottleneck_forward.5} parent=27 // pred_check
        %p181 = pneg %p32
      $region30: #{bottleneck_forward.5} parent=27 // pred_check_branch
        %183 = sbr.rel (%p181) target = $region32
      $region31: #{bottleneck_forward.5} parent=27 // pred_region
        %p184 = scmp.lt.s32.totalorder %s12, 1
        %s185 = scalar_select %p184, %s12, 1
        %s186 = smul.addr %s185, 32
        %s187 = smul.addr %s186, 4
        %s188 = scalar_lea.vmem %s0, %s187
      $region32: #{bottleneck_forward.5} parent=27 // pred_fallthru
        _
    $region28: #{bottleneck_forward.5} parent=5 // pred_fallthru
      _
    %p189 = scmp.le.s32.totalorder 1, %s12
    %p190 = scmp.lt.s32.totalorder %s12, 3
    %p191 = pnand %p189, %p190
    %p192 = pneg %p191
    // Predicated region
    $region33: #{bottleneck_forward.5} parent=5 // pred_check
      _
    $region34: #{bottleneck_forward.5} parent=5 // pred_check_branch
      %194 = sbr.rel (%p191) target = $region36
    $region35: #{bottleneck_forward.5} parent=5 // pred_region
      %s195 = ssub.s32 %s12, 1
      %p196 = scmp.lt.s32.totalorder %s17, 1
      %s197 = scalar_select %p196, %s17, 1
      %s198 = smul.addr %s197, 32
      %s199 = smul.addr %s198, 4
      %s200 = scalar_lea.vmem %s0, %s199
      %p201 = pneg %p38
      %p202 = pneg %p35
      %p203 = pneg %p59
      %p204 = pneg %p56
      %p205 = pneg %p80
      %p206 = pneg %p77
      %p207 = pneg %p101
      %p208 = pneg %p98
      %p209 = pneg %p127
      %p210 = pneg %p124
      %p211 = scmp.lt.s32.totalorder %s17, 1
      %s212 = scalar_select %p211, %s17, 1
      %s213 = smul.addr %s212, 32
      %s214 = smul.addr %s213, 4
      %s215 = scalar_lea.vmem %s4, %s214
      %p216 = pneg %p153
      %p217 = pneg %p150
      %p218 = scmp.lt.s32.totalorder %s17, 1
      %s219 = scalar_select %p218, %s17, 1
      %s220 = smul.addr %s219, 2
      %s221 = scalar_lea.vmem %s5, %s220
      %p222 = scmp.lt.s32.totalorder %s17, 1
      %s223 = scalar_select %p222, %s17, 1
      %s224 = smul.addr %s223, 32
      %s225 = smul.addr %s224, 4
      %s226 = scalar_lea.vmem %s0, %s225
      %p227 = scmp.lt.s32.totalorder %s17, 1
      %s228 = scalar_select %p227, %s17, 1
      %s229 = smul.addr %s228, 32
      %s230 = smul.addr %s229, 4
      %s231 = scalar_lea.vmem %s4, %s230
      %p232 = scmp.lt.s32.totalorder %s17, 1
      %s233 = scalar_select %p232, %s17, 1
      %s234 = smul.addr %s233, 2
      %s235 = scalar_lea.vmem %s5, %s234
      %237 = vst [vmem:[#allocation2] sm:$0xff] 0.0
      %238 = vst [vmem:[#allocation2 + $0x8] sm:$0xff] 0.0
      %239 = vst [vmem:[#allocation2 + $0x10] sm:$0xff] 0.0
      %s240 = scalar_lea.vmem [#allocation2], 408
      %241 = vst [vmem:[%s240] sm:$0xff] 0.0
      %242 = vst [vmem:[%s240 + $0x8] sm:$0xff] 0.0
      %243 = vst [vmem:[%s240 + $0x10] sm:$0xff] 0.0
      %s244 = scalar_lea.vmem [#allocation2], 24
      %245 = vst [vmem:[%s244] sm:$0x1] 0.0
      %246 = vst [vmem:[%s244 + $0x18] sm:$0x1] 0.0
      %247 = vst [vmem:[%s244 + $0x30] sm:$0x1] 0.0
      %248 = vst [vmem:[%s244 + $0x48] sm:$0x1] 0.0
      %249 = vst [vmem:[%s244 + $0x60] sm:$0x1] 0.0
      %250 = vst [vmem:[%s244 + $0x78] sm:$0x1] 0.0
      %251 = vst [vmem:[%s244 + $0x90] sm:$0x1] 0.0
      %252 = vst [vmem:[%s244 + $0xa8] sm:$0x1] 0.0
      %253 = vst [vmem:[%s244 + $0xc0] sm:$0x1] 0.0
      %254 = vst [vmem:[%s244 + $0xd8] sm:$0x1] 0.0
      %255 = vst [vmem:[%s244 + $0xf0] sm:$0x1] 0.0
      %256 = vst [vmem:[%s244 + $0x108] sm:$0x1] 0.0
      %257 = vst [vmem:[%s244 + $0x120] sm:$0x1] 0.0
      %258 = vst [vmem:[%s244 + $0x138] sm:$0x1] 0.0
      %259 = vst [vmem:[%s244 + $0x150] sm:$0x1] 0.0
      %260 = vst [vmem:[%s244 + $0x168] sm:$0x1] 0.0
      %261 = vst [vmem:[%s244 + $0x11] sm:$0x1] 0.0
      %262 = vst [vmem:[%s244 + $0x29] sm:$0x1] 0.0
      %263 = vst [vmem:[%s244 + $0x41] sm:$0x1] 0.0
      %264 = vst [vmem:[%s244 + $0x59] sm:$0x1] 0.0
      %265 = vst [vmem:[%s244 + $0x71] sm:$0x1] 0.0
      %266 = vst [vmem:[%s244 + $0x89] sm:$0x1] 0.0
      %267 = vst [vmem:[%s244 + $0xa1] sm:$0x1] 0.0
      %268 = vst [vmem:[%s244 + $0xb9] sm:$0x1] 0.0
      %269 = vst [vmem:[%s244 + $0xd1] sm:$0x1] 0.0
      %270 = vst [vmem:[%s244 + $0xe9] sm:$0x1] 0.0
      %271 = vst [vmem:[%s244 + $0x101] sm:$0x1] 0.0
      %272 = vst [vmem:[%s244 + $0x119] sm:$0x1] 0.0
      %273 = vst [vmem:[%s244 + $0x131] sm:$0x1] 0.0
      %274 = vst [vmem:[%s244 + $0x149] sm:$0x1] 0.0
      %275 = vst [vmem:[%s244 + $0x161] sm:$0x1] 0.0
      %276 = vst [vmem:[%s244 + $0x179] sm:$0x1] 0.0
      %v277 = vld [vmem:[%s226] sm:$0xf]
      %v278 = vld [vmem:[%s226 + $0x4] sm:$0xf]
      %v279 = vld [vmem:[%s226 + $0x8] sm:$0xf]
      %v280 = vld [vmem:[%s226 + $0xc] sm:$0xf]
      %v281 = vld [vmem:[%s226 + $0x10] sm:$0xf]
      %v282 = vld [vmem:[%s226 + $0x14] sm:$0xf]
      %v283 = vld [vmem:[%s226 + $0x18] sm:$0xf]
      %v284 = vld [vmem:[%s226 + $0x1c] sm:$0xf]
      %v285 = vld [vmem:[%s226 + $0x20] sm:$0xf]
      %v286 = vld [vmem:[%s226 + $0x24] sm:$0xf]
      %v287 = vld [vmem:[%s226 + $0x28] sm:$0xf]
      %v288 = vld [vmem:[%s226 + $0x2c] sm:$0xf]
      %v289 = vld [vmem:[%s226 + $0x30] sm:$0xf]
      %v290 = vld [vmem:[%s226 + $0x34] sm:$0xf]
      %v291 = vld [vmem:[%s226 + $0x38] sm:$0xf]
      %v292 = vld [vmem:[%s226 + $0x3c] sm:$0xf]
      %v293 = vld [vmem:[%s226 + $0x40] sm:$0xf]
      %v294 = vld [vmem:[%s226 + $0x44] sm:$0xf]
      %v295 = vld [vmem:[%s226 + $0x48] sm:$0xf]
      %v296 = vld [vmem:[%s226 + $0x4c] sm:$0xf]
      %v297 = vld [vmem:[%s226 + $0x50] sm:$0xf]
      %v298 = vld [vmem:[%s226 + $0x54] sm:$0xf]
      %v299 = vld [vmem:[%s226 + $0x58] sm:$0xf]
      %v300 = vld [vmem:[%s226 + $0x5c] sm:$0xf]
      %v301 = vld [vmem:[%s226 + $0x60] sm:$0xf]
      %v302 = vld [vmem:[%s226 + $0x64] sm:$0xf]
      %v303 = vld [vmem:[%s226 + $0x68] sm:$0xf]
      %v304 = vld [vmem:[%s226 + $0x6c] sm:$0xf]
      %v305 = vld [vmem:[%s226 + $0x70] sm:$0xf]
      %v306 = vld [vmem:[%s226 + $0x74] sm:$0xf]
      %v307 = vld [vmem:[%s226 + $0x78] sm:$0xf]
      %v308 = vld [vmem:[%s226 + $0x7c] sm:$0xf]
      %v309 = vunpack.c.l.bf16 %v277
      %v310 = vunpack.c.l.bf16 %v278
      %v311 = vunpack.c.l.bf16 %v279
      %v312 = vunpack.c.l.bf16 %v280
      %v313 = vunpack.c.l.bf16 %v281
      %v314 = vunpack.c.l.bf16 %v282
      %v315 = vunpack.c.l.bf16 %v283
      %v316 = vunpack.c.l.bf16 %v284
      %v317 = vunpack.c.l.bf16 %v285
      %v318 = vunpack.c.l.bf16 %v286
      %v319 = vunpack.c.l.bf16 %v287
      %v320 = vunpack.c.l.bf16 %v288
      %v321 = vunpack.c.l.bf16 %v289
      %v322 = vunpack.c.l.bf16 %v290
      %v323 = vunpack.c.l.bf16 %v291
      %v324 = vunpack.c.l.bf16 %v292
      %v325 = vunpack.c.l.bf16 %v293
      %v326 = vunpack.c.l.bf16 %v294
      %v327 = vunpack.c.l.bf16 %v295
      %v328 = vunpack.c.l.bf16 %v296
      %v329 = vunpack.c.l.bf16 %v297
      %v330 = vunpack.c.l.bf16 %v298
      %v331 = vunpack.c.l.bf16 %v299
      %v332 = vunpack.c.l.bf16 %v300
      %v333 = vunpack.c.l.bf16 %v301
      %v334 = vunpack.c.l.bf16 %v302
      %v335 = vunpack.c.l.bf16 %v303
      %v336 = vunpack.c.l.bf16 %v304
      %v337 = vunpack.c.l.bf16 %v305
      %v338 = vunpack.c.l.bf16 %v306
      %v339 = vunpack.c.l.bf16 %v307
      %v340 = vunpack.c.l.bf16 %v308
      %v341 = vld [vmem:[%s1] sm:$0x1]
      %v343 = vlaneseq
      %v344 = vshrl.u32 %v343, 7
      %v345 = vsub.s32 0, %v344
      %v346 = vrot.slane %v341, %v345
      %v348 = vmul.f32 %v309, %v346
      %v349 = vmul.f32 %v310, %v346
      %v350 = vmul.f32 %v311, %v346
      %v351 = vmul.f32 %v312, %v346
      %v352 = vmul.f32 %v313, %v346
      %v353 = vmul.f32 %v314, %v346
      %v354 = vmul.f32 %v315, %v346
      %v355 = vmul.f32 %v316, %v346
      %v356 = vmul.f32 %v317, %v346
      %v357 = vmul.f32 %v318, %v346
      %v358 = vmul.f32 %v319, %v346
      %v359 = vmul.f32 %v320, %v346
      %v360 = vmul.f32 %v321, %v346
      %v361 = vmul.f32 %v322, %v346
      %v362 = vmul.f32 %v323, %v346
      %v363 = vmul.f32 %v324, %v346
      %v364 = vmul.f32 %v325, %v346
      %v365 = vmul.f32 %v326, %v346
      %v366 = vmul.f32 %v327, %v346
      %v367 = vmul.f32 %v328, %v346
      %v368 = vmul.f32 %v329, %v346
      %v369 = vmul.f32 %v330, %v346
      %v370 = vmul.f32 %v331, %v346
      %v371 = vmul.f32 %v332, %v346
      %v372 = vmul.f32 %v333, %v346
      %v373 = vmul.f32 %v334, %v346
      %v374 = vmul.f32 %v335, %v346
      %v375 = vmul.f32 %v336, %v346
      %v376 = vmul.f32 %v337, %v346
      %v377 = vmul.f32 %v338, %v346
      %v378 = vmul.f32 %v339, %v346
      %v379 = vmul.f32 %v340, %v346
      %v380 = vld [vmem:[%s2] sm:$0x1]
      %v382 = vlaneseq
      %v383 = vshrl.u32 %v382, 7
      %v384 = vsub.s32 0, %v383
      %v385 = vrot.slane %v380, %v384
      %v387 = vadd.f32 %v348, %v385
      %v388 = vadd.f32 %v349, %v385
      %v389 = vadd.f32 %v350, %v385
      %v390 = vadd.f32 %v351, %v385
      %v391 = vadd.f32 %v352, %v385
      %v392 = vadd.f32 %v353, %v385
      %v393 = vadd.f32 %v354, %v385
      %v394 = vadd.f32 %v355, %v385
      %v395 = vadd.f32 %v356, %v385
      %v396 = vadd.f32 %v357, %v385
      %v397 = vadd.f32 %v358, %v385
      %v398 = vadd.f32 %v359, %v385
      %v399 = vadd.f32 %v360, %v385
      %v400 = vadd.f32 %v361, %v385
      %v401 = vadd.f32 %v362, %v385
      %v402 = vadd.f32 %v363, %v385
      %v403 = vadd.f32 %v364, %v385
      %v404 = vadd.f32 %v365, %v385
      %v405 = vadd.f32 %v366, %v385
      %v406 = vadd.f32 %v367, %v385
      %v407 = vadd.f32 %v368, %v385
      %v408 = vadd.f32 %v369, %v385
      %v409 = vadd.f32 %v370, %v385
      %v410 = vadd.f32 %v371, %v385
      %v411 = vadd.f32 %v372, %v385
      %v412 = vadd.f32 %v373, %v385
      %v413 = vadd.f32 %v374, %v385
      %v414 = vadd.f32 %v375, %v385
      %v415 = vadd.f32 %v376, %v385
      %v416 = vadd.f32 %v377, %v385
      %v417 = vadd.f32 %v378, %v385
      %v418 = vadd.f32 %v379, %v385
      %vm419 = vcmp.gt.f32.partialorder %v387, 0.0
      %vm420 = vcmp.gt.f32.partialorder %v388, 0.0
      %vm421 = vcmp.gt.f32.partialorder %v389, 0.0
      %vm422 = vcmp.gt.f32.partialorder %v390, 0.0
      %vm423 = vcmp.gt.f32.partialorder %v391, 0.0
      %vm424 = vcmp.gt.f32.partialorder %v392, 0.0
      %vm425 = vcmp.gt.f32.partialorder %v393, 0.0
      %vm426 = vcmp.gt.f32.partialorder %v394, 0.0
      %vm427 = vcmp.gt.f32.partialorder %v395, 0.0
      %vm428 = vcmp.gt.f32.partialorder %v396, 0.0
      %vm429 = vcmp.gt.f32.partialorder %v397, 0.0
      %vm430 = vcmp.gt.f32.partialorder %v398, 0.0
      %vm431 = vcmp.gt.f32.partialorder %v399, 0.0
      %vm432 = vcmp.gt.f32.partialorder %v400, 0.0
      %vm433 = vcmp.gt.f32.partialorder %v401, 0.0
      %vm434 = vcmp.gt.f32.partialorder %v402, 0.0
      %vm435 = vcmp.gt.f32.partialorder %v403, 0.0
      %vm436 = vcmp.gt.f32.partialorder %v404, 0.0
      %vm437 = vcmp.gt.f32.partialorder %v405, 0.0
      %vm438 = vcmp.gt.f32.partialorder %v406, 0.0
      %vm439 = vcmp.gt.f32.partialorder %v407, 0.0
      %vm440 = vcmp.gt.f32.partialorder %v408, 0.0
      %vm441 = vcmp.gt.f32.partialorder %v409, 0.0
      %vm442 = vcmp.gt.f32.partialorder %v410, 0.0
      %vm443 = vcmp.gt.f32.partialorder %v411, 0.0
      %vm444 = vcmp.gt.f32.partialorder %v412, 0.0
      %vm445 = vcmp.gt.f32.partialorder %v413, 0.0
      %vm446 = vcmp.gt.f32.partialorder %v414, 0.0
      %vm447 = vcmp.gt.f32.partialorder %v415, 0.0
      %vm448 = vcmp.gt.f32.partialorder %v416, 0.0
      %vm449 = vcmp.gt.f32.partialorder %v417, 0.0
      %vm450 = vcmp.gt.f32.partialorder %v418, 0.0
      %v451 = vmul.f32 %v387, 0.01
      %v452 = vmul.f32 %v388, 0.01
      %v453 = vmul.f32 %v389, 0.01
      %v454 = vmul.f32 %v390, 0.01
      %v455 = vmul.f32 %v391, 0.01
      %v456 = vmul.f32 %v392, 0.01
      %v457 = vmul.f32 %v393, 0.01
      %v458 = vmul.f32 %v394, 0.01
      %v459 = vmul.f32 %v395, 0.01
      %v460 = vmul.f32 %v396, 0.01
      %v461 = vmul.f32 %v397, 0.01
      %v462 = vmul.f32 %v398, 0.01
      %v463 = vmul.f32 %v399, 0.01
      %v464 = vmul.f32 %v400, 0.01
      %v465 = vmul.f32 %v401, 0.01
      %v466 = vmul.f32 %v402, 0.01
      %v467 = vmul.f32 %v403, 0.01
      %v468 = vmul.f32 %v404, 0.01
      %v469 = vmul.f32 %v405, 0.01
      %v470 = vmul.f32 %v406, 0.01
      %v471 = vmul.f32 %v407, 0.01
      %v472 = vmul.f32 %v408, 0.01
      %v473 = vmul.f32 %v409, 0.01
      %v474 = vmul.f32 %v410, 0.01
      %v475 = vmul.f32 %v411, 0.01
      %v476 = vmul.f32 %v412, 0.01
      %v477 = vmul.f32 %v413, 0.01
      %v478 = vmul.f32 %v414, 0.01
      %v479 = vmul.f32 %v415, 0.01
      %v480 = vmul.f32 %v416, 0.01
      %v481 = vmul.f32 %v417, 0.01
      %v482 = vmul.f32 %v418, 0.01
      %v483 = vsel %vm419, %v387, %v451
      %v484 = vsel %vm420, %v388, %v452
      %v485 = vsel %vm421, %v389, %v453
      %v486 = vsel %vm422, %v390, %v454
      %v487 = vsel %vm423, %v391, %v455
      %v488 = vsel %vm424, %v392, %v456
      %v489 = vsel %vm425, %v393, %v457
      %v490 = vsel %vm426, %v394, %v458
      %v491 = vsel %vm427, %v395, %v459
      %v492 = vsel %vm428, %v396, %v460
      %v493 = vsel %vm429, %v397, %v461
      %v494 = vsel %vm430, %v398, %v462
      %v495 = vsel %vm431, %v399, %v463
      %v496 = vsel %vm432, %v400, %v464
      %v497 = vsel %vm433, %v401, %v465
      %v498 = vsel %vm434, %v402, %v466
      %v499 = vsel %vm435, %v403, %v467
      %v500 = vsel %vm436, %v404, %v468
      %v501 = vsel %vm437, %v405, %v469
      %v502 = vsel %vm438, %v406, %v470
      %v503 = vsel %vm439, %v407, %v471
      %v504 = vsel %vm440, %v408, %v472
      %v505 = vsel %vm441, %v409, %v473
      %v506 = vsel %vm442, %v410, %v474
      %v507 = vsel %vm443, %v411, %v475
      %v508 = vsel %vm444, %v412, %v476
      %v509 = vsel %vm445, %v413, %v477
      %v510 = vsel %vm446, %v414, %v478
      %v511 = vsel %vm447, %v415, %v479
      %v512 = vsel %vm448, %v416, %v480
      %v513 = vsel %vm449, %v417, %v481
      %v514 = vsel %vm450, %v418, %v482
      %515 = vst [vmem:[%s244 + $0x1] sm:$0xff] %v483
      %516 = vst [vmem:[%s244 + $0x9] sm:$0xff] %v484
      %517 = vst [vmem:[%s244 + $0x19] sm:$0xff] %v485
      %518 = vst [vmem:[%s244 + $0x21] sm:$0xff] %v486
      %519 = vst [vmem:[%s244 + $0x31] sm:$0xff] %v487
      %520 = vst [vmem:[%s244 + $0x39] sm:$0xff] %v488
      %521 = vst [vmem:[%s244 + $0x49] sm:$0xff] %v489
      %522 = vst [vmem:[%s244 + $0x51] sm:$0xff] %v490
      %523 = vst [vmem:[%s244 + $0x61] sm:$0xff] %v491
      %524 = vst [vmem:[%s244 + $0x69] sm:$0xff] %v492
      %525 = vst [vmem:[%s244 + $0x79] sm:$0xff] %v493
      %526 = vst [vmem:[%s244 + $0x81] sm:$0xff] %v494
      %527 = vst [vmem:[%s244 + $0x91] sm:$0xff] %v495
      %528 = vst [vmem:[%s244 + $0x99] sm:$0xff] %v496
      %529 = vst [vmem:[%s244 + $0xa9] sm:$0xff] %v497
      %530 = vst [vmem:[%s244 + $0xb1] sm:$0xff] %v498
      %531 = vst [vmem:[%s244 + $0xc1] sm:$0xff] %v499
      %532 = vst [vmem:[%s244 + $0xc9] sm:$0xff] %v500
      %533 = vst [vmem:[%s244 + $0xd9] sm:$0xff] %v501
      %534 = vst [vmem:[%s244 + $0xe1] sm:$0xff] %v502
      %535 = vst [vmem:[%s244 + $0xf1] sm:$0xff] %v503
      %536 = vst [vmem:[%s244 + $0xf9] sm:$0xff] %v504
      %537 = vst [vmem:[%s244 + $0x109] sm:$0xff] %v505
      %538 = vst [vmem:[%s244 + $0x111] sm:$0xff] %v506
      %539 = vst [vmem:[%s244 + $0x121] sm:$0xff] %v507
      %540 = vst [vmem:[%s244 + $0x129] sm:$0xff] %v508
      %541 = vst [vmem:[%s244 + $0x139] sm:$0xff] %v509
      %542 = vst [vmem:[%s244 + $0x141] sm:$0xff] %v510
      %543 = vst [vmem:[%s244 + $0x151] sm:$0xff] %v511
      %544 = vst [vmem:[%s244 + $0x159] sm:$0xff] %v512
      %545 = vst [vmem:[%s244 + $0x169] sm:$0xff] %v513
      %546 = vst [vmem:[%s244 + $0x171] sm:$0xff] %v514
      %v547 = vld [vmem:[#allocation2] sm:$0xff]
      %v548 = vld [vmem:[#allocation2 + $0x8] sm:$0xff]
      %v549 = vld [vmem:[#allocation2 + $0x18] sm:$0xff]
      %v550 = vld [vmem:[#allocation2 + $0x20] sm:$0xff]
      %v551 = vld [vmem:[#allocation2 + $0x30] sm:$0xff]
      %v552 = vld [vmem:[#allocation2 + $0x38] sm:$0xff]
      %v553 = vld [vmem:[#allocation2 + $0x48] sm:$0xff]
      %v554 = vld [vmem:[#allocation2 + $0x50] sm:$0xff]
      %v555 = vld [vmem:[#allocation2 + $0x60] sm:$0xff]
      %v556 = vld [vmem:[#allocation2 + $0x68] sm:$0xff]
      %v557 = vld [vmem:[#allocation2 + $0x78] sm:$0xff]
      %v558 = vld [vmem:[#allocation2 + $0x80] sm:$0xff]
      %v559 = vld [vmem:[#allocation2 + $0x90] sm:$0xff]
      %v560 = vld [vmem:[#allocation2 + $0x98] sm:$0xff]
      %v561 = vld [vmem:[#allocation2 + $0xa8] sm:$0xff]
      %v562 = vld [vmem:[#allocation2 + $0xb0] sm:$0xff]
      %v563 = vld [vmem:[#allocation2 + $0xc0] sm:$0xff]
      %v564 = vld [vmem:[#allocation2 + $0xc8] sm:$0xff]
      %v565 = vld [vmem:[#allocation2 + $0xd8] sm:$0xff]
      %v566 = vld [vmem:[#allocation2 + $0xe0] sm:$0xff]
      %v567 = vld [vmem:[#allocation2 + $0xf0] sm:$0xff]
      %v568 = vld [vmem:[#allocation2 + $0xf8] sm:$0xff]
      %v569 = vld [vmem:[#allocation2 + $0x108] sm:$0xff]
      %v570 = vld [vmem:[#allocation2 + $0x110] sm:$0xff]
      %v571 = vld [vmem:[#allocation2 + $0x120] sm:$0xff]
      %v572 = vld [vmem:[#allocation2 + $0x128] sm:$0xff]
      %v573 = vld [vmem:[#allocation2 + $0x138] sm:$0xff]
      %v574 = vld [vmem:[#allocation2 + $0x140] sm:$0xff]
      %v575 = vld [vmem:[#allocation2 + $0x150] sm:$0xff]
      %v576 = vld [vmem:[#allocation2 + $0x158] sm:$0xff]
      %v577 = vld [vmem:[#allocation2 + $0x168] sm:$0xff]
      %v578 = vld [vmem:[#allocation2 + $0x170] sm:$0xff]
      %v579 = vld [vmem:[#allocation2 + $0x1] sm:$0xff]
      %v580 = vld [vmem:[#allocation2 + $0x9] sm:$0xff]
      %v581 = vld [vmem:[#allocation2 + $0x19] sm:$0xff]
      %v582 = vld [vmem:[#allocation2 + $0x21] sm:$0xff]
      %v583 = vld [vmem:[#allocation2 + $0x31] sm:$0xff]
      %v584 = vld [vmem:[#allocation2 + $0x39] sm:$0xff]
      %v585 = vld [vmem:[#allocation2 + $0x49] sm:$0xff]
      %v586 = vld [vmem:[#allocation2 + $0x51] sm:$0xff]
      %v587 = vld [vmem:[#allocation2 + $0x61] sm:$0xff]
      %v588 = vld [vmem:[#allocation2 + $0x69] sm:$0xff]
      %v589 = vld [vmem:[#allocation2 + $0x79] sm:$0xff]
      %v590 = vld [vmem:[#allocation2 + $0x81] sm:$0xff]
      %v591 = vld [vmem:[#allocation2 + $0x91] sm:$0xff]
      %v592 = vld [vmem:[#allocation2 + $0x99] sm:$0xff]
      %v593 = vld [vmem:[#allocation2 + $0xa9] sm:$0xff]
      %v594 = vld [vmem:[#allocation2 + $0xb1] sm:$0xff]
      %v595 = vld [vmem:[#allocation2 + $0xc1] sm:$0xff]
      %v596 = vld [vmem:[#allocation2 + $0xc9] sm:$0xff]
      %v597 = vld [vmem:[#allocation2 + $0xd9] sm:$0xff]
      %v598 = vld [vmem:[#allocation2 + $0xe1] sm:$0xff]
      %v599 = vld [vmem:[#allocation2 + $0xf1] sm:$0xff]
      %v600 = vld [vmem:[#allocation2 + $0xf9] sm:$0xff]
      %v601 = vld [vmem:[#allocation2 + $0x109] sm:$0xff]
      %v602 = vld [vmem:[#allocation2 + $0x111] sm:$0xff]
      %v603 = vld [vmem:[#allocation2 + $0x121] sm:$0xff]
      %v604 = vld [vmem:[#allocation2 + $0x129] sm:$0xff]
      %v605 = vld [vmem:[#allocation2 + $0x139] sm:$0xff]
      %v606 = vld [vmem:[#allocation2 + $0x141] sm:$0xff]
      %v607 = vld [vmem:[#allocation2 + $0x151] sm:$0xff]
      %v608 = vld [vmem:[#allocation2 + $0x159] sm:$0xff]
      %v609 = vld [vmem:[#allocation2 + $0x169] sm:$0xff]
      %v610 = vld [vmem:[#allocation2 + $0x171] sm:$0xff]
      %v611 = vld [vmem:[#allocation2 + $0x2] sm:$0xff]
      %v612 = vld [vmem:[#allocation2 + $0xa] sm:$0xff]
      %v613 = vld [vmem:[#allocation2 + $0x1a] sm:$0xff]
      %v614 = vld [vmem:[#allocation2 + $0x22] sm:$0xff]
      %v615 = vld [vmem:[#allocation2 + $0x32] sm:$0xff]
      %v616 = vld [vmem:[#allocation2 + $0x3a] sm:$0xff]
      %v617 = vld [vmem:[#allocation2 + $0x4a] sm:$0xff]
      %v618 = vld [vmem:[#allocation2 + $0x52] sm:$0xff]
      %v619 = vld [vmem:[#allocation2 + $0x62] sm:$0xff]
      %v620 = vld [vmem:[#allocation2 + $0x6a] sm:$0xff]
      %v621 = vld [vmem:[#allocation2 + $0x7a] sm:$0xff]
      %v622 = vld [vmem:[#allocation2 + $0x82] sm:$0xff]
      %v623 = vld [vmem:[#allocation2 + $0x92] sm:$0xff]
      %v624 = vld [vmem:[#allocation2 + $0x9a] sm:$0xff]
      %v625 = vld [vmem:[#allocation2 + $0xaa] sm:$0xff]
      %v626 = vld [vmem:[#allocation2 + $0xb2] sm:$0xff]
      %v627 = vld [vmem:[#allocation2 + $0xc2] sm:$0xff]
      %v628 = vld [vmem:[#allocation2 + $0xca] sm:$0xff]
      %v629 = vld [vmem:[#allocation2 + $0xda] sm:$0xff]
      %v630 = vld [vmem:[#allocation2 + $0xe2] sm:$0xff]
      %v631 = vld [vmem:[#allocation2 + $0xf2] sm:$0xff]
      %v632 = vld [vmem:[#allocation2 + $0xfa] sm:$0xff]
      %v633 = vld [vmem:[#allocation2 + $0x10a] sm:$0xff]
      %v634 = vld [vmem:[#allocation2 + $0x112] sm:$0xff]
      %v635 = vld [vmem:[#allocation2 + $0x122] sm:$0xff]
      %v636 = vld [vmem:[#allocation2 + $0x12a] sm:$0xff]
      %v637 = vld [vmem:[#allocation2 + $0x13a] sm:$0xff]
      %v638 = vld [vmem:[#allocation2 + $0x142] sm:$0xff]
      %v639 = vld [vmem:[#allocation2 + $0x152] sm:$0xff]
      %v640 = vld [vmem:[#allocation2 + $0x15a] sm:$0xff]
      %v641 = vld [vmem:[#allocation2 + $0x16a] sm:$0xff]
      %v642 = vld [vmem:[#allocation2 + $0x172] sm:$0xff]
      %v643 = vpack.c.bf16 %v548, %v547
      %v644 = vpack.c.bf16 %v580, %v579
      %v645 = vpack.c.bf16 %v612, %v611
      %v646 = vpack.c.bf16 %v550, %v549
      %v647 = vpack.c.bf16 %v582, %v581
      %v648 = vpack.c.bf16 %v614, %v613
      %v649 = vpack.c.bf16 %v552, %v551
      %v650 = vpack.c.bf16 %v584, %v583
      %v651 = vpack.c.bf16 %v616, %v615
      %v652 = vpack.c.bf16 %v554, %v553
      %v653 = vpack.c.bf16 %v586, %v585
      %v654 = vpack.c.bf16 %v618, %v617
      %v655 = vpack.c.bf16 %v556, %v555
      %v656 = vpack.c.bf16 %v588, %v587
      %v657 = vpack.c.bf16 %v620, %v619
      %v658 = vpack.c.bf16 %v558, %v557
      %v659 = vpack.c.bf16 %v590, %v589
      %v660 = vpack.c.bf16 %v622, %v621
      %v661 = vpack.c.bf16 %v560, %v559
      %v662 = vpack.c.bf16 %v592, %v591
      %v663 = vpack.c.bf16 %v624, %v623
      %v664 = vpack.c.bf16 %v562, %v561
      %v665 = vpack.c.bf16 %v594, %v593
      %v666 = vpack.c.bf16 %v626, %v625
      %v667 = vpack.c.bf16 %v564, %v563
      %v668 = vpack.c.bf16 %v596, %v595
      %v669 = vpack.c.bf16 %v628, %v627
      %v670 = vpack.c.bf16 %v566, %v565
      %v671 = vpack.c.bf16 %v598, %v597
      %v672 = vpack.c.bf16 %v630, %v629
      %v673 = vpack.c.bf16 %v568, %v567
      %v674 = vpack.c.bf16 %v600, %v599
      %v675 = vpack.c.bf16 %v632, %v631
      %v676 = vpack.c.bf16 %v570, %v569
      %v677 = vpack.c.bf16 %v602, %v601
      %v678 = vpack.c.bf16 %v634, %v633
      %v679 = vpack.c.bf16 %v572, %v571
      %v680 = vpack.c.bf16 %v604, %v603
      %v681 = vpack.c.bf16 %v636, %v635
      %v682 = vpack.c.bf16 %v574, %v573
      %v683 = vpack.c.bf16 %v606, %v605
      %v684 = vpack.c.bf16 %v638, %v637
      %v685 = vpack.c.bf16 %v576, %v575
      %v686 = vpack.c.bf16 %v608, %v607
      %v687 = vpack.c.bf16 %v640, %v639
      %v688 = vpack.c.bf16 %v578, %v577
      %v689 = vpack.c.bf16 %v610, %v609
      %v690 = vpack.c.bf16 %v642, %v641
      %v691 = vld [vmem:[%s3] sm:$0xf]
      %v692 = vld [vmem:[%s3 + $0x4] sm:$0xf]
      %v693 = vld [vmem:[%s3 + $0x8] sm:$0xf]
      %v694 = vld [vmem:[%s3 + $0xc] sm:$0xf]
      %v695 = vld [vmem:[%s3 + $0x10] sm:$0xf]
      %v696 = vld [vmem:[%s3 + $0x14] sm:$0xf]
      %v697 = vld [vmem:[%s3 + $0x18] sm:$0xf]
      %v698 = vld [vmem:[%s3 + $0x1c] sm:$0xf]
      %v699 = vld [vmem:[%s3 + $0x20] sm:$0xf]
      %v700 = vld [vmem:[%s3 + $0x24] sm:$0xf]
      %v701 = vld [vmem:[%s3 + $0x28] sm:$0xf]
      %v702 = vld [vmem:[%s3 + $0x2c] sm:$0xf]
      %v703 = vld [vmem:[%s3 + $0x30] sm:$0xf]
      %v704 = vld [vmem:[%s3 + $0x34] sm:$0xf]
      %v705 = vld [vmem:[%s3 + $0x38] sm:$0xf]
      %v706 = vld [vmem:[%s3 + $0x3c] sm:$0xf]
      %v707 = vld [vmem:[%s3 + $0x40] sm:$0xf]
      %v708 = vld [vmem:[%s3 + $0x44] sm:$0xf]
      %v709 = vld [vmem:[%s3 + $0x48] sm:$0xf]
      %v710 = vld [vmem:[%s3 + $0x4c] sm:$0xf]
      %v711 = vld [vmem:[%s3 + $0x50] sm:$0xf]
      %v712 = vld [vmem:[%s3 + $0x54] sm:$0xf]
      %v713 = vld [vmem:[%s3 + $0x58] sm:$0xf]
      %v714 = vld [vmem:[%s3 + $0x5c] sm:$0xf]
      %v715 = vld [vmem:[%s3 + $0x60] sm:$0xf]
      %v716 = vld [vmem:[%s3 + $0x64] sm:$0xf]
      %v717 = vld [vmem:[%s3 + $0x68] sm:$0xf]
      %v718 = vld [vmem:[%s3 + $0x6c] sm:$0xf]
      %v719 = vld [vmem:[%s3 + $0x70] sm:$0xf]
      %v720 = vld [vmem:[%s3 + $0x74] sm:$0xf]
      %v721 = vld [vmem:[%s3 + $0x78] sm:$0xf]
      %v722 = vld [vmem:[%s3 + $0x7c] sm:$0xf]
      %v723 = vld [vmem:[%s3 + $0x80] sm:$0xf]
      %v724 = vld [vmem:[%s3 + $0x84] sm:$0xf]
      %v725 = vld [vmem:[%s3 + $0x88] sm:$0xf]
      %v726 = vld [vmem:[%s3 + $0x8c] sm:$0xf]
      %v727 = vld [vmem:[%s3 + $0x90] sm:$0xf]
      %v728 = vld [vmem:[%s3 + $0x94] sm:$0xf]
      %v729 = vld [vmem:[%s3 + $0x98] sm:$0xf]
      %v730 = vld [vmem:[%s3 + $0x9c] sm:$0xf]
      %v731 = vld [vmem:[%s3 + $0xa0] sm:$0xf]
      %v732 = vld [vmem:[%s3 + $0xa4] sm:$0xf]
      %v733 = vld [vmem:[%s3 + $0xa8] sm:$0xf]
      %v734 = vld [vmem:[%s3 + $0xac] sm:$0xf]
      %v735 = vld [vmem:[%s3 + $0xb0] sm:$0xf]
      %v736 = vld [vmem:[%s3 + $0xb4] sm:$0xf]
      %v737 = vld [vmem:[%s3 + $0xb8] sm:$0xf]
      %v738 = vld [vmem:[%s3 + $0xbc] sm:$0xf]
      %v739 = vld [vmem:[%s244] sm:$0xff]
      %v740 = vld [vmem:[%s244 + $0x8] sm:$0xff]
      %v741 = vld [vmem:[%s244 + $0x18] sm:$0xff]
      %v742 = vld [vmem:[%s244 + $0x20] sm:$0xff]
      %v743 = vld [vmem:[%s244 + $0x30] sm:$0xff]
      %v744 = vld [vmem:[%s244 + $0x38] sm:$0xff]
      %v745 = vld [vmem:[%s244 + $0x48] sm:$0xff]
      %v746 = vld [vmem:[%s244 + $0x50] sm:$0xff]
      %v747 = vld [vmem:[%s244 + $0x60] sm:$0xff]
      %v748 = vld [vmem:[%s244 + $0x68] sm:$0xff]
      %v749 = vld [vmem:[%s244 + $0x78] sm:$0xff]
      %v750 = vld [vmem:[%s244 + $0x80] sm:$0xff]
      %v751 = vld [vmem:[%s244 + $0x90] sm:$0xff]
      %v752 = vld [vmem:[%s244 + $0x98] sm:$0xff]
      %v753 = vld [vmem:[%s244 + $0xa8] sm:$0xff]
      %v754 = vld [vmem:[%s244 + $0xb0] sm:$0xff]
      %v755 = vld [vmem:[%s244 + $0xc0] sm:$0xff]
      %v756 = vld [vmem:[%s244 + $0xc8] sm:$0xff]
      %v757 = vld [vmem:[%s244 + $0xd8] sm:$0xff]
      %v758 = vld [vmem:[%s244 + $0xe0] sm:$0xff]
      %v759 = vld [vmem:[%s244 + $0xf0] sm:$0xff]
      %v760 = vld [vmem:[%s244 + $0xf8] sm:$0xff]
      %v761 = vld [vmem:[%s244 + $0x108] sm:$0xff]
      %v762 = vld [vmem:[%s244 + $0x110] sm:$0xff]
      %v763 = vld [vmem:[%s244 + $0x120] sm:$0xff]
      %v764 = vld [vmem:[%s244 + $0x128] sm:$0xff]
      %v765 = vld [vmem:[%s244 + $0x138] sm:$0xff]
      %v766 = vld [vmem:[%s244 + $0x140] sm:$0xff]
      %v767 = vld [vmem:[%s244 + $0x150] sm:$0xff]
      %v768 = vld [vmem:[%s244 + $0x158] sm:$0xff]
      %v769 = vld [vmem:[%s244 + $0x168] sm:$0xff]
      %v770 = vld [vmem:[%s244 + $0x170] sm:$0xff]
      %v771 = vld [vmem:[%s244 + $0x1] sm:$0xff]
      %v772 = vld [vmem:[%s244 + $0x9] sm:$0xff]
      %v773 = vld [vmem:[%s244 + $0x19] sm:$0xff]
      %v774 = vld [vmem:[%s244 + $0x21] sm:$0xff]
      %v775 = vld [vmem:[%s244 + $0x31] sm:$0xff]
      %v776 = vld [vmem:[%s244 + $0x39] sm:$0xff]
      %v777 = vld [vmem:[%s244 + $0x49] sm:$0xff]
      %v778 = vld [vmem:[%s244 + $0x51] sm:$0xff]
      %v779 = vld [vmem:[%s244 + $0x61] sm:$0xff]
      %v780 = vld [vmem:[%s244 + $0x69] sm:$0xff]
      %v781 = vld [vmem:[%s244 + $0x79] sm:$0xff]
      %v782 = vld [vmem:[%s244 + $0x81] sm:$0xff]
      %v783 = vld [vmem:[%s244 + $0x91] sm:$0xff]
      %v784 = vld [vmem:[%s244 + $0x99] sm:$0xff]
      %v785 = vld [vmem:[%s244 + $0xa9] sm:$0xff]
      %v786 = vld [vmem:[%s244 + $0xb1] sm:$0xff]
      %v787 = vld [vmem:[%s244 + $0xc1] sm:$0xff]
      %v788 = vld [vmem:[%s244 + $0xc9] sm:$0xff]
      %v789 = vld [vmem:[%s244 + $0xd9] sm:$0xff]
      %v790 = vld [vmem:[%s244 + $0xe1] sm:$0xff]
      %v791 = vld [vmem:[%s244 + $0xf1] sm:$0xff]
      %v792 = vld [vmem:[%s244 + $0xf9] sm:$0xff]
      %v793 = vld [vmem:[%s244 + $0x109] sm:$0xff]
      %v794 = vld [vmem:[%s244 + $0x111] sm:$0xff]
      %v795 = vld [vmem:[%s244 + $0x121] sm:$0xff]
      %v796 = vld [vmem:[%s244 + $0x129] sm:$0xff]
      %v797 = vld [vmem:[%s244 + $0x139] sm:$0xff]
      %v798 = vld [vmem:[%s244 + $0x141] sm:$0xff]
      %v799 = vld [vmem:[%s244 + $0x151] sm:$0xff]
      %v800 = vld [vmem:[%s244 + $0x159] sm:$0xff]
      %v801 = vld [vmem:[%s244 + $0x169] sm:$0xff]
      %v802 = vld [vmem:[%s244 + $0x171] sm:$0xff]
      %v803 = vld [vmem:[%s244 + $0x2] sm:$0xff]
      %v804 = vld [vmem:[%s244 + $0xa] sm:$0xff]
      %v805 = vld [vmem:[%s244 + $0x1a] sm:$0xff]
      %v806 = vld [vmem:[%s244 + $0x22] sm:$0xff]
      %v807 = vld [vmem:[%s244 + $0x32] sm:$0xff]
      %v808 = vld [vmem:[%s244 + $0x3a] sm:$0xff]
      %v809 = vld [vmem:[%s244 + $0x4a] sm:$0xff]
      %v810 = vld [vmem:[%s244 + $0x52] sm:$0xff]
      %v811 = vld [vmem:[%s244 + $0x62] sm:$0xff]
      %v812 = vld [vmem:[%s244 + $0x6a] sm:$0xff]
      %v813 = vld [vmem:[%s244 + $0x7a] sm:$0xff]
      %v814 = vld [vmem:[%s244 + $0x82] sm:$0xff]
      %v815 = vld [vmem:[%s244 + $0x92] sm:$0xff]
      %v816 = vld [vmem:[%s244 + $0x9a] sm:$0xff]
      %v817 = vld [vmem:[%s244 + $0xaa] sm:$0xff]
      %v818 = vld [vmem:[%s244 + $0xb2] sm:$0xff]
      %v819 = vld [vmem:[%s244 + $0xc2] sm:$0xff]
      %v820 = vld [vmem:[%s244 + $0xca] sm:$0xff]
      %v821 = vld [vmem:[%s244 + $0xda] sm:$0xff]
      %v822 = vld [vmem:[%s244 + $0xe2] sm:$0xff]
      %v823 = vld [vmem:[%s244 + $0xf2] sm:$0xff]
      %v824 = vld [vmem:[%s244 + $0xfa] sm:$0xff]
      %v825 = vld [vmem:[%s244 + $0x10a] sm:$0xff]
      %v826 = vld [vmem:[%s244 + $0x112] sm:$0xff]
      %v827 = vld [vmem:[%s244 + $0x122] sm:$0xff]
      %v828 = vld [vmem:[%s244 + $0x12a] sm:$0xff]
      %v829 = vld [vmem:[%s244 + $0x13a] sm:$0xff]
      %v830 = vld [vmem:[%s244 + $0x142] sm:$0xff]
      %v831 = vld [vmem:[%s244 + $0x152] sm:$0xff]
      %v832 = vld [vmem:[%s244 + $0x15a] sm:$0xff]
      %v833 = vld [vmem:[%s244 + $0x16a] sm:$0xff]
      %v834 = vld [vmem:[%s244 + $0x172] sm:$0xff]
      %v835 = vpack.c.bf16 %v740, %v739
      %v836 = vpack.c.bf16 %v772, %v771
      %v837 = vpack.c.bf16 %v804, %v803
      %v838 = vpack.c.bf16 %v742, %v741
      %v839 = vpack.c.bf16 %v774, %v773
      %v840 = vpack.c.bf16 %v806, %v805
      %v841 = vpack.c.bf16 %v744, %v743
      %v842 = vpack.c.bf16 %v776, %v775
      %v843 = vpack.c.bf16 %v808, %v807
      %v844 = vpack.c.bf16 %v746, %v745
      %v845 = vpack.c.bf16 %v778, %v777
      %v846 = vpack.c.bf16 %v810, %v809
      %v847 = vpack.c.bf16 %v748, %v747
      %v848 = vpack.c.bf16 %v780, %v779
      %v849 = vpack.c.bf16 %v812, %v811
      %v850 = vpack.c.bf16 %v750, %v749
      %v851 = vpack.c.bf16 %v782, %v781
      %v852 = vpack.c.bf16 %v814, %v813
      %v853 = vpack.c.bf16 %v752, %v751
      %v854 = vpack.c.bf16 %v784, %v783
      %v855 = vpack.c.bf16 %v816, %v815
      %v856 = vpack.c.bf16 %v754, %v753
      %v857 = vpack.c.bf16 %v786, %v785
      %v858 = vpack.c.bf16 %v818, %v817
      %v859 = vpack.c.bf16 %v756, %v755
      %v860 = vpack.c.bf16 %v788, %v787
      %v861 = vpack.c.bf16 %v820, %v819
      %v862 = vpack.c.bf16 %v758, %v757
      %v863 = vpack.c.bf16 %v790, %v789
      %v864 = vpack.c.bf16 %v822, %v821
      %v865 = vpack.c.bf16 %v760, %v759
      %v866 = vpack.c.bf16 %v792, %v791
      %v867 = vpack.c.bf16 %v824, %v823
      %v868 = vpack.c.bf16 %v762, %v761
      %v869 = vpack.c.bf16 %v794, %v793
      %v870 = vpack.c.bf16 %v826, %v825
      %v871 = vpack.c.bf16 %v764, %v763
      %v872 = vpack.c.bf16 %v796, %v795
      %v873 = vpack.c.bf16 %v828, %v827
      %v874 = vpack.c.bf16 %v766, %v765
      %v875 = vpack.c.bf16 %v798, %v797
      %v876 = vpack.c.bf16 %v830, %v829
      %v877 = vpack.c.bf16 %v768, %v767
      %v878 = vpack.c.bf16 %v800, %v799
      %v879 = vpack.c.bf16 %v832, %v831
      %v880 = vpack.c.bf16 %v770, %v769
      %v881 = vpack.c.bf16 %v802, %v801
      %v882 = vpack.c.bf16 %v834, %v833
      %s883 = scalar_lea.vmem %s3, 192
      %v884 = vld [vmem:[%s883] sm:$0xf]
      %v885 = vld [vmem:[%s883 + $0x4] sm:$0xf]
      %v886 = vld [vmem:[%s883 + $0x8] sm:$0xf]
      %v887 = vld [vmem:[%s883 + $0xc] sm:$0xf]
      %v888 = vld [vmem:[%s883 + $0x10] sm:$0xf]
      %v889 = vld [vmem:[%s883 + $0x14] sm:$0xf]
      %v890 = vld [vmem:[%s883 + $0x18] sm:$0xf]
      %v891 = vld [vmem:[%s883 + $0x1c] sm:$0xf]
      %v892 = vld [vmem:[%s883 + $0x20] sm:$0xf]
      %v893 = vld [vmem:[%s883 + $0x24] sm:$0xf]
      %v894 = vld [vmem:[%s883 + $0x28] sm:$0xf]
      %v895 = vld [vmem:[%s883 + $0x2c] sm:$0xf]
      %v896 = vld [vmem:[%s883 + $0x30] sm:$0xf]
      %v897 = vld [vmem:[%s883 + $0x34] sm:$0xf]
      %v898 = vld [vmem:[%s883 + $0x38] sm:$0xf]
      %v899 = vld [vmem:[%s883 + $0x3c] sm:$0xf]
      %v900 = vld [vmem:[%s883 + $0x40] sm:$0xf]
      %v901 = vld [vmem:[%s883 + $0x44] sm:$0xf]
      %v902 = vld [vmem:[%s883 + $0x48] sm:$0xf]
      %v903 = vld [vmem:[%s883 + $0x4c] sm:$0xf]
      %v904 = vld [vmem:[%s883 + $0x50] sm:$0xf]
      %v905 = vld [vmem:[%s883 + $0x54] sm:$0xf]
      %v906 = vld [vmem:[%s883 + $0x58] sm:$0xf]
      %v907 = vld [vmem:[%s883 + $0x5c] sm:$0xf]
      %v908 = vld [vmem:[%s883 + $0x60] sm:$0xf]
      %v909 = vld [vmem:[%s883 + $0x64] sm:$0xf]
      %v910 = vld [vmem:[%s883 + $0x68] sm:$0xf]
      %v911 = vld [vmem:[%s883 + $0x6c] sm:$0xf]
      %v912 = vld [vmem:[%s883 + $0x70] sm:$0xf]
      %v913 = vld [vmem:[%s883 + $0x74] sm:$0xf]
      %v914 = vld [vmem:[%s883 + $0x78] sm:$0xf]
      %v915 = vld [vmem:[%s883 + $0x7c] sm:$0xf]
      %v916 = vld [vmem:[%s883 + $0x80] sm:$0xf]
      %v917 = vld [vmem:[%s883 + $0x84] sm:$0xf]
      %v918 = vld [vmem:[%s883 + $0x88] sm:$0xf]
      %v919 = vld [vmem:[%s883 + $0x8c] sm:$0xf]
      %v920 = vld [vmem:[%s883 + $0x90] sm:$0xf]
      %v921 = vld [vmem:[%s883 + $0x94] sm:$0xf]
      %v922 = vld [vmem:[%s883 + $0x98] sm:$0xf]
      %v923 = vld [vmem:[%s883 + $0x9c] sm:$0xf]
      %v924 = vld [vmem:[%s883 + $0xa0] sm:$0xf]
      %v925 = vld [vmem:[%s883 + $0xa4] sm:$0xf]
      %v926 = vld [vmem:[%s883 + $0xa8] sm:$0xf]
      %v927 = vld [vmem:[%s883 + $0xac] sm:$0xf]
      %v928 = vld [vmem:[%s883 + $0xb0] sm:$0xf]
      %v929 = vld [vmem:[%s883 + $0xb4] sm:$0xf]
      %v930 = vld [vmem:[%s883 + $0xb8] sm:$0xf]
      %v931 = vld [vmem:[%s883 + $0xbc] sm:$0xf]
      %v980 = vunpack.c.l.b16 %v884
      %v981 = vunpack.c.l.b16 %v885
      %v982 = vunpack.c.l.b16 %v886
      %v983 = vunpack.c.l.b16 %v887
      %v984 = vunpack.c.l.b16 %v888
      %v985 = vunpack.c.l.b16 %v889
      %v986 = vunpack.c.l.b16 %v890
      %v987 = vunpack.c.l.b16 %v891
      %v988 = vunpack.c.l.b16 %v892
      %v989 = vunpack.c.l.b16 %v893
      %v990 = vunpack.c.l.b16 %v894
      %v991 = vunpack.c.l.b16 %v895
      %v992 = vunpack.c.l.b16 %v896
      %v993 = vunpack.c.l.b16 %v897
      %v994 = vunpack.c.l.b16 %v898
      %v995 = vunpack.c.l.b16 %v899
      %v996 = vunpack.c.l.b16 %v900
      %v997 = vunpack.c.l.b16 %v901
      %v998 = vunpack.c.l.b16 %v902
      %v999 = vunpack.c.l.b16 %v903
      %v1000 = vunpack.c.l.b16 %v904
      %v1001 = vunpack.c.l.b16 %v905
      %v1002 = vunpack.c.l.b16 %v906
      %v1003 = vunpack.c.l.b16 %v907
      %v1004 = vunpack.c.l.b16 %v908
      %v1005 = vunpack.c.l.b16 %v909
      %v1006 = vunpack.c.l.b16 %v910
      %v1007 = vunpack.c.l.b16 %v911
      %v1008 = vunpack.c.l.b16 %v912
      %v1009 = vunpack.c.l.b16 %v913
      %v1010 = vunpack.c.l.b16 %v914
      %v1011 = vunpack.c.l.b16 %v915
      %v1012 = vunpack.c.l.b16 %v916
      %v1013 = vunpack.c.l.b16 %v917
      %v1014 = vunpack.c.l.b16 %v918
      %v1015 = vunpack.c.l.b16 %v919
      %v1016 = vunpack.c.l.b16 %v920
      %v1017 = vunpack.c.l.b16 %v921
      %v1018 = vunpack.c.l.b16 %v922
      %v1019 = vunpack.c.l.b16 %v923
      %v1020 = vunpack.c.l.b16 %v924
      %v1021 = vunpack.c.l.b16 %v925
      %v1022 = vunpack.c.l.b16 %v926
      %v1023 = vunpack.c.l.b16 %v927
      %v1024 = vunpack.c.l.b16 %v928
      %v1025 = vunpack.c.l.b16 %v929
      %v1026 = vunpack.c.l.b16 %v930
      %v1027 = vunpack.c.l.b16 %v931
      %v1028 = vpack.c.b16 %v981, %v980
      %v1029 = vpack.c.b16 %v983, %v982
      %v1030 = vpack.c.b16 %v985, %v984
      %v1031 = vpack.c.b16 %v987, %v986
      %v1032 = vpack.c.b16 %v989, %v988
      %v1033 = vpack.c.b16 %v991, %v990
      %v1034 = vpack.c.b16 %v993, %v992
      %v1035 = vpack.c.b16 %v995, %v994
      %v1036 = vpack.c.b16 %v997, %v996
      %v1037 = vpack.c.b16 %v999, %v998
      %v1038 = vpack.c.b16 %v1001, %v1000
      %v1039 = vpack.c.b16 %v1003, %v1002
      %v1040 = vpack.c.b16 %v1005, %v1004
      %v1041 = vpack.c.b16 %v1007, %v1006
      %v1042 = vpack.c.b16 %v1009, %v1008
      %v1043 = vpack.c.b16 %v1011, %v1010
      %v1044 = vpack.c.b16 %v1013, %v1012
      %v1045 = vpack.c.b16 %v1015, %v1014
      %v1046 = vpack.c.b16 %v1017, %v1016
      %v1047 = vpack.c.b16 %v1019, %v1018
      %v1048 = vpack.c.b16 %v1021, %v1020
      %v1049 = vpack.c.b16 %v1023, %v1022
      %v1050 = vpack.c.b16 %v1025, %v1024
      %v1051 = vpack.c.b16 %v1027, %v1026
      %1076 = vmatprep.subr.bf16.mxu0 0
      %1077 = vmatpush1.bf16.msra.mxu0 %v1035
      %1078 = vmatprep.subr.bf16.mxu0 0
      %1079 = vmatpush1.bf16.msra.mxu0 %v1034
      %1080 = vmatprep.subr.bf16.mxu0 0
      %1081 = vmatpush1.bf16.msra.mxu0 %v1033
      %1082 = vmatprep.subr.bf16.mxu0 0
      %1083 = vmatpush1.bf16.msra.mxu0 %v1032
      %1084 = vmatprep.subr.bf16.mxu0 0
      %1085 = vmatpush1.bf16.msra.mxu0 %v1031
      %1086 = vmatprep.subr.bf16.mxu0 0
      %1087 = vmatpush1.bf16.msra.mxu0 %v1030
      %1088 = vmatprep.subr.bf16.mxu0 0
      %1089 = vmatpush1.bf16.msra.mxu0 %v1029
      %1090 = vmatprep.subr.bf16.mxu0 0
      %1091 = vmatpush1.bf16.msra.mxu0 %v1028
      %1092 = vmatprep.subr.bf16.mxu0 0
      %1093 = vmatpush2.bf16.msra.mxu0 %v1043
      %1094 = vmatprep.subr.bf16.mxu0 0
      %1095 = vmatpush2.bf16.msra.mxu0 %v1042
      %1096 = vmatprep.subr.bf16.mxu0 0
      %1097 = vmatpush2.bf16.msra.mxu0 %v1041
      %1098 = vmatprep.subr.bf16.mxu0 0
      %1099 = vmatpush2.bf16.msra.mxu0 %v1040
      %1100 = vmatprep.subr.bf16.mxu0 0
      %1101 = vmatpush2.bf16.msra.mxu0 %v1039
      %1102 = vmatprep.subr.bf16.mxu0 0
      %1103 = vmatpush2.bf16.msra.mxu0 %v1038
      %1104 = vmatprep.subr.bf16.mxu0 0
      %1105 = vmatpush2.bf16.msra.mxu0 %v1037
      %1106 = vmatprep.subr.bf16.mxu0 0
      %1107 = vmatpush2.bf16.msra.mxu0 %v1036
      %1108 = vmatprep.mubr.bf16.mxu0 %v836
      %1109 = vmatmul.mubr.bf16.gmra.mxu0 %v835
      %v1110 = vpop.f32.mrf.mxu0
      %v1111 = vadd.f32 0.0, %v1110
      %v1112 = vpop.f32.mrf.mxu0
      %v1113 = vpop.f32.mrf.mxu0
      %v1114 = vadd.f32 0.0, %v1113
      %v1115 = vpop.f32.mrf.mxu0
      %1116 = vmatprep.mubr.bf16.mxu0 %v839
      %1117 = vmatmul.mubr.bf16.gmra.mxu0 %v838
      %v1118 = vpop.f32.mrf.mxu0
      %v1119 = vadd.f32 0.0, %v1118
      %v1120 = vpop.f32.mrf.mxu0
      %v1121 = vpop.f32.mrf.mxu0
      %v1122 = vadd.f32 0.0, %v1121
      %v1123 = vpop.f32.mrf.mxu0
      %1124 = vmatprep.mubr.bf16.mxu0 %v842
      %1125 = vmatmul.mubr.bf16.gmra.mxu0 %v841
      %v1126 = vpop.f32.mrf.mxu0
      %v1127 = vadd.f32 0.0, %v1126
      %v1128 = vpop.f32.mrf.mxu0
      %v1129 = vpop.f32.mrf.mxu0
      %v1130 = vadd.f32 0.0, %v1129
      %v1131 = vpop.f32.mrf.mxu0
      %1132 = vmatprep.mubr.bf16.mxu0 %v845
      %1133 = vmatmul.mubr.bf16.gmra.mxu0 %v844
      %v1134 = vpop.f32.mrf.mxu0
      %v1135 = vadd.f32 0.0, %v1134
      %v1136 = vpop.f32.mrf.mxu0
      %v1137 = vpop.f32.mrf.mxu0
      %v1138 = vadd.f32 0.0, %v1137
      %v1139 = vpop.f32.mrf.mxu0
      %1140 = vmatprep.mubr.bf16.mxu0 %v848
      %1141 = vmatmul.mubr.bf16.gmra.mxu0 %v847
      %v1142 = vpop.f32.mrf.mxu0
      %v1143 = vadd.f32 0.0, %v1142
      %v1144 = vpop.f32.mrf.mxu0
      %v1145 = vpop.f32.mrf.mxu0
      %v1146 = vadd.f32 0.0, %v1145
      %v1147 = vpop.f32.mrf.mxu0
      %1148 = vmatprep.mubr.bf16.mxu0 %v851
      %1149 = vmatmul.mubr.bf16.gmra.mxu0 %v850
      %v1150 = vpop.f32.mrf.mxu0
      %v1151 = vadd.f32 0.0, %v1150
      %v1152 = vpop.f32.mrf.mxu0
      %v1153 = vpop.f32.mrf.mxu0
      %v1154 = vadd.f32 0.0, %v1153
      %v1155 = vpop.f32.mrf.mxu0
      %1156 = vmatprep.mubr.bf16.mxu0 %v854
      %1157 = vmatmul.mubr.bf16.gmra.mxu0 %v853
      %v1158 = vpop.f32.mrf.mxu0
      %v1159 = vadd.f32 0.0, %v1158
      %v1160 = vpop.f32.mrf.mxu0
      %v1161 = vpop.f32.mrf.mxu0
      %v1162 = vadd.f32 0.0, %v1161
      %v1163 = vpop.f32.mrf.mxu0
      %1164 = vmatprep.mubr.bf16.mxu0 %v857
      %1165 = vmatmul.mubr.bf16.gmra.mxu0 %v856
      %v1166 = vpop.f32.mrf.mxu0
      %v1167 = vadd.f32 0.0, %v1166
      %v1168 = vpop.f32.mrf.mxu0
      %v1169 = vpop.f32.mrf.mxu0
      %v1170 = vadd.f32 0.0, %v1169
      %v1171 = vpop.f32.mrf.mxu0
      %1172 = vmatprep.mubr.bf16.mxu0 %v860
      %1173 = vmatmul.mubr.bf16.gmra.mxu0 %v859
      %v1174 = vpop.f32.mrf.mxu0
      %v1175 = vadd.f32 0.0, %v1174
      %v1176 = vpop.f32.mrf.mxu0
      %v1177 = vpop.f32.mrf.mxu0
      %v1178 = vadd.f32 0.0, %v1177
      %v1179 = vpop.f32.mrf.mxu0
      %1180 = vmatprep.mubr.bf16.mxu0 %v863
      %1181 = vmatmul.mubr.bf16.gmra.mxu0 %v862
      %v1182 = vpop.f32.mrf.mxu0
      %v1183 = vadd.f32 0.0, %v1182
      %v1184 = vpop.f32.mrf.mxu0
      %v1185 = vpop.f32.mrf.mxu0
      %v1186 = vadd.f32 0.0, %v1185
      %v1187 = vpop.f32.mrf.mxu0
      %1188 = vmatprep.mubr.bf16.mxu0 %v866
      %1189 = vmatmul.mubr.bf16.gmra.mxu0 %v865
      %v1190 = vpop.f32.mrf.mxu0
      %v1191 = vadd.f32 0.0, %v1190
      %v1192 = vpop.f32.mrf.mxu0
      %v1193 = vpop.f32.mrf.mxu0
      %v1194 = vadd.f32 0.0, %v1193
      %v1195 = vpop.f32.mrf.mxu0
      %1196 = vmatprep.mubr.bf16.mxu0 %v869
      %1197 = vmatmul.mubr.bf16.gmra.mxu0 %v868
      %v1198 = vpop.f32.mrf.mxu0
      %v1199 = vadd.f32 0.0, %v1198
      %v1200 = vpop.f32.mrf.mxu0
      %v1201 = vpop.f32.mrf.mxu0
      %v1202 = vadd.f32 0.0, %v1201
      %v1203 = vpop.f32.mrf.mxu0
      %1204 = vmatprep.mubr.bf16.mxu0 %v872
      %1205 = vmatmul.mubr.bf16.gmra.mxu0 %v871
      %v1206 = vpop.f32.mrf.mxu0
      %v1207 = vadd.f32 0.0, %v1206
      %v1208 = vpop.f32.mrf.mxu0
      %v1209 = vpop.f32.mrf.mxu0
      %v1210 = vadd.f32 0.0, %v1209
      %v1211 = vpop.f32.mrf.mxu0
      %1212 = vmatprep.mubr.bf16.mxu0 %v875
      %1213 = vmatmul.mubr.bf16.gmra.mxu0 %v874
      %v1214 = vpop.f32.mrf.mxu0
      %v1215 = vadd.f32 0.0, %v1214
      %v1216 = vpop.f32.mrf.mxu0
      %v1217 = vpop.f32.mrf.mxu0
      %v1218 = vadd.f32 0.0, %v1217
      %v1219 = vpop.f32.mrf.mxu0
      %1220 = vmatprep.mubr.bf16.mxu0 %v878
      %1221 = vmatmul.mubr.bf16.gmra.mxu0 %v877
      %v1222 = vpop.f32.mrf.mxu0
      %v1223 = vadd.f32 0.0, %v1222
      %v1224 = vpop.f32.mrf.mxu0
      %v1225 = vpop.f32.mrf.mxu0
      %v1226 = vadd.f32 0.0, %v1225
      %v1227 = vpop.f32.mrf.mxu0
      %1228 = vmatprep.mubr.bf16.mxu0 %v881
      %1229 = vmatmul.mubr.bf16.gmra.mxu0 %v880
      %v1230 = vpop.f32.mrf.mxu0
      %v1231 = vadd.f32 0.0, %v1230
      %v1232 = vpop.f32.mrf.mxu0
      %v1233 = vpop.f32.mrf.mxu0
      %v1234 = vadd.f32 0.0, %v1233
      %v1235 = vpop.f32.mrf.mxu0
      %1236 = vdwg.mxu0
      %1237 = vmatprep.subr.bf16.mxu0 0
      %1238 = vmatpush1.bf16.msra.mxu0 %v1051
      %1239 = vmatprep.subr.bf16.mxu0 0
      %1240 = vmatpush1.bf16.msra.mxu0 %v1050
      %1241 = vmatprep.subr.bf16.mxu0 0
      %1242 = vmatpush1.bf16.msra.mxu0 %v1049
      %1243 = vmatprep.subr.bf16.mxu0 0
      %1244 = vmatpush1.bf16.msra.mxu0 %v1048
      %1245 = vmatprep.subr.bf16.mxu0 0
      %1246 = vmatpush1.bf16.msra.mxu0 %v1047
      %1247 = vmatprep.subr.bf16.mxu0 0
      %1248 = vmatpush1.bf16.msra.mxu0 %v1046
      %1249 = vmatprep.subr.bf16.mxu0 0
      %1250 = vmatpush1.bf16.msra.mxu0 %v1045
      %1251 = vmatprep.subr.bf16.mxu0 0
      %1252 = vmatpush1.bf16.msra.mxu0 %v1044
      %1253 = vmatprep.subr.bf16.mxu0 0
      %1254 = vmatpush2.bf16.msra.mxu0 0
      %1255 = vmatprep.subr.bf16.mxu0 0
      %1256 = vmatpush2.bf16.msra.mxu0 0
      %1257 = vmatprep.subr.bf16.mxu0 0
      %1258 = vmatpush2.bf16.msra.mxu0 0
      %1259 = vmatprep.subr.bf16.mxu0 0
      %1260 = vmatpush2.bf16.msra.mxu0 0
      %1261 = vmatprep.subr.bf16.mxu0 0
      %1262 = vmatpush2.bf16.msra.mxu0 0
      %1263 = vmatprep.subr.bf16.mxu0 0
      %1264 = vmatpush2.bf16.msra.mxu0 0
      %1265 = vmatprep.subr.bf16.mxu0 0
      %1266 = vmatpush2.bf16.msra.mxu0 0
      %1267 = vmatprep.subr.bf16.mxu0 0
      %1268 = vmatpush2.bf16.msra.mxu0 0
      %1269 = vmatprep.mubr.bf16.mxu0 0
      %1270 = vmatmul.mubr.bf16.gmra.mxu0 %v837
      %v1271 = vpop.f32.mrf.mxu0
      %v1272 = vadd.f32 %v1111, %v1271
      %v1273 = vpop.f32.mrf.mxu0
      %v1274 = vpop.f32.mrf.mxu0
      %v1275 = vadd.f32 %v1114, %v1274
      %v1276 = vpop.f32.mrf.mxu0
      %1277 = vmatprep.mubr.bf16.mxu0 0
      %1278 = vmatmul.mubr.bf16.gmra.mxu0 %v840
      %v1279 = vpop.f32.mrf.mxu0
      %v1280 = vadd.f32 %v1119, %v1279
      %v1281 = vpop.f32.mrf.mxu0
      %v1282 = vpop.f32.mrf.mxu0
      %v1283 = vadd.f32 %v1122, %v1282
      %v1284 = vpop.f32.mrf.mxu0
      %1285 = vmatprep.mubr.bf16.mxu0 0
      %1286 = vmatmul.mubr.bf16.gmra.mxu0 %v843
      %v1287 = vpop.f32.mrf.mxu0
      %v1288 = vadd.f32 %v1127, %v1287
      %v1289 = vpop.f32.mrf.mxu0
      %v1290 = vpop.f32.mrf.mxu0
      %v1291 = vadd.f32 %v1130, %v1290
      %v1292 = vpop.f32.mrf.mxu0
      %1293 = vmatprep.mubr.bf16.mxu0 0
      %1294 = vmatmul.mubr.bf16.gmra.mxu0 %v846
      %v1295 = vpop.f32.mrf.mxu0
      %v1296 = vadd.f32 %v1135, %v1295
      %v1297 = vpop.f32.mrf.mxu0
      %v1298 = vpop.f32.mrf.mxu0
      %v1299 = vadd.f32 %v1138, %v1298
      %v1300 = vpop.f32.mrf.mxu0
      %1301 = vmatprep.mubr.bf16.mxu0 0
      %1302 = vmatmul.mubr.bf16.gmra.mxu0 %v849
      %v1303 = vpop.f32.mrf.mxu0
      %v1304 = vadd.f32 %v1143, %v1303
      %v1305 = vpop.f32.mrf.mxu0
      %v1306 = vpop.f32.mrf.mxu0
      %v1307 = vadd.f32 %v1146, %v1306
      %v1308 = vpop.f32.mrf.mxu0
      %1309 = vmatprep.mubr.bf16.mxu0 0
      %1310 = vmatmul.mubr.bf16.gmra.mxu0 %v852
      %v1311 = vpop.f32.mrf.mxu0
      %v1312 = vadd.f32 %v1151, %v1311
      %v1313 = vpop.f32.mrf.mxu0
      %v1314 = vpop.f32.mrf.mxu0
      %v1315 = vadd.f32 %v1154, %v1314
      %v1316 = vpop.f32.mrf.mxu0
      %1317 = vmatprep.mubr.bf16.mxu0 0
      %1318 = vmatmul.mubr.bf16.gmra.mxu0 %v855
      %v1319 = vpop.f32.mrf.mxu0
      %v1320 = vadd.f32 %v1159, %v1319
      %v1321 = vpop.f32.mrf.mxu0
      %v1322 = vpop.f32.mrf.mxu0
      %v1323 = vadd.f32 %v1162, %v1322
      %v1324 = vpop.f32.mrf.mxu0
      %1325 = vmatprep.mubr.bf16.mxu0 0
      %1326 = vmatmul.mubr.bf16.gmra.mxu0 %v858
      %v1327 = vpop.f32.mrf.mxu0
      %v1328 = vadd.f32 %v1167, %v1327
      %v1329 = vpop.f32.mrf.mxu0
      %v1330 = vpop.f32.mrf.mxu0
      %v1331 = vadd.f32 %v1170, %v1330
      %v1332 = vpop.f32.mrf.mxu0
      %1333 = vmatprep.mubr.bf16.mxu0 0
      %1334 = vmatmul.mubr.bf16.gmra.mxu0 %v861
      %v1335 = vpop.f32.mrf.mxu0
      %v1336 = vadd.f32 %v1175, %v1335
      %v1337 = vpop.f32.mrf.mxu0
      %v1338 = vpop.f32.mrf.mxu0
      %v1339 = vadd.f32 %v1178, %v1338
      %v1340 = vpop.f32.mrf.mxu0
      %1341 = vmatprep.mubr.bf16.mxu0 0
      %1342 = vmatmul.mubr.bf16.gmra.mxu0 %v864
      %v1343 = vpop.f32.mrf.mxu0
      %v1344 = vadd.f32 %v1183, %v1343
      %v1345 = vpop.f32.mrf.mxu0
      %v1346 = vpop.f32.mrf.mxu0
      %v1347 = vadd.f32 %v1186, %v1346
      %v1348 = vpop.f32.mrf.mxu0
      %1349 = vmatprep.mubr.bf16.mxu0 0
      %1350 = vmatmul.mubr.bf16.gmra.mxu0 %v867
      %v1351 = vpop.f32.mrf.mxu0
      %v1352 = vadd.f32 %v1191, %v1351
      %v1353 = vpop.f32.mrf.mxu0
      %v1354 = vpop.f32.mrf.mxu0
      %v1355 = vadd.f32 %v1194, %v1354
      %v1356 = vpop.f32.mrf.mxu0
      %1357 = vmatprep.mubr.bf16.mxu0 0
      %1358 = vmatmul.mubr.bf16.gmra.mxu0 %v870
      %v1359 = vpop.f32.mrf.mxu0
      %v1360 = vadd.f32 %v1199, %v1359
      %v1361 = vpop.f32.mrf.mxu0
      %v1362 = vpop.f32.mrf.mxu0
      %v1363 = vadd.f32 %v1202, %v1362
      %v1364 = vpop.f32.mrf.mxu0
      %1365 = vmatprep.mubr.bf16.mxu0 0
      %1366 = vmatmul.mubr.bf16.gmra.mxu0 %v873
      %v1367 = vpop.f32.mrf.mxu0
      %v1368 = vadd.f32 %v1207, %v1367
      %v1369 = vpop.f32.mrf.mxu0
      %v1370 = vpop.f32.mrf.mxu0
      %v1371 = vadd.f32 %v1210, %v1370
      %v1372 = vpop.f32.mrf.mxu0
      %1373 = vmatprep.mubr.bf16.mxu0 0
      %1374 = vmatmul.mubr.bf16.gmra.mxu0 %v876
      %v1375 = vpop.f32.mrf.mxu0
      %v1376 = vadd.f32 %v1215, %v1375
      %v1377 = vpop.f32.mrf.mxu0
      %v1378 = vpop.f32.mrf.mxu0
      %v1379 = vadd.f32 %v1218, %v1378
      %v1380 = vpop.f32.mrf.mxu0
      %1381 = vmatprep.mubr.bf16.mxu0 0
      %1382 = vmatmul.mubr.bf16.gmra.mxu0 %v879
      %v1383 = vpop.f32.mrf.mxu0
      %v1384 = vadd.f32 %v1223, %v1383
      %v1385 = vpop.f32.mrf.mxu0
      %v1386 = vpop.f32.mrf.mxu0
      %v1387 = vadd.f32 %v1226, %v1386
      %v1388 = vpop.f32.mrf.mxu0
      %1389 = vmatprep.mubr.bf16.mxu0 0
      %1390 = vmatmul.mubr.bf16.gmra.mxu0 %v882
      %v1391 = vpop.f32.mrf.mxu0
      %v1392 = vadd.f32 %v1231, %v1391
      %v1393 = vpop.f32.mrf.mxu0
      %v1394 = vpop.f32.mrf.mxu0
      %v1395 = vadd.f32 %v1234, %v1394
      %v1396 = vpop.f32.mrf.mxu0
      %1397 = vdwg.mxu0
      %v1446 = vunpack.c.l.b16 %v691
      %v1447 = vunpack.c.l.b16 %v692
      %v1448 = vunpack.c.l.b16 %v693
      %v1449 = vunpack.c.l.b16 %v694
      %v1450 = vunpack.c.l.b16 %v695
      %v1451 = vunpack.c.l.b16 %v696
      %v1452 = vunpack.c.l.b16 %v697
      %v1453 = vunpack.c.l.b16 %v698
      %v1454 = vunpack.c.l.b16 %v699
      %v1455 = vunpack.c.l.b16 %v700
      %v1456 = vunpack.c.l.b16 %v701
      %v1457 = vunpack.c.l.b16 %v702
      %v1458 = vunpack.c.l.b16 %v703
      %v1459 = vunpack.c.l.b16 %v704
      %v1460 = vunpack.c.l.b16 %v705
      %v1461 = vunpack.c.l.b16 %v706
      %v1462 = vunpack.c.l.b16 %v707
      %v1463 = vunpack.c.l.b16 %v708
      %v1464 = vunpack.c.l.b16 %v709
      %v1465 = vunpack.c.l.b16 %v710
      %v1466 = vunpack.c.l.b16 %v711
      %v1467 = vunpack.c.l.b16 %v712
      %v1468 = vunpack.c.l.b16 %v713
      %v1469 = vunpack.c.l.b16 %v714
      %v1470 = vunpack.c.l.b16 %v715
      %v1471 = vunpack.c.l.b16 %v716
      %v1472 = vunpack.c.l.b16 %v717
      %v1473 = vunpack.c.l.b16 %v718
      %v1474 = vunpack.c.l.b16 %v719
      %v1475 = vunpack.c.l.b16 %v720
      %v1476 = vunpack.c.l.b16 %v721
      %v1477 = vunpack.c.l.b16 %v722
      %v1478 = vunpack.c.l.b16 %v723
      %v1479 = vunpack.c.l.b16 %v724
      %v1480 = vunpack.c.l.b16 %v725
      %v1481 = vunpack.c.l.b16 %v726
      %v1482 = vunpack.c.l.b16 %v727
      %v1483 = vunpack.c.l.b16 %v728
      %v1484 = vunpack.c.l.b16 %v729
      %v1485 = vunpack.c.l.b16 %v730
      %v1486 = vunpack.c.l.b16 %v731
      %v1487 = vunpack.c.l.b16 %v732
      %v1488 = vunpack.c.l.b16 %v733
      %v1489 = vunpack.c.l.b16 %v734
      %v1490 = vunpack.c.l.b16 %v735
      %v1491 = vunpack.c.l.b16 %v736
      %v1492 = vunpack.c.l.b16 %v737
      %v1493 = vunpack.c.l.b16 %v738
      %v1494 = vpack.c.b16 %v1447, %v1446
      %v1495 = vpack.c.b16 %v1449, %v1448
      %v1496 = vpack.c.b16 %v1451, %v1450
      %v1497 = vpack.c.b16 %v1453, %v1452
      %v1498 = vpack.c.b16 %v1455, %v1454
      %v1499 = vpack.c.b16 %v1457, %v1456
      %v1500 = vpack.c.b16 %v1459, %v1458
      %v1501 = vpack.c.b16 %v1461, %v1460
      %v1502 = vpack.c.b16 %v1463, %v1462
      %v1503 = vpack.c.b16 %v1465, %v1464
      %v1504 = vpack.c.b16 %v1467, %v1466
      %v1505 = vpack.c.b16 %v1469, %v1468
      %v1506 = vpack.c.b16 %v1471, %v1470
      %v1507 = vpack.c.b16 %v1473, %v1472
      %v1508 = vpack.c.b16 %v1475, %v1474
      %v1509 = vpack.c.b16 %v1477, %v1476
      %v1510 = vpack.c.b16 %v1479, %v1478
      %v1511 = vpack.c.b16 %v1481, %v1480
      %v1512 = vpack.c.b16 %v1483, %v1482
      %v1513 = vpack.c.b16 %v1485, %v1484
      %v1514 = vpack.c.b16 %v1487, %v1486
      %v1515 = vpack.c.b16 %v1489, %v1488
      %v1516 = vpack.c.b16 %v1491, %v1490
      %v1517 = vpack.c.b16 %v1493, %v1492
      %1542 = vmatprep.subr.bf16.mxu0 0
      %1543 = vmatpush1.bf16.msra.mxu0 %v1501
      %1544 = vmatprep.subr.bf16.mxu0 0
      %1545 = vmatpush1.bf16.msra.mxu0 %v1500
      %1546 = vmatprep.subr.bf16.mxu0 0
      %1547 = vmatpush1.bf16.msra.mxu0 %v1499
      %1548 = vmatprep.subr.bf16.mxu0 0
      %1549 = vmatpush1.bf16.msra.mxu0 %v1498
      %1550 = vmatprep.subr.bf16.mxu0 0
      %1551 = vmatpush1.bf16.msra.mxu0 %v1497
      %1552 = vmatprep.subr.bf16.mxu0 0
      %1553 = vmatpush1.bf16.msra.mxu0 %v1496
      %1554 = vmatprep.subr.bf16.mxu0 0
      %1555 = vmatpush1.bf16.msra.mxu0 %v1495
      %1556 = vmatprep.subr.bf16.mxu0 0
      %1557 = vmatpush1.bf16.msra.mxu0 %v1494
      %1558 = vmatprep.subr.bf16.mxu0 0
      %1559 = vmatpush2.bf16.msra.mxu0 %v1509
      %1560 = vmatprep.subr.bf16.mxu0 0
      %1561 = vmatpush2.bf16.msra.mxu0 %v1508
      %1562 = vmatprep.subr.bf16.mxu0 0
      %1563 = vmatpush2.bf16.msra.mxu0 %v1507
      %1564 = vmatprep.subr.bf16.mxu0 0
      %1565 = vmatpush2.bf16.msra.mxu0 %v1506
      %1566 = vmatprep.subr.bf16.mxu0 0
      %1567 = vmatpush2.bf16.msra.mxu0 %v1505
      %1568 = vmatprep.subr.bf16.mxu0 0
      %1569 = vmatpush2.bf16.msra.mxu0 %v1504
      %1570 = vmatprep.subr.bf16.mxu0 0
      %1571 = vmatpush2.bf16.msra.mxu0 %v1503
      %1572 = vmatprep.subr.bf16.mxu0 0
      %1573 = vmatpush2.bf16.msra.mxu0 %v1502
      %1574 = vmatprep.mubr.bf16.mxu0 %v644
      %1575 = vmatmul.mubr.bf16.gmra.mxu0 %v643
      %v1576 = vpop.f32.mrf.mxu0
      %v1577 = vadd.f32 %v1272, %v1576
      %v1578 = vpop.f32.mrf.mxu0
      %v1579 = vpop.f32.mrf.mxu0
      %v1580 = vadd.f32 %v1275, %v1579
      %v1581 = vpop.f32.mrf.mxu0
      %1582 = vmatprep.mubr.bf16.mxu0 %v647
      %1583 = vmatmul.mubr.bf16.gmra.mxu0 %v646
      %v1584 = vpop.f32.mrf.mxu0
      %v1585 = vadd.f32 %v1280, %v1584
      %v1586 = vpop.f32.mrf.mxu0
      %v1587 = vpop.f32.mrf.mxu0
      %v1588 = vadd.f32 %v1283, %v1587
      %v1589 = vpop.f32.mrf.mxu0
      %1590 = vmatprep.mubr.bf16.mxu0 %v650
      %1591 = vmatmul.mubr.bf16.gmra.mxu0 %v649
      %v1592 = vpop.f32.mrf.mxu0
      %v1593 = vadd.f32 %v1288, %v1592
      %v1594 = vpop.f32.mrf.mxu0
      %v1595 = vpop.f32.mrf.mxu0
      %v1596 = vadd.f32 %v1291, %v1595
      %v1597 = vpop.f32.mrf.mxu0
      %1598 = vmatprep.mubr.bf16.mxu0 %v653
      %1599 = vmatmul.mubr.bf16.gmra.mxu0 %v652
      %v1600 = vpop.f32.mrf.mxu0
      %v1601 = vadd.f32 %v1296, %v1600
      %v1602 = vpop.f32.mrf.mxu0
      %v1603 = vpop.f32.mrf.mxu0
      %v1604 = vadd.f32 %v1299, %v1603
      %v1605 = vpop.f32.mrf.mxu0
      %1606 = vmatprep.mubr.bf16.mxu0 %v656
      %1607 = vmatmul.mubr.bf16.gmra.mxu0 %v655
      %v1608 = vpop.f32.mrf.mxu0
      %v1609 = vadd.f32 %v1304, %v1608
      %v1610 = vpop.f32.mrf.mxu0
      %v1611 = vpop.f32.mrf.mxu0
      %v1612 = vadd.f32 %v1307, %v1611
      %v1613 = vpop.f32.mrf.mxu0
      %1614 = vmatprep.mubr.bf16.mxu0 %v659
      %1615 = vmatmul.mubr.bf16.gmra.mxu0 %v658
      %v1616 = vpop.f32.mrf.mxu0
      %v1617 = vadd.f32 %v1312, %v1616
      %v1618 = vpop.f32.mrf.mxu0
      %v1619 = vpop.f32.mrf.mxu0
      %v1620 = vadd.f32 %v1315, %v1619
      %v1621 = vpop.f32.mrf.mxu0
      %1622 = vmatprep.mubr.bf16.mxu0 %v662
      %1623 = vmatmul.mubr.bf16.gmra.mxu0 %v661
      %v1624 = vpop.f32.mrf.mxu0
      %v1625 = vadd.f32 %v1320, %v1624
      %v1626 = vpop.f32.mrf.mxu0
      %v1627 = vpop.f32.mrf.mxu0
      %v1628 = vadd.f32 %v1323, %v1627
      %v1629 = vpop.f32.mrf.mxu0
      %1630 = vmatprep.mubr.bf16.mxu0 %v665
      %1631 = vmatmul.mubr.bf16.gmra.mxu0 %v664
      %v1632 = vpop.f32.mrf.mxu0
      %v1633 = vadd.f32 %v1328, %v1632
      %v1634 = vpop.f32.mrf.mxu0
      %v1635 = vpop.f32.mrf.mxu0
      %v1636 = vadd.f32 %v1331, %v1635
      %v1637 = vpop.f32.mrf.mxu0
      %1638 = vmatprep.mubr.bf16.mxu0 %v668
      %1639 = vmatmul.mubr.bf16.gmra.mxu0 %v667
      %v1640 = vpop.f32.mrf.mxu0
      %v1641 = vadd.f32 %v1336, %v1640
      %v1642 = vpop.f32.mrf.mxu0
      %v1643 = vpop.f32.mrf.mxu0
      %v1644 = vadd.f32 %v1339, %v1643
      %v1645 = vpop.f32.mrf.mxu0
      %1646 = vmatprep.mubr.bf16.mxu0 %v671
      %1647 = vmatmul.mubr.bf16.gmra.mxu0 %v670
      %v1648 = vpop.f32.mrf.mxu0
      %v1649 = vadd.f32 %v1344, %v1648
      %v1650 = vpop.f32.mrf.mxu0
      %v1651 = vpop.f32.mrf.mxu0
      %v1652 = vadd.f32 %v1347, %v1651
      %v1653 = vpop.f32.mrf.mxu0
      %1654 = vmatprep.mubr.bf16.mxu0 %v674
      %1655 = vmatmul.mubr.bf16.gmra.mxu0 %v673
      %v1656 = vpop.f32.mrf.mxu0
      %v1657 = vadd.f32 %v1352, %v1656
      %v1658 = vpop.f32.mrf.mxu0
      %v1659 = vpop.f32.mrf.mxu0
      %v1660 = vadd.f32 %v1355, %v1659
      %v1661 = vpop.f32.mrf.mxu0
      %1662 = vmatprep.mubr.bf16.mxu0 %v677
      %1663 = vmatmul.mubr.bf16.gmra.mxu0 %v676
      %v1664 = vpop.f32.mrf.mxu0
      %v1665 = vadd.f32 %v1360, %v1664
      %v1666 = vpop.f32.mrf.mxu0
      %v1667 = vpop.f32.mrf.mxu0
      %v1668 = vadd.f32 %v1363, %v1667
      %v1669 = vpop.f32.mrf.mxu0
      %1670 = vmatprep.mubr.bf16.mxu0 %v680
      %1671 = vmatmul.mubr.bf16.gmra.mxu0 %v679
      %v1672 = vpop.f32.mrf.mxu0
      %v1673 = vadd.f32 %v1368, %v1672
      %v1674 = vpop.f32.mrf.mxu0
      %v1675 = vpop.f32.mrf.mxu0
      %v1676 = vadd.f32 %v1371, %v1675
      %v1677 = vpop.f32.mrf.mxu0
      %1678 = vmatprep.mubr.bf16.mxu0 %v683
      %1679 = vmatmul.mubr.bf16.gmra.mxu0 %v682
      %v1680 = vpop.f32.mrf.mxu0
      %v1681 = vadd.f32 %v1376, %v1680
      %v1682 = vpop.f32.mrf.mxu0
      %v1683 = vpop.f32.mrf.mxu0
      %v1684 = vadd.f32 %v1379, %v1683
      %v1685 = vpop.f32.mrf.mxu0
      %1686 = vmatprep.mubr.bf16.mxu0 %v686
      %1687 = vmatmul.mubr.bf16.gmra.mxu0 %v685
      %v1688 = vpop.f32.mrf.mxu0
      %v1689 = vadd.f32 %v1384, %v1688
      %v1690 = vpop.f32.mrf.mxu0
      %v1691 = vpop.f32.mrf.mxu0
      %v1692 = vadd.f32 %v1387, %v1691
      %v1693 = vpop.f32.mrf.mxu0
      %1694 = vmatprep.mubr.bf16.mxu0 %v689
      %1695 = vmatmul.mubr.bf16.gmra.mxu0 %v688
      %v1696 = vpop.f32.mrf.mxu0
      %v1697 = vadd.f32 %v1392, %v1696
      %v1698 = vpop.f32.mrf.mxu0
      %v1699 = vpop.f32.mrf.mxu0
      %v1700 = vadd.f32 %v1395, %v1699
      %v1701 = vpop.f32.mrf.mxu0
      %1702 = vdwg.mxu0
      %1703 = vmatprep.subr.bf16.mxu0 0
      %1704 = vmatpush1.bf16.msra.mxu0 %v1517
      %1705 = vmatprep.subr.bf16.mxu0 0
      %1706 = vmatpush1.bf16.msra.mxu0 %v1516
      %1707 = vmatprep.subr.bf16.mxu0 0
      %1708 = vmatpush1.bf16.msra.mxu0 %v1515
      %1709 = vmatprep.subr.bf16.mxu0 0
      %1710 = vmatpush1.bf16.msra.mxu0 %v1514
      %1711 = vmatprep.subr.bf16.mxu0 0
      %1712 = vmatpush1.bf16.msra.mxu0 %v1513
      %1713 = vmatprep.subr.bf16.mxu0 0
      %1714 = vmatpush1.bf16.msra.mxu0 %v1512
      %1715 = vmatprep.subr.bf16.mxu0 0
      %1716 = vmatpush1.bf16.msra.mxu0 %v1511
      %1717 = vmatprep.subr.bf16.mxu0 0
      %1718 = vmatpush1.bf16.msra.mxu0 %v1510
      %1719 = vmatprep.subr.bf16.mxu0 0
      %1720 = vmatpush2.bf16.msra.mxu0 0
      %1721 = vmatprep.subr.bf16.mxu0 0
      %1722 = vmatpush2.bf16.msra.mxu0 0
      %1723 = vmatprep.subr.bf16.mxu0 0
      %1724 = vmatpush2.bf16.msra.mxu0 0
      %1725 = vmatprep.subr.bf16.mxu0 0
      %1726 = vmatpush2.bf16.msra.mxu0 0
      %1727 = vmatprep.subr.bf16.mxu0 0
      %1728 = vmatpush2.bf16.msra.mxu0 0
      %1729 = vmatprep.subr.bf16.mxu0 0
      %1730 = vmatpush2.bf16.msra.mxu0 0
      %1731 = vmatprep.subr.bf16.mxu0 0
      %1732 = vmatpush2.bf16.msra.mxu0 0
      %1733 = vmatprep.subr.bf16.mxu0 0
      %1734 = vmatpush2.bf16.msra.mxu0 0
      %1735 = vmatprep.mubr.bf16.mxu0 0
      %1736 = vmatmul.mubr.bf16.gmra.mxu0 %v645
      %v1737 = vpop.f32.mrf.mxu0
      %v1738 = vadd.f32 %v1577, %v1737
      %v1739 = vpop.f32.mrf.mxu0
      %v1740 = vpop.f32.mrf.mxu0
      %v1741 = vadd.f32 %v1580, %v1740
      %v1742 = vpop.f32.mrf.mxu0
      %1743 = vmatprep.mubr.bf16.mxu0 0
      %1744 = vmatmul.mubr.bf16.gmra.mxu0 %v648
      %v1745 = vpop.f32.mrf.mxu0
      %v1746 = vadd.f32 %v1585, %v1745
      %v1747 = vpop.f32.mrf.mxu0
      %v1748 = vpop.f32.mrf.mxu0
      %v1749 = vadd.f32 %v1588, %v1748
      %v1750 = vpop.f32.mrf.mxu0
      %1751 = vmatprep.mubr.bf16.mxu0 0
      %1752 = vmatmul.mubr.bf16.gmra.mxu0 %v651
      %v1753 = vpop.f32.mrf.mxu0
      %v1754 = vadd.f32 %v1593, %v1753
      %v1755 = vpop.f32.mrf.mxu0
      %v1756 = vpop.f32.mrf.mxu0
      %v1757 = vadd.f32 %v1596, %v1756
      %v1758 = vpop.f32.mrf.mxu0
      %1759 = vmatprep.mubr.bf16.mxu0 0
      %1760 = vmatmul.mubr.bf16.gmra.mxu0 %v654
      %v1761 = vpop.f32.mrf.mxu0
      %v1762 = vadd.f32 %v1601, %v1761
      %v1763 = vpop.f32.mrf.mxu0
      %v1764 = vpop.f32.mrf.mxu0
      %v1765 = vadd.f32 %v1604, %v1764
      %v1766 = vpop.f32.mrf.mxu0
      %1767 = vmatprep.mubr.bf16.mxu0 0
      %1768 = vmatmul.mubr.bf16.gmra.mxu0 %v657
      %v1769 = vpop.f32.mrf.mxu0
      %v1770 = vadd.f32 %v1609, %v1769
      %v1771 = vpop.f32.mrf.mxu0
      %v1772 = vpop.f32.mrf.mxu0
      %v1773 = vadd.f32 %v1612, %v1772
      %v1774 = vpop.f32.mrf.mxu0
      %1775 = vmatprep.mubr.bf16.mxu0 0
      %1776 = vmatmul.mubr.bf16.gmra.mxu0 %v660
      %v1777 = vpop.f32.mrf.mxu0
      %v1778 = vadd.f32 %v1617, %v1777
      %v1779 = vpop.f32.mrf.mxu0
      %v1780 = vpop.f32.mrf.mxu0
      %v1781 = vadd.f32 %v1620, %v1780
      %v1782 = vpop.f32.mrf.mxu0
      %1783 = vmatprep.mubr.bf16.mxu0 0
      %1784 = vmatmul.mubr.bf16.gmra.mxu0 %v663
      %v1785 = vpop.f32.mrf.mxu0
      %v1786 = vadd.f32 %v1625, %v1785
      %v1787 = vpop.f32.mrf.mxu0
      %v1788 = vpop.f32.mrf.mxu0
      %v1789 = vadd.f32 %v1628, %v1788
      %v1790 = vpop.f32.mrf.mxu0
      %1791 = vmatprep.mubr.bf16.mxu0 0
      %1792 = vmatmul.mubr.bf16.gmra.mxu0 %v666
      %v1793 = vpop.f32.mrf.mxu0
      %v1794 = vadd.f32 %v1633, %v1793
      %v1795 = vpop.f32.mrf.mxu0
      %v1796 = vpop.f32.mrf.mxu0
      %v1797 = vadd.f32 %v1636, %v1796
      %v1798 = vpop.f32.mrf.mxu0
      %1799 = vmatprep.mubr.bf16.mxu0 0
      %1800 = vmatmul.mubr.bf16.gmra.mxu0 %v669
      %v1801 = vpop.f32.mrf.mxu0
      %v1802 = vadd.f32 %v1641, %v1801
      %v1803 = vpop.f32.mrf.mxu0
      %v1804 = vpop.f32.mrf.mxu0
      %v1805 = vadd.f32 %v1644, %v1804
      %v1806 = vpop.f32.mrf.mxu0
      %1807 = vmatprep.mubr.bf16.mxu0 0
      %1808 = vmatmul.mubr.bf16.gmra.mxu0 %v672
      %v1809 = vpop.f32.mrf.mxu0
      %v1810 = vadd.f32 %v1649, %v1809
      %v1811 = vpop.f32.mrf.mxu0
      %v1812 = vpop.f32.mrf.mxu0
      %v1813 = vadd.f32 %v1652, %v1812
      %v1814 = vpop.f32.mrf.mxu0
      %1815 = vmatprep.mubr.bf16.mxu0 0
      %1816 = vmatmul.mubr.bf16.gmra.mxu0 %v675
      %v1817 = vpop.f32.mrf.mxu0
      %v1818 = vadd.f32 %v1657, %v1817
      %v1819 = vpop.f32.mrf.mxu0
      %v1820 = vpop.f32.mrf.mxu0
      %v1821 = vadd.f32 %v1660, %v1820
      %v1822 = vpop.f32.mrf.mxu0
      %1823 = vmatprep.mubr.bf16.mxu0 0
      %1824 = vmatmul.mubr.bf16.gmra.mxu0 %v678
      %v1825 = vpop.f32.mrf.mxu0
      %v1826 = vadd.f32 %v1665, %v1825
      %v1827 = vpop.f32.mrf.mxu0
      %v1828 = vpop.f32.mrf.mxu0
      %v1829 = vadd.f32 %v1668, %v1828
      %v1830 = vpop.f32.mrf.mxu0
      %1831 = vmatprep.mubr.bf16.mxu0 0
      %1832 = vmatmul.mubr.bf16.gmra.mxu0 %v681
      %v1833 = vpop.f32.mrf.mxu0
      %v1834 = vadd.f32 %v1673, %v1833
      %v1835 = vpop.f32.mrf.mxu0
      %v1836 = vpop.f32.mrf.mxu0
      %v1837 = vadd.f32 %v1676, %v1836
      %v1838 = vpop.f32.mrf.mxu0
      %1839 = vmatprep.mubr.bf16.mxu0 0
      %1840 = vmatmul.mubr.bf16.gmra.mxu0 %v684
      %v1841 = vpop.f32.mrf.mxu0
      %v1842 = vadd.f32 %v1681, %v1841
      %v1843 = vpop.f32.mrf.mxu0
      %v1844 = vpop.f32.mrf.mxu0
      %v1845 = vadd.f32 %v1684, %v1844
      %v1846 = vpop.f32.mrf.mxu0
      %1847 = vmatprep.mubr.bf16.mxu0 0
      %1848 = vmatmul.mubr.bf16.gmra.mxu0 %v687
      %v1849 = vpop.f32.mrf.mxu0
      %v1850 = vadd.f32 %v1689, %v1849
      %v1851 = vpop.f32.mrf.mxu0
      %v1852 = vpop.f32.mrf.mxu0
      %v1853 = vadd.f32 %v1692, %v1852
      %v1854 = vpop.f32.mrf.mxu0
      %1855 = vmatprep.mubr.bf16.mxu0 0
      %1856 = vmatmul.mubr.bf16.gmra.mxu0 %v690
      %v1857 = vpop.f32.mrf.mxu0
      %v1858 = vadd.f32 %v1697, %v1857
      %v1859 = vpop.f32.mrf.mxu0
      %v1860 = vpop.f32.mrf.mxu0
      %v1861 = vadd.f32 %v1700, %v1860
      %v1862 = vpop.f32.mrf.mxu0
      %1863 = vdwg.mxu0
      %s1864 = scalar_lea.vmem [#allocation2], 48
      %v1865 = vld [vmem:[%s1864] sm:$0xff]
      %v1866 = vld [vmem:[%s1864 + $0x8] sm:$0xff]
      %v1867 = vld [vmem:[%s1864 + $0x18] sm:$0xff]
      %v1868 = vld [vmem:[%s1864 + $0x20] sm:$0xff]
      %v1869 = vld [vmem:[%s1864 + $0x30] sm:$0xff]
      %v1870 = vld [vmem:[%s1864 + $0x38] sm:$0xff]
      %v1871 = vld [vmem:[%s1864 + $0x48] sm:$0xff]
      %v1872 = vld [vmem:[%s1864 + $0x50] sm:$0xff]
      %v1873 = vld [vmem:[%s1864 + $0x60] sm:$0xff]
      %v1874 = vld [vmem:[%s1864 + $0x68] sm:$0xff]
      %v1875 = vld [vmem:[%s1864 + $0x78] sm:$0xff]
      %v1876 = vld [vmem:[%s1864 + $0x80] sm:$0xff]
      %v1877 = vld [vmem:[%s1864 + $0x90] sm:$0xff]
      %v1878 = vld [vmem:[%s1864 + $0x98] sm:$0xff]
      %v1879 = vld [vmem:[%s1864 + $0xa8] sm:$0xff]
      %v1880 = vld [vmem:[%s1864 + $0xb0] sm:$0xff]
      %v1881 = vld [vmem:[%s1864 + $0xc0] sm:$0xff]
      %v1882 = vld [vmem:[%s1864 + $0xc8] sm:$0xff]
      %v1883 = vld [vmem:[%s1864 + $0xd8] sm:$0xff]
      %v1884 = vld [vmem:[%s1864 + $0xe0] sm:$0xff]
      %v1885 = vld [vmem:[%s1864 + $0xf0] sm:$0xff]
      %v1886 = vld [vmem:[%s1864 + $0xf8] sm:$0xff]
      %v1887 = vld [vmem:[%s1864 + $0x108] sm:$0xff]
      %v1888 = vld [vmem:[%s1864 + $0x110] sm:$0xff]
      %v1889 = vld [vmem:[%s1864 + $0x120] sm:$0xff]
      %v1890 = vld [vmem:[%s1864 + $0x128] sm:$0xff]
      %v1891 = vld [vmem:[%s1864 + $0x138] sm:$0xff]
      %v1892 = vld [vmem:[%s1864 + $0x140] sm:$0xff]
      %v1893 = vld [vmem:[%s1864 + $0x150] sm:$0xff]
      %v1894 = vld [vmem:[%s1864 + $0x158] sm:$0xff]
      %v1895 = vld [vmem:[%s1864 + $0x168] sm:$0xff]
      %v1896 = vld [vmem:[%s1864 + $0x170] sm:$0xff]
      %v1897 = vld [vmem:[%s1864 + $0x1] sm:$0xff]
      %v1898 = vld [vmem:[%s1864 + $0x9] sm:$0xff]
      %v1899 = vld [vmem:[%s1864 + $0x19] sm:$0xff]
      %v1900 = vld [vmem:[%s1864 + $0x21] sm:$0xff]
      %v1901 = vld [vmem:[%s1864 + $0x31] sm:$0xff]
      %v1902 = vld [vmem:[%s1864 + $0x39] sm:$0xff]
      %v1903 = vld [vmem:[%s1864 + $0x49] sm:$0xff]
      %v1904 = vld [vmem:[%s1864 + $0x51] sm:$0xff]
      %v1905 = vld [vmem:[%s1864 + $0x61] sm:$0xff]
      %v1906 = vld [vmem:[%s1864 + $0x69] sm:$0xff]
      %v1907 = vld [vmem:[%s1864 + $0x79] sm:$0xff]
      %v1908 = vld [vmem:[%s1864 + $0x81] sm:$0xff]
      %v1909 = vld [vmem:[%s1864 + $0x91] sm:$0xff]
      %v1910 = vld [vmem:[%s1864 + $0x99] sm:$0xff]
      %v1911 = vld [vmem:[%s1864 + $0xa9] sm:$0xff]
      %v1912 = vld [vmem:[%s1864 + $0xb1] sm:$0xff]
      %v1913 = vld [vmem:[%s1864 + $0xc1] sm:$0xff]
      %v1914 = vld [vmem:[%s1864 + $0xc9] sm:$0xff]
      %v1915 = vld [vmem:[%s1864 + $0xd9] sm:$0xff]
      %v1916 = vld [vmem:[%s1864 + $0xe1] sm:$0xff]
      %v1917 = vld [vmem:[%s1864 + $0xf1] sm:$0xff]
      %v1918 = vld [vmem:[%s1864 + $0xf9] sm:$0xff]
      %v1919 = vld [vmem:[%s1864 + $0x109] sm:$0xff]
      %v1920 = vld [vmem:[%s1864 + $0x111] sm:$0xff]
      %v1921 = vld [vmem:[%s1864 + $0x121] sm:$0xff]
      %v1922 = vld [vmem:[%s1864 + $0x129] sm:$0xff]
      %v1923 = vld [vmem:[%s1864 + $0x139] sm:$0xff]
      %v1924 = vld [vmem:[%s1864 + $0x141] sm:$0xff]
      %v1925 = vld [vmem:[%s1864 + $0x151] sm:$0xff]
      %v1926 = vld [vmem:[%s1864 + $0x159] sm:$0xff]
      %v1927 = vld [vmem:[%s1864 + $0x169] sm:$0xff]
      %v1928 = vld [vmem:[%s1864 + $0x171] sm:$0xff]
      %v1929 = vld [vmem:[%s1864 + $0x2] sm:$0xff]
      %v1930 = vld [vmem:[%s1864 + $0xa] sm:$0xff]
      %v1931 = vld [vmem:[%s1864 + $0x1a] sm:$0xff]
      %v1932 = vld [vmem:[%s1864 + $0x22] sm:$0xff]
      %v1933 = vld [vmem:[%s1864 + $0x32] sm:$0xff]
      %v1934 = vld [vmem:[%s1864 + $0x3a] sm:$0xff]
      %v1935 = vld [vmem:[%s1864 + $0x4a] sm:$0xff]
      %v1936 = vld [vmem:[%s1864 + $0x52] sm:$0xff]
      %v1937 = vld [vmem:[%s1864 + $0x62] sm:$0xff]
      %v1938 = vld [vmem:[%s1864 + $0x6a] sm:$0xff]
      %v1939 = vld [vmem:[%s1864 + $0x7a] sm:$0xff]
      %v1940 = vld [vmem:[%s1864 + $0x82] sm:$0xff]
      %v1941 = vld [vmem:[%s1864 + $0x92] sm:$0xff]
      %v1942 = vld [vmem:[%s1864 + $0x9a] sm:$0xff]
      %v1943 = vld [vmem:[%s1864 + $0xaa] sm:$0xff]
      %v1944 = vld [vmem:[%s1864 + $0xb2] sm:$0xff]
      %v1945 = vld [vmem:[%s1864 + $0xc2] sm:$0xff]
      %v1946 = vld [vmem:[%s1864 + $0xca] sm:$0xff]
      %v1947 = vld [vmem:[%s1864 + $0xda] sm:$0xff]
      %v1948 = vld [vmem:[%s1864 + $0xe2] sm:$0xff]
      %v1949 = vld [vmem:[%s1864 + $0xf2] sm:$0xff]
      %v1950 = vld [vmem:[%s1864 + $0xfa] sm:$0xff]
      %v1951 = vld [vmem:[%s1864 + $0x10a] sm:$0xff]
      %v1952 = vld [vmem:[%s1864 + $0x112] sm:$0xff]
      %v1953 = vld [vmem:[%s1864 + $0x122] sm:$0xff]
      %v1954 = vld [vmem:[%s1864 + $0x12a] sm:$0xff]
      %v1955 = vld [vmem:[%s1864 + $0x13a] sm:$0xff]
      %v1956 = vld [vmem:[%s1864 + $0x142] sm:$0xff]
      %v1957 = vld [vmem:[%s1864 + $0x152] sm:$0xff]
      %v1958 = vld [vmem:[%s1864 + $0x15a] sm:$0xff]
      %v1959 = vld [vmem:[%s1864 + $0x16a] sm:$0xff]
      %v1960 = vld [vmem:[%s1864 + $0x172] sm:$0xff]
      %v1961 = vpack.c.bf16 %v1866, %v1865
      %v1962 = vpack.c.bf16 %v1898, %v1897
      %v1963 = vpack.c.bf16 %v1930, %v1929
      %v1964 = vpack.c.bf16 %v1868, %v1867
      %v1965 = vpack.c.bf16 %v1900, %v1899
      %v1966 = vpack.c.bf16 %v1932, %v1931
      %v1967 = vpack.c.bf16 %v1870, %v1869
      %v1968 = vpack.c.bf16 %v1902, %v1901
      %v1969 = vpack.c.bf16 %v1934, %v1933
      %v1970 = vpack.c.bf16 %v1872, %v1871
      %v1971 = vpack.c.bf16 %v1904, %v1903
      %v1972 = vpack.c.bf16 %v1936, %v1935
      %v1973 = vpack.c.bf16 %v1874, %v1873
      %v1974 = vpack.c.bf16 %v1906, %v1905
      %v1975 = vpack.c.bf16 %v1938, %v1937
      %v1976 = vpack.c.bf16 %v1876, %v1875
      %v1977 = vpack.c.bf16 %v1908, %v1907
      %v1978 = vpack.c.bf16 %v1940, %v1939
      %v1979 = vpack.c.bf16 %v1878, %v1877
      %v1980 = vpack.c.bf16 %v1910, %v1909
      %v1981 = vpack.c.bf16 %v1942, %v1941
      %v1982 = vpack.c.bf16 %v1880, %v1879
      %v1983 = vpack.c.bf16 %v1912, %v1911
      %v1984 = vpack.c.bf16 %v1944, %v1943
      %v1985 = vpack.c.bf16 %v1882, %v1881
      %v1986 = vpack.c.bf16 %v1914, %v1913
      %v1987 = vpack.c.bf16 %v1946, %v1945
      %v1988 = vpack.c.bf16 %v1884, %v1883
      %v1989 = vpack.c.bf16 %v1916, %v1915
      %v1990 = vpack.c.bf16 %v1948, %v1947
      %v1991 = vpack.c.bf16 %v1886, %v1885
      %v1992 = vpack.c.bf16 %v1918, %v1917
      %v1993 = vpack.c.bf16 %v1950, %v1949
      %v1994 = vpack.c.bf16 %v1888, %v1887
      %v1995 = vpack.c.bf16 %v1920, %v1919
      %v1996 = vpack.c.bf16 %v1952, %v1951
      %v1997 = vpack.c.bf16 %v1890, %v1889
      %v1998 = vpack.c.bf16 %v1922, %v1921
      %v1999 = vpack.c.bf16 %v1954, %v1953
      %v2000 = vpack.c.bf16 %v1892, %v1891
      %v2001 = vpack.c.bf16 %v1924, %v1923
      %v2002 = vpack.c.bf16 %v1956, %v1955
      %v2003 = vpack.c.bf16 %v1894, %v1893
      %v2004 = vpack.c.bf16 %v1926, %v1925
      %v2005 = vpack.c.bf16 %v1958, %v1957
      %v2006 = vpack.c.bf16 %v1896, %v1895
      %v2007 = vpack.c.bf16 %v1928, %v1927
      %v2008 = vpack.c.bf16 %v1960, %v1959
      %s2009 = scalar_lea.vmem %s3, 384
      %v2010 = vld [vmem:[%s2009] sm:$0xf]
      %v2011 = vld [vmem:[%s2009 + $0x4] sm:$0xf]
      %v2012 = vld [vmem:[%s2009 + $0x8] sm:$0xf]
      %v2013 = vld [vmem:[%s2009 + $0xc] sm:$0xf]
      %v2014 = vld [vmem:[%s2009 + $0x10] sm:$0xf]
      %v2015 = vld [vmem:[%s2009 + $0x14] sm:$0xf]
      %v2016 = vld [vmem:[%s2009 + $0x18] sm:$0xf]
      %v2017 = vld [vmem:[%s2009 + $0x1c] sm:$0xf]
      %v2018 = vld [vmem:[%s2009 + $0x20] sm:$0xf]
      %v2019 = vld [vmem:[%s2009 + $0x24] sm:$0xf]
      %v2020 = vld [vmem:[%s2009 + $0x28] sm:$0xf]
      %v2021 = vld [vmem:[%s2009 + $0x2c] sm:$0xf]
      %v2022 = vld [vmem:[%s2009 + $0x30] sm:$0xf]
      %v2023 = vld [vmem:[%s2009 + $0x34] sm:$0xf]
      %v2024 = vld [vmem:[%s2009 + $0x38] sm:$0xf]
      %v2025 = vld [vmem:[%s2009 + $0x3c] sm:$0xf]
      %v2026 = vld [vmem:[%s2009 + $0x40] sm:$0xf]
      %v2027 = vld [vmem:[%s2009 + $0x44] sm:$0xf]
      %v2028 = vld [vmem:[%s2009 + $0x48] sm:$0xf]
      %v2029 = vld [vmem:[%s2009 + $0x4c] sm:$0xf]
      %v2030 = vld [vmem:[%s2009 + $0x50] sm:$0xf]
      %v2031 = vld [vmem:[%s2009 + $0x54] sm:$0xf]
      %v2032 = vld [vmem:[%s2009 + $0x58] sm:$0xf]
      %v2033 = vld [vmem:[%s2009 + $0x5c] sm:$0xf]
      %v2034 = vld [vmem:[%s2009 + $0x60] sm:$0xf]
      %v2035 = vld [vmem:[%s2009 + $0x64] sm:$0xf]
      %v2036 = vld [vmem:[%s2009 + $0x68] sm:$0xf]
      %v2037 = vld [vmem:[%s2009 + $0x6c] sm:$0xf]
      %v2038 = vld [vmem:[%s2009 + $0x70] sm:$0xf]
      %v2039 = vld [vmem:[%s2009 + $0x74] sm:$0xf]
      %v2040 = vld [vmem:[%s2009 + $0x78] sm:$0xf]
      %v2041 = vld [vmem:[%s2009 + $0x7c] sm:$0xf]
      %v2042 = vld [vmem:[%s2009 + $0x80] sm:$0xf]
      %v2043 = vld [vmem:[%s2009 + $0x84] sm:$0xf]
      %v2044 = vld [vmem:[%s2009 + $0x88] sm:$0xf]
      %v2045 = vld [vmem:[%s2009 + $0x8c] sm:$0xf]
      %v2046 = vld [vmem:[%s2009 + $0x90] sm:$0xf]
      %v2047 = vld [vmem:[%s2009 + $0x94] sm:$0xf]
      %v2048 = vld [vmem:[%s2009 + $0x98] sm:$0xf]
      %v2049 = vld [vmem:[%s2009 + $0x9c] sm:$0xf]
      %v2050 = vld [vmem:[%s2009 + $0xa0] sm:$0xf]
      %v2051 = vld [vmem:[%s2009 + $0xa4] sm:$0xf]
      %v2052 = vld [vmem:[%s2009 + $0xa8] sm:$0xf]
      %v2053 = vld [vmem:[%s2009 + $0xac] sm:$0xf]
      %v2054 = vld [vmem:[%s2009 + $0xb0] sm:$0xf]
      %v2055 = vld [vmem:[%s2009 + $0xb4] sm:$0xf]
      %v2056 = vld [vmem:[%s2009 + $0xb8] sm:$0xf]
      %v2057 = vld [vmem:[%s2009 + $0xbc] sm:$0xf]
      %v2106 = vunpack.c.l.b16 %v2010
      %v2107 = vunpack.c.l.b16 %v2011
      %v2108 = vunpack.c.l.b16 %v2012
      %v2109 = vunpack.c.l.b16 %v2013
      %v2110 = vunpack.c.l.b16 %v2014
      %v2111 = vunpack.c.l.b16 %v2015
      %v2112 = vunpack.c.l.b16 %v2016
      %v2113 = vunpack.c.l.b16 %v2017
      %v2114 = vunpack.c.l.b16 %v2018
      %v2115 = vunpack.c.l.b16 %v2019
      %v2116 = vunpack.c.l.b16 %v2020
      %v2117 = vunpack.c.l.b16 %v2021
      %v2118 = vunpack.c.l.b16 %v2022
      %v2119 = vunpack.c.l.b16 %v2023
      %v2120 = vunpack.c.l.b16 %v2024
      %v2121 = vunpack.c.l.b16 %v2025
      %v2122 = vunpack.c.l.b16 %v2026
      %v2123 = vunpack.c.l.b16 %v2027
      %v2124 = vunpack.c.l.b16 %v2028
      %v2125 = vunpack.c.l.b16 %v2029
      %v2126 = vunpack.c.l.b16 %v2030
      %v2127 = vunpack.c.l.b16 %v2031
      %v2128 = vunpack.c.l.b16 %v2032
      %v2129 = vunpack.c.l.b16 %v2033
      %v2130 = vunpack.c.l.b16 %v2034
      %v2131 = vunpack.c.l.b16 %v2035
      %v2132 = vunpack.c.l.b16 %v2036
      %v2133 = vunpack.c.l.b16 %v2037
      %v2134 = vunpack.c.l.b16 %v2038
      %v2135 = vunpack.c.l.b16 %v2039
      %v2136 = vunpack.c.l.b16 %v2040
      %v2137 = vunpack.c.l.b16 %v2041
      %v2138 = vunpack.c.l.b16 %v2042
      %v2139 = vunpack.c.l.b16 %v2043
      %v2140 = vunpack.c.l.b16 %v2044
      %v2141 = vunpack.c.l.b16 %v2045
      %v2142 = vunpack.c.l.b16 %v2046
      %v2143 = vunpack.c.l.b16 %v2047
      %v2144 = vunpack.c.l.b16 %v2048
      %v2145 = vunpack.c.l.b16 %v2049
      %v2146 = vunpack.c.l.b16 %v2050
      %v2147 = vunpack.c.l.b16 %v2051
      %v2148 = vunpack.c.l.b16 %v2052
      %v2149 = vunpack.c.l.b16 %v2053
      %v2150 = vunpack.c.l.b16 %v2054
      %v2151 = vunpack.c.l.b16 %v2055
      %v2152 = vunpack.c.l.b16 %v2056
      %v2153 = vunpack.c.l.b16 %v2057
      %v2154 = vpack.c.b16 %v2107, %v2106
      %v2155 = vpack.c.b16 %v2109, %v2108
      %v2156 = vpack.c.b16 %v2111, %v2110
      %v2157 = vpack.c.b16 %v2113, %v2112
      %v2158 = vpack.c.b16 %v2115, %v2114
      %v2159 = vpack.c.b16 %v2117, %v2116
      %v2160 = vpack.c.b16 %v2119, %v2118
      %v2161 = vpack.c.b16 %v2121, %v2120
      %v2162 = vpack.c.b16 %v2123, %v2122
      %v2163 = vpack.c.b16 %v2125, %v2124
      %v2164 = vpack.c.b16 %v2127, %v2126
      %v2165 = vpack.c.b16 %v2129, %v2128
      %v2166 = vpack.c.b16 %v2131, %v2130
      %v2167 = vpack.c.b16 %v2133, %v2132
      %v2168 = vpack.c.b16 %v2135, %v2134
      %v2169 = vpack.c.b16 %v2137, %v2136
      %v2170 = vpack.c.b16 %v2139, %v2138
      %v2171 = vpack.c.b16 %v2141, %v2140
      %v2172 = vpack.c.b16 %v2143, %v2142
      %v2173 = vpack.c.b16 %v2145, %v2144
      %v2174 = vpack.c.b16 %v2147, %v2146
      %v2175 = vpack.c.b16 %v2149, %v2148
      %v2176 = vpack.c.b16 %v2151, %v2150
      %v2177 = vpack.c.b16 %v2153, %v2152
      %2202 = vmatprep.subr.bf16.mxu0 0
      %2203 = vmatpush1.bf16.msra.mxu0 %v2161
      %2204 = vmatprep.subr.bf16.mxu0 0
      %2205 = vmatpush1.bf16.msra.mxu0 %v2160
      %2206 = vmatprep.subr.bf16.mxu0 0
      %2207 = vmatpush1.bf16.msra.mxu0 %v2159
      %2208 = vmatprep.subr.bf16.mxu0 0
      %2209 = vmatpush1.bf16.msra.mxu0 %v2158
      %2210 = vmatprep.subr.bf16.mxu0 0
      %2211 = vmatpush1.bf16.msra.mxu0 %v2157
      %2212 = vmatprep.subr.bf16.mxu0 0
      %2213 = vmatpush1.bf16.msra.mxu0 %v2156
      %2214 = vmatprep.subr.bf16.mxu0 0
      %2215 = vmatpush1.bf16.msra.mxu0 %v2155
      %2216 = vmatprep.subr.bf16.mxu0 0
      %2217 = vmatpush1.bf16.msra.mxu0 %v2154
      %2218 = vmatprep.subr.bf16.mxu0 0
      %2219 = vmatpush2.bf16.msra.mxu0 %v2169
      %2220 = vmatprep.subr.bf16.mxu0 0
      %2221 = vmatpush2.bf16.msra.mxu0 %v2168
      %2222 = vmatprep.subr.bf16.mxu0 0
      %2223 = vmatpush2.bf16.msra.mxu0 %v2167
      %2224 = vmatprep.subr.bf16.mxu0 0
      %2225 = vmatpush2.bf16.msra.mxu0 %v2166
      %2226 = vmatprep.subr.bf16.mxu0 0
      %2227 = vmatpush2.bf16.msra.mxu0 %v2165
      %2228 = vmatprep.subr.bf16.mxu0 0
      %2229 = vmatpush2.bf16.msra.mxu0 %v2164
      %2230 = vmatprep.subr.bf16.mxu0 0
      %2231 = vmatpush2.bf16.msra.mxu0 %v2163
      %2232 = vmatprep.subr.bf16.mxu0 0
      %2233 = vmatpush2.bf16.msra.mxu0 %v2162
      %2234 = vmatprep.mubr.bf16.mxu0 %v1962
      %2235 = vmatmul.mubr.bf16.gmra.mxu0 %v1961
      %v2236 = vpop.f32.mrf.mxu0
      %v2237 = vadd.f32 0.0, %v2236
      %v2238 = vpop.f32.mrf.mxu0
      %v2239 = vpop.f32.mrf.mxu0
      %v2240 = vadd.f32 0.0, %v2239
      %v2241 = vpop.f32.mrf.mxu0
      %2242 = vmatprep.mubr.bf16.mxu0 %v1965
      %2243 = vmatmul.mubr.bf16.gmra.mxu0 %v1964
      %v2244 = vpop.f32.mrf.mxu0
      %v2245 = vadd.f32 0.0, %v2244
      %v2246 = vpop.f32.mrf.mxu0
      %v2247 = vpop.f32.mrf.mxu0
      %v2248 = vadd.f32 0.0, %v2247
      %v2249 = vpop.f32.mrf.mxu0
      %2250 = vmatprep.mubr.bf16.mxu0 %v1968
      %2251 = vmatmul.mubr.bf16.gmra.mxu0 %v1967
      %v2252 = vpop.f32.mrf.mxu0
      %v2253 = vadd.f32 0.0, %v2252
      %v2254 = vpop.f32.mrf.mxu0
      %v2255 = vpop.f32.mrf.mxu0
      %v2256 = vadd.f32 0.0, %v2255
      %v2257 = vpop.f32.mrf.mxu0
      %2258 = vmatprep.mubr.bf16.mxu0 %v1971
      %2259 = vmatmul.mubr.bf16.gmra.mxu0 %v1970
      %v2260 = vpop.f32.mrf.mxu0
      %v2261 = vadd.f32 0.0, %v2260
      %v2262 = vpop.f32.mrf.mxu0
      %v2263 = vpop.f32.mrf.mxu0
      %v2264 = vadd.f32 0.0, %v2263
      %v2265 = vpop.f32.mrf.mxu0
      %2266 = vmatprep.mubr.bf16.mxu0 %v1974
      %2267 = vmatmul.mubr.bf16.gmra.mxu0 %v1973
      %v2268 = vpop.f32.mrf.mxu0
      %v2269 = vadd.f32 0.0, %v2268
      %v2270 = vpop.f32.mrf.mxu0
      %v2271 = vpop.f32.mrf.mxu0
      %v2272 = vadd.f32 0.0, %v2271
      %v2273 = vpop.f32.mrf.mxu0
      %2274 = vmatprep.mubr.bf16.mxu0 %v1977
      %2275 = vmatmul.mubr.bf16.gmra.mxu0 %v1976
      %v2276 = vpop.f32.mrf.mxu0
      %v2277 = vadd.f32 0.0, %v2276
      %v2278 = vpop.f32.mrf.mxu0
      %v2279 = vpop.f32.mrf.mxu0
      %v2280 = vadd.f32 0.0, %v2279
      %v2281 = vpop.f32.mrf.mxu0
      %2282 = vmatprep.mubr.bf16.mxu0 %v1980
      %2283 = vmatmul.mubr.bf16.gmra.mxu0 %v1979
      %v2284 = vpop.f32.mrf.mxu0
      %v2285 = vadd.f32 0.0, %v2284
      %v2286 = vpop.f32.mrf.mxu0
      %v2287 = vpop.f32.mrf.mxu0
      %v2288 = vadd.f32 0.0, %v2287
      %v2289 = vpop.f32.mrf.mxu0
      %2290 = vmatprep.mubr.bf16.mxu0 %v1983
      %2291 = vmatmul.mubr.bf16.gmra.mxu0 %v1982
      %v2292 = vpop.f32.mrf.mxu0
      %v2293 = vadd.f32 0.0, %v2292
      %v2294 = vpop.f32.mrf.mxu0
      %v2295 = vpop.f32.mrf.mxu0
      %v2296 = vadd.f32 0.0, %v2295
      %v2297 = vpop.f32.mrf.mxu0
      %2298 = vmatprep.mubr.bf16.mxu0 %v1986
      %2299 = vmatmul.mubr.bf16.gmra.mxu0 %v1985
      %v2300 = vpop.f32.mrf.mxu0
      %v2301 = vadd.f32 0.0, %v2300
      %v2302 = vpop.f32.mrf.mxu0
      %v2303 = vpop.f32.mrf.mxu0
      %v2304 = vadd.f32 0.0, %v2303
      %v2305 = vpop.f32.mrf.mxu0
      %2306 = vmatprep.mubr.bf16.mxu0 %v1989
      %2307 = vmatmul.mubr.bf16.gmra.mxu0 %v1988
      %v2308 = vpop.f32.mrf.mxu0
      %v2309 = vadd.f32 0.0, %v2308
      %v2310 = vpop.f32.mrf.mxu0
      %v2311 = vpop.f32.mrf.mxu0
      %v2312 = vadd.f32 0.0, %v2311
      %v2313 = vpop.f32.mrf.mxu0
      %2314 = vmatprep.mubr.bf16.mxu0 %v1992
      %2315 = vmatmul.mubr.bf16.gmra.mxu0 %v1991
      %v2316 = vpop.f32.mrf.mxu0
      %v2317 = vadd.f32 0.0, %v2316
      %v2318 = vpop.f32.mrf.mxu0
      %v2319 = vpop.f32.mrf.mxu0
      %v2320 = vadd.f32 0.0, %v2319
      %v2321 = vpop.f32.mrf.mxu0
      %2322 = vmatprep.mubr.bf16.mxu0 %v1995
      %2323 = vmatmul.mubr.bf16.gmra.mxu0 %v1994
      %v2324 = vpop.f32.mrf.mxu0
      %v2325 = vadd.f32 0.0, %v2324
      %v2326 = vpop.f32.mrf.mxu0
      %v2327 = vpop.f32.mrf.mxu0
      %v2328 = vadd.f32 0.0, %v2327
      %v2329 = vpop.f32.mrf.mxu0
      %2330 = vmatprep.mubr.bf16.mxu0 %v1998
      %2331 = vmatmul.mubr.bf16.gmra.mxu0 %v1997
      %v2332 = vpop.f32.mrf.mxu0
      %v2333 = vadd.f32 0.0, %v2332
      %v2334 = vpop.f32.mrf.mxu0
      %v2335 = vpop.f32.mrf.mxu0
      %v2336 = vadd.f32 0.0, %v2335
      %v2337 = vpop.f32.mrf.mxu0
      %2338 = vmatprep.mubr.bf16.mxu0 %v2001
      %2339 = vmatmul.mubr.bf16.gmra.mxu0 %v2000
      %v2340 = vpop.f32.mrf.mxu0
      %v2341 = vadd.f32 0.0, %v2340
      %v2342 = vpop.f32.mrf.mxu0
      %v2343 = vpop.f32.mrf.mxu0
      %v2344 = vadd.f32 0.0, %v2343
      %v2345 = vpop.f32.mrf.mxu0
      %2346 = vmatprep.mubr.bf16.mxu0 %v2004
      %2347 = vmatmul.mubr.bf16.gmra.mxu0 %v2003
      %v2348 = vpop.f32.mrf.mxu0
      %v2349 = vadd.f32 0.0, %v2348
      %v2350 = vpop.f32.mrf.mxu0
      %v2351 = vpop.f32.mrf.mxu0
      %v2352 = vadd.f32 0.0, %v2351
      %v2353 = vpop.f32.mrf.mxu0
      %2354 = vmatprep.mubr.bf16.mxu0 %v2007
      %2355 = vmatmul.mubr.bf16.gmra.mxu0 %v2006
      %v2356 = vpop.f32.mrf.mxu0
      %v2357 = vadd.f32 0.0, %v2356
      %v2358 = vpop.f32.mrf.mxu0
      %v2359 = vpop.f32.mrf.mxu0
      %v2360 = vadd.f32 0.0, %v2359
      %v2361 = vpop.f32.mrf.mxu0
      %2362 = vdwg.mxu0
      %2363 = vmatprep.subr.bf16.mxu0 0
      %2364 = vmatpush1.bf16.msra.mxu0 %v2177
      %2365 = vmatprep.subr.bf16.mxu0 0
      %2366 = vmatpush1.bf16.msra.mxu0 %v2176
      %2367 = vmatprep.subr.bf16.mxu0 0
      %2368 = vmatpush1.bf16.msra.mxu0 %v2175
      %2369 = vmatprep.subr.bf16.mxu0 0
      %2370 = vmatpush1.bf16.msra.mxu0 %v2174
      %2371 = vmatprep.subr.bf16.mxu0 0
      %2372 = vmatpush1.bf16.msra.mxu0 %v2173
      %2373 = vmatprep.subr.bf16.mxu0 0
      %2374 = vmatpush1.bf16.msra.mxu0 %v2172
      %2375 = vmatprep.subr.bf16.mxu0 0
      %2376 = vmatpush1.bf16.msra.mxu0 %v2171
      %2377 = vmatprep.subr.bf16.mxu0 0
      %2378 = vmatpush1.bf16.msra.mxu0 %v2170
      %2379 = vmatprep.subr.bf16.mxu0 0
      %2380 = vmatpush2.bf16.msra.mxu0 0
      %2381 = vmatprep.subr.bf16.mxu0 0
      %2382 = vmatpush2.bf16.msra.mxu0 0
      %2383 = vmatprep.subr.bf16.mxu0 0
      %2384 = vmatpush2.bf16.msra.mxu0 0
      %2385 = vmatprep.subr.bf16.mxu0 0
      %2386 = vmatpush2.bf16.msra.mxu0 0
      %2387 = vmatprep.subr.bf16.mxu0 0
      %2388 = vmatpush2.bf16.msra.mxu0 0
      %2389 = vmatprep.subr.bf16.mxu0 0
      %2390 = vmatpush2.bf16.msra.mxu0 0
      %2391 = vmatprep.subr.bf16.mxu0 0
      %2392 = vmatpush2.bf16.msra.mxu0 0
      %2393 = vmatprep.subr.bf16.mxu0 0
      %2394 = vmatpush2.bf16.msra.mxu0 0
      %2395 = vmatprep.mubr.bf16.mxu0 0
      %2396 = vmatmul.mubr.bf16.gmra.mxu0 %v1963
      %v2397 = vpop.f32.mrf.mxu0
      %v2398 = vadd.f32 %v2237, %v2397
      %v2399 = vpop.f32.mrf.mxu0
      %v2400 = vpop.f32.mrf.mxu0
      %v2401 = vadd.f32 %v2240, %v2400
      %v2402 = vpop.f32.mrf.mxu0
      %2403 = vmatprep.mubr.bf16.mxu0 0
      %2404 = vmatmul.mubr.bf16.gmra.mxu0 %v1966
      %v2405 = vpop.f32.mrf.mxu0
      %v2406 = vadd.f32 %v2245, %v2405
      %v2407 = vpop.f32.mrf.mxu0
      %v2408 = vpop.f32.mrf.mxu0
      %v2409 = vadd.f32 %v2248, %v2408
      %v2410 = vpop.f32.mrf.mxu0
      %2411 = vmatprep.mubr.bf16.mxu0 0
      %2412 = vmatmul.mubr.bf16.gmra.mxu0 %v1969
      %v2413 = vpop.f32.mrf.mxu0
      %v2414 = vadd.f32 %v2253, %v2413
      %v2415 = vpop.f32.mrf.mxu0
      %v2416 = vpop.f32.mrf.mxu0
      %v2417 = vadd.f32 %v2256, %v2416
      %v2418 = vpop.f32.mrf.mxu0
      %2419 = vmatprep.mubr.bf16.mxu0 0
      %2420 = vmatmul.mubr.bf16.gmra.mxu0 %v1972
      %v2421 = vpop.f32.mrf.mxu0
      %v2422 = vadd.f32 %v2261, %v2421
      %v2423 = vpop.f32.mrf.mxu0
      %v2424 = vpop.f32.mrf.mxu0
      %v2425 = vadd.f32 %v2264, %v2424
      %v2426 = vpop.f32.mrf.mxu0
      %2427 = vmatprep.mubr.bf16.mxu0 0
      %2428 = vmatmul.mubr.bf16.gmra.mxu0 %v1975
      %v2429 = vpop.f32.mrf.mxu0
      %v2430 = vadd.f32 %v2269, %v2429
      %v2431 = vpop.f32.mrf.mxu0
      %v2432 = vpop.f32.mrf.mxu0
      %v2433 = vadd.f32 %v2272, %v2432
      %v2434 = vpop.f32.mrf.mxu0
      %2435 = vmatprep.mubr.bf16.mxu0 0
      %2436 = vmatmul.mubr.bf16.gmra.mxu0 %v1978
      %v2437 = vpop.f32.mrf.mxu0
      %v2438 = vadd.f32 %v2277, %v2437
      %v2439 = vpop.f32.mrf.mxu0
      %v2440 = vpop.f32.mrf.mxu0
      %v2441 = vadd.f32 %v2280, %v2440
      %v2442 = vpop.f32.mrf.mxu0
      %2443 = vmatprep.mubr.bf16.mxu0 0
      %2444 = vmatmul.mubr.bf16.gmra.mxu0 %v1981
      %v2445 = vpop.f32.mrf.mxu0
      %v2446 = vadd.f32 %v2285, %v2445
      %v2447 = vpop.f32.mrf.mxu0
      %v2448 = vpop.f32.mrf.mxu0
      %v2449 = vadd.f32 %v2288, %v2448
      %v2450 = vpop.f32.mrf.mxu0
      %2451 = vmatprep.mubr.bf16.mxu0 0
      %2452 = vmatmul.mubr.bf16.gmra.mxu0 %v1984
      %v2453 = vpop.f32.mrf.mxu0
      %v2454 = vadd.f32 %v2293, %v2453
      %v2455 = vpop.f32.mrf.mxu0
      %v2456 = vpop.f32.mrf.mxu0
      %v2457 = vadd.f32 %v2296, %v2456
      %v2458 = vpop.f32.mrf.mxu0
      %2459 = vmatprep.mubr.bf16.mxu0 0
      %2460 = vmatmul.mubr.bf16.gmra.mxu0 %v1987
      %v2461 = vpop.f32.mrf.mxu0
      %v2462 = vadd.f32 %v2301, %v2461
      %v2463 = vpop.f32.mrf.mxu0
      %v2464 = vpop.f32.mrf.mxu0
      %v2465 = vadd.f32 %v2304, %v2464
      %v2466 = vpop.f32.mrf.mxu0
      %2467 = vmatprep.mubr.bf16.mxu0 0
      %2468 = vmatmul.mubr.bf16.gmra.mxu0 %v1990
      %v2469 = vpop.f32.mrf.mxu0
      %v2470 = vadd.f32 %v2309, %v2469
      %v2471 = vpop.f32.mrf.mxu0
      %v2472 = vpop.f32.mrf.mxu0
      %v2473 = vadd.f32 %v2312, %v2472
      %v2474 = vpop.f32.mrf.mxu0
      %2475 = vmatprep.mubr.bf16.mxu0 0
      %2476 = vmatmul.mubr.bf16.gmra.mxu0 %v1993
      %v2477 = vpop.f32.mrf.mxu0
      %v2478 = vadd.f32 %v2317, %v2477
      %v2479 = vpop.f32.mrf.mxu0
      %v2480 = vpop.f32.mrf.mxu0
      %v2481 = vadd.f32 %v2320, %v2480
      %v2482 = vpop.f32.mrf.mxu0
      %2483 = vmatprep.mubr.bf16.mxu0 0
      %2484 = vmatmul.mubr.bf16.gmra.mxu0 %v1996
      %v2485 = vpop.f32.mrf.mxu0
      %v2486 = vadd.f32 %v2325, %v2485
      %v2487 = vpop.f32.mrf.mxu0
      %v2488 = vpop.f32.mrf.mxu0
      %v2489 = vadd.f32 %v2328, %v2488
      %v2490 = vpop.f32.mrf.mxu0
      %2491 = vmatprep.mubr.bf16.mxu0 0
      %2492 = vmatmul.mubr.bf16.gmra.mxu0 %v1999
      %v2493 = vpop.f32.mrf.mxu0
      %v2494 = vadd.f32 %v2333, %v2493
      %v2495 = vpop.f32.mrf.mxu0
      %v2496 = vpop.f32.mrf.mxu0
      %v2497 = vadd.f32 %v2336, %v2496
      %v2498 = vpop.f32.mrf.mxu0
      %2499 = vmatprep.mubr.bf16.mxu0 0
      %2500 = vmatmul.mubr.bf16.gmra.mxu0 %v2002
      %v2501 = vpop.f32.mrf.mxu0
      %v2502 = vadd.f32 %v2341, %v2501
      %v2503 = vpop.f32.mrf.mxu0
      %v2504 = vpop.f32.mrf.mxu0
      %v2505 = vadd.f32 %v2344, %v2504
      %v2506 = vpop.f32.mrf.mxu0
      %2507 = vmatprep.mubr.bf16.mxu0 0
      %2508 = vmatmul.mubr.bf16.gmra.mxu0 %v2005
      %v2509 = vpop.f32.mrf.mxu0
      %v2510 = vadd.f32 %v2349, %v2509
      %v2511 = vpop.f32.mrf.mxu0
      %v2512 = vpop.f32.mrf.mxu0
      %v2513 = vadd.f32 %v2352, %v2512
      %v2514 = vpop.f32.mrf.mxu0
      %2515 = vmatprep.mubr.bf16.mxu0 0
      %2516 = vmatmul.mubr.bf16.gmra.mxu0 %v2008
      %v2517 = vpop.f32.mrf.mxu0
      %v2518 = vadd.f32 %v2357, %v2517
      %v2519 = vpop.f32.mrf.mxu0
      %v2520 = vpop.f32.mrf.mxu0
      %v2521 = vadd.f32 %v2360, %v2520
      %v2522 = vpop.f32.mrf.mxu0
      %2523 = vdwg.mxu0
      %v2524 = vadd.f32 %v1738, %v2398
      %v2525 = vadd.f32 %v1741, %v2401
      %v2526 = vadd.f32 %v1746, %v2406
      %v2527 = vadd.f32 %v1749, %v2409
      %v2528 = vadd.f32 %v1754, %v2414
      %v2529 = vadd.f32 %v1757, %v2417
      %v2530 = vadd.f32 %v1762, %v2422
      %v2531 = vadd.f32 %v1765, %v2425
      %v2532 = vadd.f32 %v1770, %v2430
      %v2533 = vadd.f32 %v1773, %v2433
      %v2534 = vadd.f32 %v1778, %v2438
      %v2535 = vadd.f32 %v1781, %v2441
      %v2536 = vadd.f32 %v1786, %v2446
      %v2537 = vadd.f32 %v1789, %v2449
      %v2538 = vadd.f32 %v1794, %v2454
      %v2539 = vadd.f32 %v1797, %v2457
      %v2540 = vadd.f32 %v1802, %v2462
      %v2541 = vadd.f32 %v1805, %v2465
      %v2542 = vadd.f32 %v1810, %v2470
      %v2543 = vadd.f32 %v1813, %v2473
      %v2544 = vadd.f32 %v1818, %v2478
      %v2545 = vadd.f32 %v1821, %v2481
      %v2546 = vadd.f32 %v1826, %v2486
      %v2547 = vadd.f32 %v1829, %v2489
      %v2548 = vadd.f32 %v1834, %v2494
      %v2549 = vadd.f32 %v1837, %v2497
      %v2550 = vadd.f32 %v1842, %v2502
      %v2551 = vadd.f32 %v1845, %v2505
      %v2552 = vadd.f32 %v1850, %v2510
      %v2553 = vadd.f32 %v1853, %v2513
      %v2554 = vadd.f32 %v1858, %v2518
      %v2555 = vadd.f32 %v1861, %v2521
      %v2556 = vpack.c.bf16 %v2525, %v2524
      %v2557 = vpack.c.bf16 %v2527, %v2526
      %v2558 = vpack.c.bf16 %v2529, %v2528
      %v2559 = vpack.c.bf16 %v2531, %v2530
      %v2560 = vpack.c.bf16 %v2533, %v2532
      %v2561 = vpack.c.bf16 %v2535, %v2534
      %v2562 = vpack.c.bf16 %v2537, %v2536
      %v2563 = vpack.c.bf16 %v2539, %v2538
      %v2564 = vpack.c.bf16 %v2541, %v2540
      %v2565 = vpack.c.bf16 %v2543, %v2542
      %v2566 = vpack.c.bf16 %v2545, %v2544
      %v2567 = vpack.c.bf16 %v2547, %v2546
      %v2568 = vpack.c.bf16 %v2549, %v2548
      %v2569 = vpack.c.bf16 %v2551, %v2550
      %v2570 = vpack.c.bf16 %v2553, %v2552
      %v2571 = vpack.c.bf16 %v2555, %v2554
      %v2588 = vunpack.c.l.b16 %v2556
      %v2589 = vunpack.c.h.b16 %v2556
      %v2590 = vunpack.c.l.b16 %v2557
      %v2591 = vunpack.c.h.b16 %v2557
      %v2592 = vunpack.c.l.b16 %v2558
      %v2593 = vunpack.c.h.b16 %v2558
      %v2594 = vunpack.c.l.b16 %v2559
      %v2595 = vunpack.c.h.b16 %v2559
      %v2596 = vunpack.c.l.b16 %v2560
      %v2597 = vunpack.c.h.b16 %v2560
      %v2598 = vunpack.c.l.b16 %v2561
      %v2599 = vunpack.c.h.b16 %v2561
      %v2600 = vunpack.c.l.b16 %v2562
      %v2601 = vunpack.c.h.b16 %v2562
      %v2602 = vunpack.c.l.b16 %v2563
      %v2603 = vunpack.c.h.b16 %v2563
      %v2604 = vunpack.c.l.b16 %v2564
      %v2605 = vunpack.c.h.b16 %v2564
      %v2606 = vunpack.c.l.b16 %v2565
      %v2607 = vunpack.c.h.b16 %v2565
      %v2608 = vunpack.c.l.b16 %v2566
      %v2609 = vunpack.c.h.b16 %v2566
      %v2610 = vunpack.c.l.b16 %v2567
      %v2611 = vunpack.c.h.b16 %v2567
      %v2612 = vunpack.c.l.b16 %v2568
      %v2613 = vunpack.c.h.b16 %v2568
      %v2614 = vunpack.c.l.b16 %v2569
      %v2615 = vunpack.c.h.b16 %v2569
      %v2616 = vunpack.c.l.b16 %v2570
      %v2617 = vunpack.c.h.b16 %v2570
      %v2618 = vunpack.c.l.b16 %v2571
      %v2619 = vunpack.c.h.b16 %v2571
      %v2620 = vpack.c.b16 %v2588, %v2588
      %v2621 = vpack.c.b16 %v2589, %v2589
      %v2622 = vpack.c.b16 %v2590, %v2590
      %v2623 = vpack.c.b16 %v2591, %v2591
      %v2624 = vpack.c.b16 %v2592, %v2592
      %v2625 = vpack.c.b16 %v2593, %v2593
      %v2626 = vpack.c.b16 %v2594, %v2594
      %v2627 = vpack.c.b16 %v2595, %v2595
      %v2628 = vpack.c.b16 %v2596, %v2596
      %v2629 = vpack.c.b16 %v2597, %v2597
      %v2630 = vpack.c.b16 %v2598, %v2598
      %v2631 = vpack.c.b16 %v2599, %v2599
      %v2632 = vpack.c.b16 %v2600, %v2600
      %v2633 = vpack.c.b16 %v2601, %v2601
      %v2634 = vpack.c.b16 %v2602, %v2602
      %v2635 = vpack.c.b16 %v2603, %v2603
      %v2636 = vpack.c.b16 %v2604, %v2604
      %v2637 = vpack.c.b16 %v2605, %v2605
      %v2638 = vpack.c.b16 %v2606, %v2606
      %v2639 = vpack.c.b16 %v2607, %v2607
      %v2640 = vpack.c.b16 %v2608, %v2608
      %v2641 = vpack.c.b16 %v2609, %v2609
      %v2642 = vpack.c.b16 %v2610, %v2610
      %v2643 = vpack.c.b16 %v2611, %v2611
      %v2644 = vpack.c.b16 %v2612, %v2612
      %v2645 = vpack.c.b16 %v2613, %v2613
      %v2646 = vpack.c.b16 %v2614, %v2614
      %v2647 = vpack.c.b16 %v2615, %v2615
      %v2648 = vpack.c.b16 %v2616, %v2616
      %v2649 = vpack.c.b16 %v2617, %v2617
      %v2650 = vpack.c.b16 %v2618, %v2618
      %v2651 = vpack.c.b16 %v2619, %v2619
      %2684 = vst [vmem:[%s231] sm:$0xf] %v2620
      %2685 = vst [vmem:[%s231 + $0x4] sm:$0xf] %v2621
      %2686 = vst [vmem:[%s231 + $0x8] sm:$0xf] %v2622
      %2687 = vst [vmem:[%s231 + $0xc] sm:$0xf] %v2623
      %2688 = vst [vmem:[%s231 + $0x10] sm:$0xf] %v2624
      %2689 = vst [vmem:[%s231 + $0x14] sm:$0xf] %v2625
      %2690 = vst [vmem:[%s231 + $0x18] sm:$0xf] %v2626
      %2691 = vst [vmem:[%s231 + $0x1c] sm:$0xf] %v2627
      %2692 = vst [vmem:[%s231 + $0x20] sm:$0xf] %v2628
      %2693 = vst [vmem:[%s231 + $0x24] sm:$0xf] %v2629
      %2694 = vst [vmem:[%s231 + $0x28] sm:$0xf] %v2630
      %2695 = vst [vmem:[%s231 + $0x2c] sm:$0xf] %v2631
      %2696 = vst [vmem:[%s231 + $0x30] sm:$0xf] %v2632
      %2697 = vst [vmem:[%s231 + $0x34] sm:$0xf] %v2633
      %2698 = vst [vmem:[%s231 + $0x38] sm:$0xf] %v2634
      %2699 = vst [vmem:[%s231 + $0x3c] sm:$0xf] %v2635
      %2700 = vst [vmem:[%s231 + $0x40] sm:$0xf] %v2636
      %2701 = vst [vmem:[%s231 + $0x44] sm:$0xf] %v2637
      %2702 = vst [vmem:[%s231 + $0x48] sm:$0xf] %v2638
      %2703 = vst [vmem:[%s231 + $0x4c] sm:$0xf] %v2639
      %2704 = vst [vmem:[%s231 + $0x50] sm:$0xf] %v2640
      %2705 = vst [vmem:[%s231 + $0x54] sm:$0xf] %v2641
      %2706 = vst [vmem:[%s231 + $0x58] sm:$0xf] %v2642
      %2707 = vst [vmem:[%s231 + $0x5c] sm:$0xf] %v2643
      %2708 = vst [vmem:[%s231 + $0x60] sm:$0xf] %v2644
      %2709 = vst [vmem:[%s231 + $0x64] sm:$0xf] %v2645
      %2710 = vst [vmem:[%s231 + $0x68] sm:$0xf] %v2646
      %2711 = vst [vmem:[%s231 + $0x6c] sm:$0xf] %v2647
      %2712 = vst [vmem:[%s231 + $0x70] sm:$0xf] %v2648
      %2713 = vst [vmem:[%s231 + $0x74] sm:$0xf] %v2649
      %2714 = vst [vmem:[%s231 + $0x78] sm:$0xf] %v2650
      %2715 = vst [vmem:[%s231 + $0x7c] sm:$0xf] %v2651
      %v2716 = vadd.f32 %v2524, %v2525
      %v2717 = vadd.f32 %v2716, %v2526
      %v2718 = vadd.f32 %v2717, %v2527
      %v2719 = vadd.f32 %v2718, %v2528
      %v2720 = vadd.f32 %v2719, %v2529
      %v2721 = vadd.f32 %v2720, %v2530
      %v2722 = vadd.f32 %v2721, %v2531
      %v2723 = vadd.f32 %v2722, %v2532
      %v2724 = vadd.f32 %v2723, %v2533
      %v2725 = vadd.f32 %v2724, %v2534
      %v2726 = vadd.f32 %v2725, %v2535
      %v2727 = vadd.f32 %v2726, %v2536
      %v2728 = vadd.f32 %v2727, %v2537
      %v2729 = vadd.f32 %v2728, %v2538
      %v2730 = vadd.f32 %v2729, %v2539
      %v2731 = vadd.f32 %v2730, %v2540
      %v2732 = vadd.f32 %v2731, %v2541
      %v2733 = vadd.f32 %v2732, %v2542
      %v2734 = vadd.f32 %v2733, %v2543
      %v2735 = vadd.f32 %v2734, %v2544
      %v2736 = vadd.f32 %v2735, %v2545
      %v2737 = vadd.f32 %v2736, %v2546
      %v2738 = vadd.f32 %v2737, %v2547
      %v2739 = vadd.f32 %v2738, %v2548
      %v2740 = vadd.f32 %v2739, %v2549
      %v2741 = vadd.f32 %v2740, %v2550
      %v2742 = vadd.f32 %v2741, %v2551
      %v2743 = vadd.f32 %v2742, %v2552
      %v2744 = vadd.f32 %v2743, %v2553
      %v2745 = vadd.f32 %v2744, %v2554
      %v2746 = vadd.f32 %v2745, %v2555
      %v2747 = vrot.slane %v2746, 4
      %v2748 = vadd.f32 %v2746, %v2747
      %v2749 = vrot.slane %v2748, 2
      %v2750 = vadd.f32 %v2748, %v2749
      %v2751 = vrot.slane %v2750, 1
      %v2752 = vadd.f32 %v2750, %v2751
      %v2753 = vmul.f32 %v2524, %v2524
      %v2754 = vmul.f32 %v2525, %v2525
      %v2755 = vmul.f32 %v2526, %v2526
      %v2756 = vmul.f32 %v2527, %v2527
      %v2757 = vmul.f32 %v2528, %v2528
      %v2758 = vmul.f32 %v2529, %v2529
      %v2759 = vmul.f32 %v2530, %v2530
      %v2760 = vmul.f32 %v2531, %v2531
      %v2761 = vmul.f32 %v2532, %v2532
      %v2762 = vmul.f32 %v2533, %v2533
      %v2763 = vmul.f32 %v2534, %v2534
      %v2764 = vmul.f32 %v2535, %v2535
      %v2765 = vmul.f32 %v2536, %v2536
      %v2766 = vmul.f32 %v2537, %v2537
      %v2767 = vmul.f32 %v2538, %v2538
      %v2768 = vmul.f32 %v2539, %v2539
      %v2769 = vmul.f32 %v2540, %v2540
      %v2770 = vmul.f32 %v2541, %v2541
      %v2771 = vmul.f32 %v2542, %v2542
      %v2772 = vmul.f32 %v2543, %v2543
      %v2773 = vmul.f32 %v2544, %v2544
      %v2774 = vmul.f32 %v2545, %v2545
      %v2775 = vmul.f32 %v2546, %v2546
      %v2776 = vmul.f32 %v2547, %v2547
      %v2777 = vmul.f32 %v2548, %v2548
      %v2778 = vmul.f32 %v2549, %v2549
      %v2779 = vmul.f32 %v2550, %v2550
      %v2780 = vmul.f32 %v2551, %v2551
      %v2781 = vmul.f32 %v2552, %v2552
      %v2782 = vmul.f32 %v2553, %v2553
      %v2783 = vmul.f32 %v2554, %v2554
      %v2784 = vmul.f32 %v2555, %v2555
      %v2785 = vadd.f32 %v2753, %v2754
      %v2786 = vadd.f32 %v2785, %v2755
      %v2787 = vadd.f32 %v2786, %v2756
      %v2788 = vadd.f32 %v2787, %v2757
      %v2789 = vadd.f32 %v2788, %v2758
      %v2790 = vadd.f32 %v2789, %v2759
      %v2791 = vadd.f32 %v2790, %v2760
      %v2792 = vadd.f32 %v2791, %v2761
      %v2793 = vadd.f32 %v2792, %v2762
      %v2794 = vadd.f32 %v2793, %v2763
      %v2795 = vadd.f32 %v2794, %v2764
      %v2796 = vadd.f32 %v2795, %v2765
      %v2797 = vadd.f32 %v2796, %v2766
      %v2798 = vadd.f32 %v2797, %v2767
      %v2799 = vadd.f32 %v2798, %v2768
      %v2800 = vadd.f32 %v2799, %v2769
      %v2801 = vadd.f32 %v2800, %v2770
      %v2802 = vadd.f32 %v2801, %v2771
      %v2803 = vadd.f32 %v2802, %v2772
      %v2804 = vadd.f32 %v2803, %v2773
      %v2805 = vadd.f32 %v2804, %v2774
      %v2806 = vadd.f32 %v2805, %v2775
      %v2807 = vadd.f32 %v2806, %v2776
      %v2808 = vadd.f32 %v2807, %v2777
      %v2809 = vadd.f32 %v2808, %v2778
      %v2810 = vadd.f32 %v2809, %v2779
      %v2811 = vadd.f32 %v2810, %v2780
      %v2812 = vadd.f32 %v2811, %v2781
      %v2813 = vadd.f32 %v2812, %v2782
      %v2814 = vadd.f32 %v2813, %v2783
      %v2815 = vadd.f32 %v2814, %v2784
      %v2816 = vrot.slane %v2815, 4
      %v2817 = vadd.f32 %v2815, %v2816
      %v2818 = vrot.slane %v2817, 2
      %v2819 = vadd.f32 %v2817, %v2818
      %v2820 = vrot.slane %v2819, 1
      %v2821 = vadd.f32 %v2819, %v2820
      %vm2822 = vcmask 1040384
      %v2823 = vsel %vm2822, %v2752, %v2821
      %2824 = vst [vmem:[%s235] sm:$0x3] %v2823
      %p2825 = scmp.lt.s32.totalorder %s17, 1
      %s2826 = scalar_select %p2825, %s17, 1
      %s2827 = smul.addr %s2826, 32
      %s2828 = smul.addr %s2827, 4
      %s2829 = scalar_lea.vmem %s4, %s2828
      %p2830 = scmp.lt.s32.totalorder %s17, 1
      %s2831 = scalar_select %p2830, %s17, 1
      %s2832 = smul.addr %s2831, 2
      %s2833 = scalar_lea.vmem %s5, %s2832
      // Predicated region
      $region37: #{bottleneck_forward.5} parent=35 // pred_check
        %p2834 = pneg %p124
      $region38: #{bottleneck_forward.5} parent=35 // pred_check_branch
        %2836 = sbr.rel (%p2834) target = $region40
      $region39: #{bottleneck_forward.5} parent=35 // pred_region
        _
      $region40: #{bottleneck_forward.5} parent=35 // pred_fallthru
        _
      // Predicated region
      $region41: #{bottleneck_forward.5} parent=35 // pred_check
        %p2837 = pneg %p150
      $region42: #{bottleneck_forward.5} parent=35 // pred_check_branch
        %2839 = sbr.rel (%p2837) target = $region44
      $region43: #{bottleneck_forward.5} parent=35 // pred_region
        _
      $region44: #{bottleneck_forward.5} parent=35 // pred_fallthru
        _
    $region36: #{bottleneck_forward.5} parent=5 // pred_fallthru
      _
    %p2840 = scmp.le.s32.totalorder 2, %s12
    // Predicated region
    $region45: #{bottleneck_forward.5} parent=5 // pred_check
      %p2841 = pneg %p2840
    $region46: #{bottleneck_forward.5} parent=5 // pred_check_branch
      %2843 = sbr.rel (%p2841) target = $region48
    $region47: #{bottleneck_forward.5} parent=5 // pred_region
      %s2844 = ssub.s32 %s12, 2
      // Predicated region
      $region49: #{bottleneck_forward.5} parent=47 // pred_check
        %p2845 = pneg %p130
      $region50: #{bottleneck_forward.5} parent=47 // pred_check_branch
        %2847 = sbr.rel (%p2845) target = $region52
      $region51: #{bottleneck_forward.5} parent=47 // pred_region
        %p2848 = scmp.lt.s32.totalorder %s18, 1
        %s2849 = scalar_select %p2848, %s18, 1
        %s2850 = smul.addr %s2849, 32
        %s2851 = smul.addr %s2850, 4
        %s2852 = scalar_lea.vmem %s4, %s2851
      $region52: #{bottleneck_forward.5} parent=47 // pred_fallthru
        _
      // Predicated region
      $region53: #{bottleneck_forward.5} parent=47 // pred_check
        %p2853 = pneg %p156
      $region54: #{bottleneck_forward.5} parent=47 // pred_check_branch
        %2855 = sbr.rel (%p2853) target = $region56
      $region55: #{bottleneck_forward.5} parent=47 // pred_region
        %p2856 = scmp.lt.s32.totalorder %s18, 1
        %s2857 = scalar_select %p2856, %s18, 1
        %s2858 = smul.addr %s2857, 2
        %s2859 = scalar_lea.vmem %s5, %s2858
      $region56: #{bottleneck_forward.5} parent=47 // pred_fallthru
        _
    $region48: #{bottleneck_forward.5} parent=5 // pred_fallthru
      _
  $region6: #{bottleneck_forward.5} parent=0 // loop_footer
    %s16 = sadd.s32 1, %s12
  $region7: #{bottleneck_forward.5} parent=0 // loop_footer_branch
    %11 = sbr.rel target = $region3
  $region8: #{bottleneck_forward.5} parent=0 // loop_exit
    _

</llo_original>
